<compile_context>
chip_gen: v7x
topology: tpu7x:2x2x1
jax: 0.10.0
libtpu: 0.0.40
codegen_flags: <defaults>
</compile_context>

<pallas_src>
import math
from functools import partial

import jax
import jax.numpy as jnp
from jax.experimental import pallas as pl
from jax.experimental.pallas import tpu as pltpu

# ------------------------------ small config ------------------------------
HIDDEN = 64          # hidden_size
N_HEADS = 4          # n_heads
HEAD_DIM = HIDDEN // N_HEADS
HALF_DIM = HEAD_DIM // 2
MLP_RATIO = 4
VOCAB = 256          # vocab_size (small synthetic)
N_BLOCKS = 2         # n_blocks
LN_EPS = 1e-5        # F.layer_norm default eps


# ------------------------------ kernel helpers ------------------------------
def _layer_norm(x, eps=LN_EPS):
    mu = jnp.mean(x, axis=-1, keepdims=True)
    xc = x - mu
    var = jnp.mean(xc * xc, axis=-1, keepdims=True)
    return xc * jax.lax.rsqrt(var + eps)


def _gelu_tanh(x):
    c = math.sqrt(2.0 / math.pi)
    return 0.5 * x * (1.0 + jnp.tanh(c * (x + 0.044715 * x * x * x)))


# ------------------------------ fused forward kernel ------------------------------
def fused_forward_kernel(x_ref, idx_ref, cos_ref, sin_ref,
                         n1w_ref, wqkv_ref, wout_ref, n2w_ref,
                         w1_ref, b1_ref, w2_ref, b2_ref,
                         nfw_ref, wf_ref, bf_ref,
                         o_ref, *, n_heads, n_blocks):
    R, D = x_ref.shape          # R = rows of this tile (= one full sequence)
    H = n_heads
    d = D // H
    d2 = d // 2
    bf16 = jnp.bfloat16
    f32 = jnp.float32

    x = x_ref[...]                               # (R, D) f32 residual stream
    cos = cos_ref[...][None, :, :]               # (1, R, d/2)
    sin = sin_ref[...][None, :, :]

    # Causal mask generated in-kernel (no O(R^2) HBM input).  One tile holds
    # exactly one sequence, so block-diagonal causal == plain causal here.
    ri = jax.lax.broadcasted_iota(jnp.int32, (R, R), 0)
    ci = jax.lax.broadcasted_iota(jnp.int32, (R, R), 1)
    causal = (ci <= ri)[None, :, :]              # (1, R, R)

    # static unroll is fine at n_blocks=2; use lax.fori_loop for deep stacks.
    for i in range(n_blocks):
        # --- norm1 (f32) -> fused qkv projection (bf16 MXU, f32 acc) ---
        xn = (_layer_norm(x) * n1w_ref[i]).astype(bf16)
        qkv = jnp.dot(xn, wqkv_ref[i], preferred_element_type=f32)   # (R, 3D)

        # head-major q / k / v : (H, R, d)
        q = jnp.stack([qkv[:, h * d:(h + 1) * d] for h in range(H)], axis=0)
        k = jnp.stack([qkv[:, D + h * d:D + (h + 1) * d] for h in range(H)], axis=0)
        v = jnp.stack([qkv[:, 2 * D + h * d:2 * D + (h + 1) * d] for h in range(H)], axis=0)

        # RoPE in split-half form (no lane concatenate / roll needed because
        # the two halves are contracted separately in the score matmuls).
        # Softmax scale is already folded into the q columns of w_qkv.
        q1, q2 = q[..., :d2], q[..., d2:]
        k1, k2 = k[..., :d2], k[..., d2:]
        q1r = (q1 * cos - q2 * sin).astype(bf16)
        q2r = (q2 * cos + q1 * sin).astype(bf16)
        k1r = (k1 * cos - k2 * sin).astype(bf16)
        k2r = (k2 * cos + k1 * sin).astype(bf16)

        # --- causal attention: head-batched (leading batch dim) contractions ---
        s = (jnp.einsum('hqd,hkd->hqk', q1r, k1r, preferred_element_type=f32)
             + jnp.einsum('hqd,hkd->hqk', q2r, k2r, preferred_element_type=f32))
        s = jnp.where(causal, s, -1e30)          # keep f32: -1e30 safe in f32
        m = jnp.max(s, axis=-1, keepdims=True)
        p = jnp.exp(s - m)                       # unnormalized probabilities
        l = jnp.sum(p, axis=-1, keepdims=True)   # (H, R, 1)
        ao = jnp.einsum('hqk,hkd->hqd', p.astype(bf16), v.astype(bf16),
                        preferred_element_type=f32)          # (H, R, d)
        ao = ao * pl.reciprocal(l, approx=True)  # normalize on O(R*d), EUP slot

        # --- out projection as a sum of per-head dots (no lane concat) ---
        attn_out = jnp.dot(ao[0].astype(bf16), wout_ref[i, 0],
                           preferred_element_type=f32)
        for h in range(1, H):
            attn_out = attn_out + jnp.dot(ao[h].astype(bf16), wout_ref[i, h],
                                          preferred_element_type=f32)
        x = x + attn_out

        # --- norm2 -> MLP (Linear -> GELU(tanh) -> Linear) + residual ---
        xn2 = (_layer_norm(x) * n2w_ref[i]).astype(bf16)
        h1 = jnp.dot(xn2, w1_ref[i], preferred_element_type=f32) + b1_ref[i]
        h2 = jnp.dot(_gelu_tanh(h1).astype(bf16), w2_ref[i],
                     preferred_element_type=f32) + b2_ref[i]
        x = x + h2

    # --- final layer: norm -> vocab projection -> zero own-token logit ---
    xn = (_layer_norm(x) * nfw_ref[...]).astype(bf16)
    logits = jnp.dot(xn, wf_ref[...], preferred_element_type=f32) + bf_ref[...]
    col = jax.lax.broadcasted_iota(jnp.int32, logits.shape, 1)
    # torch.scatter(x, -1, indices[..., None], zeros)
    logits = jnp.where(col == idx_ref[...], 0.0, logits)
    o_ref[...] = logits.astype(o_ref.dtype)      # (R, V) bf16, lane-dense store


# ------------------------------ host glue ------------------------------
def rotary_cos_sin(seq_len, head_dim, base=10000.0):
    inv_freq = 1.0 / (base ** (jnp.arange(0, head_dim, 2, dtype=jnp.float32) / head_dim))
    t = jnp.arange(seq_len, dtype=jnp.float32)
    freqs = t[:, None] * inv_freq[None, :]              # (S, head_dim//2)
    return jnp.cos(freqs), jnp.sin(freqs)


def init_params(key):
    ks = jax.random.split(key, 2 + N_BLOCKS)
    emb = jax.random.normal(ks[0], (VOCAB, HIDDEN), jnp.float32) * 0.02

    bkeys = [jax.random.split(ks[1 + i], 6) for i in range(N_BLOCKS)]

    def stack(idx, shape, scl):
        return jnp.stack([jax.random.normal(bkeys[i][idx], shape, jnp.float32) * scl
                          for i in range(N_BLOCKS)], axis=0)

    bf16 = jnp.bfloat16
    # fold the flash-attention softmax scale (1/sqrt(head_dim)) into the q
    # columns of w_qkv: RoPE and q.k^T are linear in q, so this is exact and
    # removes the per-score (or per-q) multiply from the kernel.
    scale = 1.0 / math.sqrt(HEAD_DIM)
    w_qkv = stack(0, (HIDDEN, 3 * HIDDEN), 0.02)
    w_qkv = w_qkv.at[:, :, :HIDDEN].multiply(scale)
    w_out = stack(1, (HIDDEN, HIDDEN), 0.02)

    blocks = dict(
        norm1_w=jnp.ones((N_BLOCKS, 1, HIDDEN), jnp.float32),
        w_qkv=w_qkv.astype(bf16),
        # (blocks, head, d, D): lets the kernel apply the out-projection as a
        # sum of per-head dots (avoids the (H,R,d)->(R,D) lane concatenation).
        w_out=w_out.reshape(N_BLOCKS, N_HEADS, HEAD_DIM, HIDDEN).astype(bf16),
        norm2_w=jnp.ones((N_BLOCKS, 1, HIDDEN), jnp.float32),
        w_mlp1=stack(2, (HIDDEN, MLP_RATIO * HIDDEN), 0.02).astype(bf16),
        b_mlp1=stack(3, (1, MLP_RATIO * HIDDEN), 0.01),
        w_mlp2=stack(4, (MLP_RATIO * HIDDEN, HIDDEN), 0.02).astype(bf16),
        b_mlp2=stack(5, (1, HIDDEN), 0.01),
    )
    kf = jax.random.split(ks[-1], 2)
    # NOTE: the torch __init__ zero-inits the final linear; we use small
    # deterministic random values so the synthetic test is non-trivial.
    final = dict(
        norm_w=jnp.ones((1, HIDDEN), jnp.float32),
        w=(jax.random.normal(kf[0], (HIDDEN, VOCAB), jnp.float32) * 0.02).astype(bf16),
        b=jax.random.normal(kf[1], (1, VOCAB), jnp.float32) * 0.01,
    )
    return emb, blocks, final


def seddbackbone_forward(indices, emb, blocks, final):
    B, S = indices.shape
    R = B * S
    D = HIDDEN

    # vocab_embed: data-dependent embedding gather kept in plain JAX.
    x = jnp.take(emb, indices.reshape(-1), axis=0)       # (R, D) f32

    cos, sin = rotary_cos_sin(S, HEAD_DIM)               # (S, d/2) each
    idx = indices.reshape(R, 1).astype(jnp.int32)

    def full(a):  # whole-array block, resident across all grid steps
        return pl.BlockSpec(a.shape, lambda b, nd=a.ndim: (0,) * nd)

    grid_spec = pltpu.PrefetchScalarGridSpec(
        num_scalar_prefetch=0,
        grid=(B,),                                       # one sequence per step
        in_specs=[
            pl.BlockSpec((S, D), lambda b: (b, 0)),      # x rows
            pl.BlockSpec((S, 1), lambda b: (b, 0)),      # token indices
            full(cos), full(sin),
            full(blocks["norm1_w"]), full(blocks["w_qkv"]),
            full(blocks["w_out"]), full(blocks["norm2_w"]),
            full(blocks["w_mlp1"]), full(blocks["b_mlp1"]),
            full(blocks["w_mlp2"]), full(blocks["b_mlp2"]),
            full(final["norm_w"]), full(final["w"]), full(final["b"]),
        ],
        out_specs=pl.BlockSpec((S, VOCAB), lambda b: (b, 0)),
    )

    out_flat = pl.pallas_call(
        partial(fused_forward_kernel, n_heads=N_HEADS, n_blocks=N_BLOCKS),
        out_shape=jax.ShapeDtypeStruct((R, VOCAB), jnp.bfloat16),
        grid_spec=grid_spec,
        compiler_params=pltpu.CompilerParams(
            dimension_semantics=("parallel",),           # v7x: both TensorCores
            vmem_limit_bytes=32 * 1024 * 1024),
    )(x, idx, cos, sin,
      blocks["norm1_w"], blocks["w_qkv"], blocks["w_out"], blocks["norm2_w"],
      blocks["w_mlp1"], blocks["b_mlp1"], blocks["w_mlp2"], blocks["b_mlp2"],
      final["norm_w"], final["w"], final["b"])

    return out_flat.reshape(B, S, VOCAB)                 # (B, S, V) bf16


# ------------------------------ main ------------------------------
if __name__ == "__main__":
    key = jax.random.PRNGKey(0)
    pkey, ikey = jax.random.split(key)
    emb, blocks, final = init_params(pkey)

    B, S = 2, 16
    indices = jax.random.randint(ikey, (B, S), 0, VOCAB, dtype=jnp.int32)

    out = seddbackbone_forward(indices, emb, blocks, final)
    out = jax.block_until_ready(out)

    assert out.shape == (B, S, VOCAB), out.shape
    assert out.dtype == jnp.bfloat16, out.dtype
    assert bool(jnp.all(jnp.isfinite(out.astype(jnp.float32))))
    # scatter semantics: the logit of each row's own token must be exactly 0
    own = jnp.take_along_axis(out.astype(jnp.float32), indices[..., None], axis=-1)
    assert bool(jnp.all(own == 0.0))
    print("KERNEL_OK")
</pallas_src>

<mosaic_0001>
module attributes {stable_mosaic.version = 11 : i64} {
  func.func @fused_forward_kernel(%arg0: i32, %arg1: memref<16x64xf32, #tpu.memory_space<vmem>>, %arg2: memref<16x1xi32, #tpu.memory_space<vmem>>, %arg3: memref<16x8xf32, #tpu.memory_space<vmem>>, %arg4: memref<16x8xf32, #tpu.memory_space<vmem>>, %arg5: memref<2x1x64xf32, #tpu.memory_space<vmem>>, %arg6: memref<2x64x192xbf16, #tpu.memory_space<vmem>>, %arg7: memref<2x4x16x64xbf16, #tpu.memory_space<vmem>>, %arg8: memref<2x1x64xf32, #tpu.memory_space<vmem>>, %arg9: memref<2x64x256xbf16, #tpu.memory_space<vmem>>, %arg10: memref<2x1x256xf32, #tpu.memory_space<vmem>>, %arg11: memref<2x256x64xbf16, #tpu.memory_space<vmem>>, %arg12: memref<2x1x64xf32, #tpu.memory_space<vmem>>, %arg13: memref<1x64xf32, #tpu.memory_space<vmem>>, %arg14: memref<64x256xbf16, #tpu.memory_space<vmem>>, %arg15: memref<1x256xf32, #tpu.memory_space<vmem>>, %arg16: memref<16x256xbf16, #tpu.memory_space<vmem>>) attributes {dimension_semantics = [#tpu.dimension_semantics<parallel>], iteration_bounds = array<i64: 2>, scalar_prefetch = 0 : i64, scratch_operands = 0 : i64, tpu.core_type = #tpu.core_type<tc>, window_params = [{transform_indices = @transform_0, window_bounds = array<i64: 16, 64>}, {transform_indices = @transform_1, window_bounds = array<i64: 16, 1>}, {pipeline_mode = #tpu.pipeline_mode<synchronous>, transform_indices = @transform_2, window_bounds = array<i64: 16, 8>}, {pipeline_mode = #tpu.pipeline_mode<synchronous>, transform_indices = @transform_3, window_bounds = array<i64: 16, 8>}, {pipeline_mode = #tpu.pipeline_mode<synchronous>, transform_indices = @transform_4, window_bounds = array<i64: 2, 1, 64>}, {pipeline_mode = #tpu.pipeline_mode<synchronous>, transform_indices = @transform_5, window_bounds = array<i64: 2, 64, 192>}, {pipeline_mode = #tpu.pipeline_mode<synchronous>, transform_indices = @transform_6, window_bounds = array<i64: 2, 4, 16, 64>}, {pipeline_mode = #tpu.pipeline_mode<synchronous>, transform_indices = @transform_7, window_bounds = array<i64: 2, 1, 64>}, {pipeline_mode = #tpu.pipeline_mode<synchronous>, transform_indices = @transform_8, window_bounds = array<i64: 2, 64, 256>}, {pipeline_mode = #tpu.pipeline_mode<synchronous>, transform_indices = @transform_9, window_bounds = array<i64: 2, 1, 256>}, {pipeline_mode = #tpu.pipeline_mode<synchronous>, transform_indices = @transform_10, window_bounds = array<i64: 2, 256, 64>}, {pipeline_mode = #tpu.pipeline_mode<synchronous>, transform_indices = @transform_11, window_bounds = array<i64: 2, 1, 64>}, {pipeline_mode = #tpu.pipeline_mode<synchronous>, transform_indices = @transform_12, window_bounds = array<i64: 1, 64>}, {pipeline_mode = #tpu.pipeline_mode<synchronous>, transform_indices = @transform_13, window_bounds = array<i64: 64, 256>}, {pipeline_mode = #tpu.pipeline_mode<synchronous>, transform_indices = @transform_14, window_bounds = array<i64: 1, 256>}, {transform_indices = @transform_15, window_bounds = array<i64: 16, 256>}]} {
    %c0 = arith.constant 0 : index
    %c0_0 = arith.constant 0 : index
    %0 = vector.load %arg1[%c0, %c0_0] : memref<16x64xf32, #tpu.memory_space<vmem>>, vector<16x64xf32>
    %c0_1 = arith.constant 0 : index
    %c0_2 = arith.constant 0 : index
    %1 = vector.load %arg3[%c0_1, %c0_2] : memref<16x8xf32, #tpu.memory_space<vmem>>, vector<16x8xf32>
    %2 = vector.shape_cast %1 : vector<16x8xf32> to vector<1x16x8xf32>
    %c0_3 = arith.constant 0 : index
    %c0_4 = arith.constant 0 : index
    %3 = vector.load %arg4[%c0_3, %c0_4] : memref<16x8xf32, #tpu.memory_space<vmem>>, vector<16x8xf32>
    %4 = vector.shape_cast %3 : vector<16x8xf32> to vector<1x16x8xf32>
    %5 = tpu.iota {dimensions = array<i32: 0>} : vector<16x16xi32>
    %6 = tpu.iota {dimensions = array<i32: 1>} : vector<16x16xi32>
    %7 = arith.cmpi sle, %6, %5 : vector<16x16xi32>
    %8 = vector.shape_cast %7 : vector<16x16xi1> to vector<1x16x16xi1>
    %cst = arith.constant dense<0.000000e+00> : vector<16xf32>
    %9 = vector.multi_reduction <add>, %0, %cst [1] : vector<16x64xf32> to vector<16xf32>
    %10 = vector.shape_cast %9 : vector<16xf32> to vector<16x1xf32>
    %cst_5 = arith.constant 6.400000e+01 : f32
    %11 = vector.broadcast %cst_5 : f32 to vector<16x1xf32>
    %12 = arith.divf %10, %11 : vector<16x1xf32>
    %13 = vector.broadcast %12 : vector<16x1xf32> to vector<16x64xf32>
    %14 = arith.subf %0, %13 : vector<16x64xf32>
    %15 = arith.mulf %14, %14 : vector<16x64xf32>
    %cst_6 = arith.constant dense<0.000000e+00> : vector<16xf32>
    %16 = vector.multi_reduction <add>, %15, %cst_6 [1] : vector<16x64xf32> to vector<16xf32>
    %17 = vector.shape_cast %16 : vector<16xf32> to vector<16x1xf32>
    %cst_7 = arith.constant 6.400000e+01 : f32
    %18 = vector.broadcast %cst_7 : f32 to vector<16x1xf32>
    %19 = arith.divf %17, %18 : vector<16x1xf32>
    %cst_8 = arith.constant 9.99999974E-6 : f32
    %20 = vector.broadcast %cst_8 : f32 to vector<16x1xf32>
    %21 = arith.addf %19, %20 : vector<16x1xf32>
    %22 = math.rsqrt %21 : vector<16x1xf32>
    %23 = vector.broadcast %22 : vector<16x1xf32> to vector<16x64xf32>
    %24 = arith.mulf %14, %23 : vector<16x64xf32>
    %c0_9 = arith.constant 0 : index
    %c0_10 = arith.constant 0 : index
    %c0_11 = arith.constant 0 : index
    %25 = vector.load %arg5[%c0_9, %c0_10, %c0_11] : memref<2x1x64xf32, #tpu.memory_space<vmem>>, vector<1x1x64xf32>
    %26 = vector.shape_cast %25 : vector<1x1x64xf32> to vector<1x64xf32>
    %27 = vector.broadcast %26 : vector<1x64xf32> to vector<16x64xf32>
    %28 = arith.mulf %24, %27 : vector<16x64xf32>
    %29 = arith.truncf %28 : vector<16x64xf32> to vector<16x64xbf16>
    %c0_12 = arith.constant 0 : index
    %c0_13 = arith.constant 0 : index
    %c0_14 = arith.constant 0 : index
    %30 = vector.load %arg6[%c0_12, %c0_13, %c0_14] : memref<2x64x192xbf16, #tpu.memory_space<vmem>>, vector<1x64x192xbf16>
    %31 = vector.shape_cast %30 : vector<1x64x192xbf16> to vector<64x192xbf16>
    %cst_15 = arith.constant dense<0.000000e+00> : vector<16x192xf32>
    %32 = tpu.matmul %29, %31, %cst_15 {dimension_numbers = #tpu.dot_dimension_numbers<[1], [0], [0], [1], [0, 0, 1, 1], [], []>} : vector<16x64xbf16>, vector<64x192xbf16>, vector<16x192xf32> -> vector<16x192xf32>
    %33 = vector.extract_strided_slice %32 {offsets = [0, 0], sizes = [16, 16], strides = [1, 1]} : vector<16x192xf32> to vector<16x16xf32>
    %34 = vector.extract_strided_slice %32 {offsets = [0, 16], sizes = [16, 16], strides = [1, 1]} : vector<16x192xf32> to vector<16x16xf32>
    %35 = vector.extract_strided_slice %32 {offsets = [0, 32], sizes = [16, 16], strides = [1, 1]} : vector<16x192xf32> to vector<16x16xf32>
    %36 = vector.extract_strided_slice %32 {offsets = [0, 48], sizes = [16, 16], strides = [1, 1]} : vector<16x192xf32> to vector<16x16xf32>
    %37 = vector.shape_cast %33 : vector<16x16xf32> to vector<1x16x16xf32>
    %38 = vector.shape_cast %34 : vector<16x16xf32> to vector<1x16x16xf32>
    %39 = vector.shape_cast %35 : vector<16x16xf32> to vector<1x16x16xf32>
    %40 = vector.shape_cast %36 : vector<16x16xf32> to vector<1x16x16xf32>
    %41 = tpu.concatenate %37, %38, %39, %40 in 0 : vector<1x16x16xf32>, vector<1x16x16xf32>, vector<1x16x16xf32>, vector<1x16x16xf32> -> vector<4x16x16xf32>
    %42 = vector.extract_strided_slice %32 {offsets = [0, 64], sizes = [16, 16], strides = [1, 1]} : vector<16x192xf32> to vector<16x16xf32>
    %43 = vector.extract_strided_slice %32 {offsets = [0, 80], sizes = [16, 16], strides = [1, 1]} : vector<16x192xf32> to vector<16x16xf32>
    %44 = vector.extract_strided_slice %32 {offsets = [0, 96], sizes = [16, 16], strides = [1, 1]} : vector<16x192xf32> to vector<16x16xf32>
    %45 = vector.extract_strided_slice %32 {offsets = [0, 112], sizes = [16, 16], strides = [1, 1]} : vector<16x192xf32> to vector<16x16xf32>
    %46 = vector.shape_cast %42 : vector<16x16xf32> to vector<1x16x16xf32>
    %47 = vector.shape_cast %43 : vector<16x16xf32> to vector<1x16x16xf32>
    %48 = vector.shape_cast %44 : vector<16x16xf32> to vector<1x16x16xf32>
    %49 = vector.shape_cast %45 : vector<16x16xf32> to vector<1x16x16xf32>
    %50 = tpu.concatenate %46, %47, %48, %49 in 0 : vector<1x16x16xf32>, vector<1x16x16xf32>, vector<1x16x16xf32>, vector<1x16x16xf32> -> vector<4x16x16xf32>
    %51 = vector.extract_strided_slice %32 {offsets = [0, 128], sizes = [16, 16], strides = [1, 1]} : vector<16x192xf32> to vector<16x16xf32>
    %52 = vector.extract_strided_slice %32 {offsets = [0, 144], sizes = [16, 16], strides = [1, 1]} : vector<16x192xf32> to vector<16x16xf32>
    %53 = vector.extract_strided_slice %32 {offsets = [0, 160], sizes = [16, 16], strides = [1, 1]} : vector<16x192xf32> to vector<16x16xf32>
    %54 = vector.extract_strided_slice %32 {offsets = [0, 176], sizes = [16, 16], strides = [1, 1]} : vector<16x192xf32> to vector<16x16xf32>
    %55 = vector.shape_cast %51 : vector<16x16xf32> to vector<1x16x16xf32>
    %56 = vector.shape_cast %52 : vector<16x16xf32> to vector<1x16x16xf32>
    %57 = vector.shape_cast %53 : vector<16x16xf32> to vector<1x16x16xf32>
    %58 = vector.shape_cast %54 : vector<16x16xf32> to vector<1x16x16xf32>
    %59 = tpu.concatenate %55, %56, %57, %58 in 0 : vector<1x16x16xf32>, vector<1x16x16xf32>, vector<1x16x16xf32>, vector<1x16x16xf32> -> vector<4x16x16xf32>
    %60 = vector.extract_strided_slice %41 {offsets = [0, 0, 0], sizes = [4, 16, 8], strides = [1, 1, 1]} : vector<4x16x16xf32> to vector<4x16x8xf32>
    %61 = vector.extract_strided_slice %41 {offsets = [0, 0, 8], sizes = [4, 16, 8], strides = [1, 1, 1]} : vector<4x16x16xf32> to vector<4x16x8xf32>
    %62 = vector.extract_strided_slice %50 {offsets = [0, 0, 0], sizes = [4, 16, 8], strides = [1, 1, 1]} : vector<4x16x16xf32> to vector<4x16x8xf32>
    %63 = vector.extract_strided_slice %50 {offsets = [0, 0, 8], sizes = [4, 16, 8], strides = [1, 1, 1]} : vector<4x16x16xf32> to vector<4x16x8xf32>
    %64 = vector.broadcast %2 : vector<1x16x8xf32> to vector<4x16x8xf32>
    %65 = arith.mulf %60, %64 : vector<4x16x8xf32>
    %66 = vector.broadcast %4 : vector<1x16x8xf32> to vector<4x16x8xf32>
    %67 = arith.mulf %61, %66 : vector<4x16x8xf32>
    %68 = arith.subf %65, %67 : vector<4x16x8xf32>
    %69 = arith.truncf %68 : vector<4x16x8xf32> to vector<4x16x8xbf16>
    %70 = vector.broadcast %2 : vector<1x16x8xf32> to vector<4x16x8xf32>
    %71 = arith.mulf %61, %70 : vector<4x16x8xf32>
    %72 = vector.broadcast %4 : vector<1x16x8xf32> to vector<4x16x8xf32>
    %73 = arith.mulf %60, %72 : vector<4x16x8xf32>
    %74 = arith.addf %71, %73 : vector<4x16x8xf32>
    %75 = arith.truncf %74 : vector<4x16x8xf32> to vector<4x16x8xbf16>
    %76 = vector.broadcast %2 : vector<1x16x8xf32> to vector<4x16x8xf32>
    %77 = arith.mulf %62, %76 : vector<4x16x8xf32>
    %78 = vector.broadcast %4 : vector<1x16x8xf32> to vector<4x16x8xf32>
    %79 = arith.mulf %63, %78 : vector<4x16x8xf32>
    %80 = arith.subf %77, %79 : vector<4x16x8xf32>
    %81 = arith.truncf %80 : vector<4x16x8xf32> to vector<4x16x8xbf16>
    %82 = vector.broadcast %2 : vector<1x16x8xf32> to vector<4x16x8xf32>
    %83 = arith.mulf %63, %82 : vector<4x16x8xf32>
    %84 = vector.broadcast %4 : vector<1x16x8xf32> to vector<4x16x8xf32>
    %85 = arith.mulf %62, %84 : vector<4x16x8xf32>
    %86 = arith.addf %83, %85 : vector<4x16x8xf32>
    %87 = arith.truncf %86 : vector<4x16x8xf32> to vector<4x16x8xbf16>
    "tpu.trace_start"() <{level = 10 : i32, message = "hqd,hkd->hqk"}> : () -> ()
    %cst_16 = arith.constant dense<0.000000e+00> : vector<4x16x16xf32>
    %88 = tpu.matmul %69, %81, %cst_16 {dimension_numbers = #tpu.dot_dimension_numbers<[2], [2], [1], [1], [0, 0, 0, 1, 1, 1], [0], [0]>} : vector<4x16x8xbf16>, vector<4x16x8xbf16>, vector<4x16x16xf32> -> vector<4x16x16xf32>
    %cst_17 = arith.constant dense<0.000000e+00> : vector<4x16x16xf32>
    %89 = tpu.matmul %75, %87, %cst_17 {dimension_numbers = #tpu.dot_dimension_numbers<[2], [2], [1], [1], [0, 0, 0, 1, 1, 1], [0], [0]>} : vector<4x16x8xbf16>, vector<4x16x8xbf16>, vector<4x16x16xf32> -> vector<4x16x16xf32>
    "tpu.trace_stop"() : () -> ()
    %90 = arith.addf %88, %89 : vector<4x16x16xf32>
    %cst_18 = arith.constant -1.000000e+30 : f32
    %91 = vector.shape_cast %8 : vector<1x16x16xi1> to vector<1x16x16xi1>
    %92 = vector.broadcast %91 : vector<1x16x16xi1> to vector<4x16x16xi1>
    %93 = vector.broadcast %cst_18 : f32 to vector<4x16x16xf32>
    %94 = arith.select %92, %90, %93 : vector<4x16x16xi1>, vector<4x16x16xf32>
    %cst_19 = arith.constant dense<0xFF800000> : vector<4x16xf32>
    %95 = vector.multi_reduction <maximumf>, %94, %cst_19 [2] : vector<4x16x16xf32> to vector<4x16xf32>
    %96 = vector.shape_cast %95 : vector<4x16xf32> to vector<4x16x1xf32>
    %97 = vector.broadcast %96 : vector<4x16x1xf32> to vector<4x16x16xf32>
    %98 = arith.subf %94, %97 : vector<4x16x16xf32>
    %99 = math.exp %98 : vector<4x16x16xf32>
    %cst_20 = arith.constant dense<0.000000e+00> : vector<4x16xf32>
    %100 = vector.multi_reduction <add>, %99, %cst_20 [2] : vector<4x16x16xf32> to vector<4x16xf32>
    %101 = vector.shape_cast %100 : vector<4x16xf32> to vector<4x16x1xf32>
    %102 = arith.truncf %99 : vector<4x16x16xf32> to vector<4x16x16xbf16>
    %103 = arith.truncf %59 : vector<4x16x16xf32> to vector<4x16x16xbf16>
    "tpu.trace_start"() <{level = 10 : i32, message = "hqk,hkd->hqd"}> : () -> ()
    %cst_21 = arith.constant dense<0.000000e+00> : vector<4x16x16xf32>
    %104 = tpu.matmul %102, %103, %cst_21 {dimension_numbers = #tpu.dot_dimension_numbers<[2], [1], [1], [2], [0, 0, 0, 1, 1, 2], [0], [0]>} : vector<4x16x16xbf16>, vector<4x16x16xbf16>, vector<4x16x16xf32> -> vector<4x16x16xf32>
    "tpu.trace_stop"() : () -> ()
    %105 = tpu.reciprocal %101 {approx = true} : vector<4x16x1xf32> -> vector<4x16x1xf32>
    %106 = vector.broadcast %105 : vector<4x16x1xf32> to vector<4x16x16xf32>
    %107 = arith.mulf %104, %106 : vector<4x16x16xf32>
    %108 = vector.extract_strided_slice %107 {offsets = [0, 0, 0], sizes = [1, 16, 16], strides = [1, 1, 1]} : vector<4x16x16xf32> to vector<1x16x16xf32>
    %109 = vector.shape_cast %108 : vector<1x16x16xf32> to vector<16x16xf32>
    %110 = arith.truncf %109 : vector<16x16xf32> to vector<16x16xbf16>
    %c0_22 = arith.constant 0 : index
    %c0_23 = arith.constant 0 : index
    %c0_24 = arith.constant 0 : index
    %c0_25 = arith.constant 0 : index
    %111 = vector.load %arg7[%c0_22, %c0_23, %c0_24, %c0_25] : memref<2x4x16x64xbf16, #tpu.memory_space<vmem>>, vector<1x1x16x64xbf16>
    %112 = vector.shape_cast %111 : vector<1x1x16x64xbf16> to vector<16x64xbf16>
    %cst_26 = arith.constant dense<0.000000e+00> : vector<16x64xf32>
    %113 = tpu.matmul %110, %112, %cst_26 {dimension_numbers = #tpu.dot_dimension_numbers<[1], [0], [0], [1], [0, 0, 1, 1], [], []>} : vector<16x16xbf16>, vector<16x64xbf16>, vector<16x64xf32> -> vector<16x64xf32>
    %114 = vector.extract_strided_slice %107 {offsets = [1, 0, 0], sizes = [1, 16, 16], strides = [1, 1, 1]} : vector<4x16x16xf32> to vector<1x16x16xf32>
    %115 = vector.shape_cast %114 : vector<1x16x16xf32> to vector<16x16xf32>
    %116 = arith.truncf %115 : vector<16x16xf32> to vector<16x16xbf16>
    %c0_27 = arith.constant 0 : index
    %c1 = arith.constant 1 : index
    %c0_28 = arith.constant 0 : index
    %c0_29 = arith.constant 0 : index
    %117 = vector.load %arg7[%c0_27, %c1, %c0_28, %c0_29] : memref<2x4x16x64xbf16, #tpu.memory_space<vmem>>, vector<1x1x16x64xbf16>
    %118 = vector.shape_cast %117 : vector<1x1x16x64xbf16> to vector<16x64xbf16>
    %cst_30 = arith.constant dense<0.000000e+00> : vector<16x64xf32>
    %119 = tpu.matmul %116, %118, %cst_30 {dimension_numbers = #tpu.dot_dimension_numbers<[1], [0], [0], [1], [0, 0, 1, 1], [], []>} : vector<16x16xbf16>, vector<16x64xbf16>, vector<16x64xf32> -> vector<16x64xf32>
    %120 = arith.addf %113, %119 : vector<16x64xf32>
    %121 = vector.extract_strided_slice %107 {offsets = [2, 0, 0], sizes = [1, 16, 16], strides = [1, 1, 1]} : vector<4x16x16xf32> to vector<1x16x16xf32>
    %122 = vector.shape_cast %121 : vector<1x16x16xf32> to vector<16x16xf32>
    %123 = arith.truncf %122 : vector<16x16xf32> to vector<16x16xbf16>
    %c0_31 = arith.constant 0 : index
    %c2 = arith.constant 2 : index
    %c0_32 = arith.constant 0 : index
    %c0_33 = arith.constant 0 : index
    %124 = vector.load %arg7[%c0_31, %c2, %c0_32, %c0_33] : memref<2x4x16x64xbf16, #tpu.memory_space<vmem>>, vector<1x1x16x64xbf16>
    %125 = vector.shape_cast %124 : vector<1x1x16x64xbf16> to vector<16x64xbf16>
    %cst_34 = arith.constant dense<0.000000e+00> : vector<16x64xf32>
    %126 = tpu.matmul %123, %125, %cst_34 {dimension_numbers = #tpu.dot_dimension_numbers<[1], [0], [0], [1], [0, 0, 1, 1], [], []>} : vector<16x16xbf16>, vector<16x64xbf16>, vector<16x64xf32> -> vector<16x64xf32>
    %127 = arith.addf %120, %126 : vector<16x64xf32>
    %128 = vector.extract_strided_slice %107 {offsets = [3, 0, 0], sizes = [1, 16, 16], strides = [1, 1, 1]} : vector<4x16x16xf32> to vector<1x16x16xf32>
    %129 = vector.shape_cast %128 : vector<1x16x16xf32> to vector<16x16xf32>
    %130 = arith.truncf %129 : vector<16x16xf32> to vector<16x16xbf16>
    %c0_35 = arith.constant 0 : index
    %c3 = arith.constant 3 : index
    %c0_36 = arith.constant 0 : index
    %c0_37 = arith.constant 0 : index
    %131 = vector.load %arg7[%c0_35, %c3, %c0_36, %c0_37] : memref<2x4x16x64xbf16, #tpu.memory_space<vmem>>, vector<1x1x16x64xbf16>
    %132 = vector.shape_cast %131 : vector<1x1x16x64xbf16> to vector<16x64xbf16>
    %cst_38 = arith.constant dense<0.000000e+00> : vector<16x64xf32>
    %133 = tpu.matmul %130, %132, %cst_38 {dimension_numbers = #tpu.dot_dimension_numbers<[1], [0], [0], [1], [0, 0, 1, 1], [], []>} : vector<16x16xbf16>, vector<16x64xbf16>, vector<16x64xf32> -> vector<16x64xf32>
    %134 = arith.addf %127, %133 : vector<16x64xf32>
    %135 = arith.addf %0, %134 : vector<16x64xf32>
    %cst_39 = arith.constant dense<0.000000e+00> : vector<16xf32>
    %136 = vector.multi_reduction <add>, %135, %cst_39 [1] : vector<16x64xf32> to vector<16xf32>
    %137 = vector.shape_cast %136 : vector<16xf32> to vector<16x1xf32>
    %cst_40 = arith.constant 6.400000e+01 : f32
    %138 = vector.broadcast %cst_40 : f32 to vector<16x1xf32>
    %139 = arith.divf %137, %138 : vector<16x1xf32>
    %140 = vector.broadcast %139 : vector<16x1xf32> to vector<16x64xf32>
    %141 = arith.subf %135, %140 : vector<16x64xf32>
    %142 = arith.mulf %141, %141 : vector<16x64xf32>
    %cst_41 = arith.constant dense<0.000000e+00> : vector<16xf32>
    %143 = vector.multi_reduction <add>, %142, %cst_41 [1] : vector<16x64xf32> to vector<16xf32>
    %144 = vector.shape_cast %143 : vector<16xf32> to vector<16x1xf32>
    %cst_42 = arith.constant 6.400000e+01 : f32
    %145 = vector.broadcast %cst_42 : f32 to vector<16x1xf32>
    %146 = arith.divf %144, %145 : vector<16x1xf32>
    %cst_43 = arith.constant 9.99999974E-6 : f32
    %147 = vector.broadcast %cst_43 : f32 to vector<16x1xf32>
    %148 = arith.addf %146, %147 : vector<16x1xf32>
    %149 = math.rsqrt %148 : vector<16x1xf32>
    %150 = vector.broadcast %149 : vector<16x1xf32> to vector<16x64xf32>
    %151 = arith.mulf %141, %150 : vector<16x64xf32>
    %c0_44 = arith.constant 0 : index
    %c0_45 = arith.constant 0 : index
    %c0_46 = arith.constant 0 : index
    %152 = vector.load %arg8[%c0_44, %c0_45, %c0_46] : memref<2x1x64xf32, #tpu.memory_space<vmem>>, vector<1x1x64xf32>
    %153 = vector.shape_cast %152 : vector<1x1x64xf32> to vector<1x64xf32>
    %154 = vector.broadcast %153 : vector<1x64xf32> to vector<16x64xf32>
    %155 = arith.mulf %151, %154 : vector<16x64xf32>
    %156 = arith.truncf %155 : vector<16x64xf32> to vector<16x64xbf16>
    %c0_47 = arith.constant 0 : index
    %c0_48 = arith.constant 0 : index
    %c0_49 = arith.constant 0 : index
    %157 = vector.load %arg9[%c0_47, %c0_48, %c0_49] : memref<2x64x256xbf16, #tpu.memory_space<vmem>>, vector<1x64x256xbf16>
    %158 = vector.shape_cast %157 : vector<1x64x256xbf16> to vector<64x256xbf16>
    %cst_50 = arith.constant dense<0.000000e+00> : vector<16x256xf32>
    %159 = tpu.matmul %156, %158, %cst_50 {dimension_numbers = #tpu.dot_dimension_numbers<[1], [0], [0], [1], [0, 0, 1, 1], [], []>} : vector<16x64xbf16>, vector<64x256xbf16>, vector<16x256xf32> -> vector<16x256xf32>
    %c0_51 = arith.constant 0 : index
    %c0_52 = arith.constant 0 : index
    %c0_53 = arith.constant 0 : index
    %160 = vector.load %arg10[%c0_51, %c0_52, %c0_53] : memref<2x1x256xf32, #tpu.memory_space<vmem>>, vector<1x1x256xf32>
    %161 = vector.shape_cast %160 : vector<1x1x256xf32> to vector<1x256xf32>
    %162 = vector.broadcast %161 : vector<1x256xf32> to vector<16x256xf32>
    %163 = arith.addf %159, %162 : vector<16x256xf32>
    %cst_54 = arith.constant 5.000000e-01 : f32
    %164 = vector.broadcast %cst_54 : f32 to vector<16x256xf32>
    %165 = arith.mulf %164, %163 : vector<16x256xf32>
    %cst_55 = arith.constant 4.471500e-02 : f32
    %166 = vector.broadcast %cst_55 : f32 to vector<16x256xf32>
    %167 = arith.mulf %166, %163 : vector<16x256xf32>
    %168 = arith.mulf %167, %163 : vector<16x256xf32>
    %169 = arith.mulf %168, %163 : vector<16x256xf32>
    %170 = arith.addf %163, %169 : vector<16x256xf32>
    %cst_56 = arith.constant 0.797884583 : f32
    %171 = vector.broadcast %cst_56 : f32 to vector<16x256xf32>
    %172 = arith.mulf %171, %170 : vector<16x256xf32>
    %173 = math.tanh %172 : vector<16x256xf32>
    %cst_57 = arith.constant 1.000000e+00 : f32
    %174 = vector.broadcast %cst_57 : f32 to vector<16x256xf32>
    %175 = arith.addf %174, %173 : vector<16x256xf32>
    %176 = arith.mulf %165, %175 : vector<16x256xf32>
    %177 = arith.truncf %176 : vector<16x256xf32> to vector<16x256xbf16>
    %c0_58 = arith.constant 0 : index
    %c0_59 = arith.constant 0 : index
    %c0_60 = arith.constant 0 : index
    %178 = vector.load %arg11[%c0_58, %c0_59, %c0_60] : memref<2x256x64xbf16, #tpu.memory_space<vmem>>, vector<1x256x64xbf16>
    %179 = vector.shape_cast %178 : vector<1x256x64xbf16> to vector<256x64xbf16>
    %cst_61 = arith.constant dense<0.000000e+00> : vector<16x64xf32>
    %180 = tpu.matmul %177, %179, %cst_61 {dimension_numbers = #tpu.dot_dimension_numbers<[1], [0], [0], [1], [0, 0, 1, 1], [], []>} : vector<16x256xbf16>, vector<256x64xbf16>, vector<16x64xf32> -> vector<16x64xf32>
    %c0_62 = arith.constant 0 : index
    %c0_63 = arith.constant 0 : index
    %c0_64 = arith.constant 0 : index
    %181 = vector.load %arg12[%c0_62, %c0_63, %c0_64] : memref<2x1x64xf32, #tpu.memory_space<vmem>>, vector<1x1x64xf32>
    %182 = vector.shape_cast %181 : vector<1x1x64xf32> to vector<1x64xf32>
    %183 = vector.broadcast %182 : vector<1x64xf32> to vector<16x64xf32>
    %184 = arith.addf %180, %183 : vector<16x64xf32>
    %185 = arith.addf %135, %184 : vector<16x64xf32>
    %cst_65 = arith.constant dense<0.000000e+00> : vector<16xf32>
    %186 = vector.multi_reduction <add>, %185, %cst_65 [1] : vector<16x64xf32> to vector<16xf32>
    %187 = vector.shape_cast %186 : vector<16xf32> to vector<16x1xf32>
    %cst_66 = arith.constant 6.400000e+01 : f32
    %188 = vector.broadcast %cst_66 : f32 to vector<16x1xf32>
    %189 = arith.divf %187, %188 : vector<16x1xf32>
    %190 = vector.broadcast %189 : vector<16x1xf32> to vector<16x64xf32>
    %191 = arith.subf %185, %190 : vector<16x64xf32>
    %192 = arith.mulf %191, %191 : vector<16x64xf32>
    %cst_67 = arith.constant dense<0.000000e+00> : vector<16xf32>
    %193 = vector.multi_reduction <add>, %192, %cst_67 [1] : vector<16x64xf32> to vector<16xf32>
    %194 = vector.shape_cast %193 : vector<16xf32> to vector<16x1xf32>
    %cst_68 = arith.constant 6.400000e+01 : f32
    %195 = vector.broadcast %cst_68 : f32 to vector<16x1xf32>
    %196 = arith.divf %194, %195 : vector<16x1xf32>
    %cst_69 = arith.constant 9.99999974E-6 : f32
    %197 = vector.broadcast %cst_69 : f32 to vector<16x1xf32>
    %198 = arith.addf %196, %197 : vector<16x1xf32>
    %199 = math.rsqrt %198 : vector<16x1xf32>
    %200 = vector.broadcast %199 : vector<16x1xf32> to vector<16x64xf32>
    %201 = arith.mulf %191, %200 : vector<16x64xf32>
    %c1_70 = arith.constant 1 : index
    %c0_71 = arith.constant 0 : index
    %c0_72 = arith.constant 0 : index
    %202 = vector.load %arg5[%c1_70, %c0_71, %c0_72] : memref<2x1x64xf32, #tpu.memory_space<vmem>>, vector<1x1x64xf32>
    %203 = vector.shape_cast %202 : vector<1x1x64xf32> to vector<1x64xf32>
    %204 = vector.broadcast %203 : vector<1x64xf32> to vector<16x64xf32>
    %205 = arith.mulf %201, %204 : vector<16x64xf32>
    %206 = arith.truncf %205 : vector<16x64xf32> to vector<16x64xbf16>
    %c1_73 = arith.constant 1 : index
    %c0_74 = arith.constant 0 : index
    %c0_75 = arith.constant 0 : index
    %207 = vector.load %arg6[%c1_73, %c0_74, %c0_75] : memref<2x64x192xbf16, #tpu.memory_space<vmem>>, vector<1x64x192xbf16>
    %208 = vector.shape_cast %207 : vector<1x64x192xbf16> to vector<64x192xbf16>
    %cst_76 = arith.constant dense<0.000000e+00> : vector<16x192xf32>
    %209 = tpu.matmul %206, %208, %cst_76 {dimension_numbers = #tpu.dot_dimension_numbers<[1], [0], [0], [1], [0, 0, 1, 1], [], []>} : vector<16x64xbf16>, vector<64x192xbf16>, vector<16x192xf32> -> vector<16x192xf32>
    %210 = vector.extract_strided_slice %209 {offsets = [0, 0], sizes = [16, 16], strides = [1, 1]} : vector<16x192xf32> to vector<16x16xf32>
    %211 = vector.extract_strided_slice %209 {offsets = [0, 16], sizes = [16, 16], strides = [1, 1]} : vector<16x192xf32> to vector<16x16xf32>
    %212 = vector.extract_strided_slice %209 {offsets = [0, 32], sizes = [16, 16], strides = [1, 1]} : vector<16x192xf32> to vector<16x16xf32>
    %213 = vector.extract_strided_slice %209 {offsets = [0, 48], sizes = [16, 16], strides = [1, 1]} : vector<16x192xf32> to vector<16x16xf32>
    %214 = vector.shape_cast %210 : vector<16x16xf32> to vector<1x16x16xf32>
    %215 = vector.shape_cast %211 : vector<16x16xf32> to vector<1x16x16xf32>
    %216 = vector.shape_cast %212 : vector<16x16xf32> to vector<1x16x16xf32>
    %217 = vector.shape_cast %213 : vector<16x16xf32> to vector<1x16x16xf32>
    %218 = tpu.concatenate %214, %215, %216, %217 in 0 : vector<1x16x16xf32>, vector<1x16x16xf32>, vector<1x16x16xf32>, vector<1x16x16xf32> -> vector<4x16x16xf32>
    %219 = vector.extract_strided_slice %209 {offsets = [0, 64], sizes = [16, 16], strides = [1, 1]} : vector<16x192xf32> to vector<16x16xf32>
    %220 = vector.extract_strided_slice %209 {offsets = [0, 80], sizes = [16, 16], strides = [1, 1]} : vector<16x192xf32> to vector<16x16xf32>
    %221 = vector.extract_strided_slice %209 {offsets = [0, 96], sizes = [16, 16], strides = [1, 1]} : vector<16x192xf32> to vector<16x16xf32>
    %222 = vector.extract_strided_slice %209 {offsets = [0, 112], sizes = [16, 16], strides = [1, 1]} : vector<16x192xf32> to vector<16x16xf32>
    %223 = vector.shape_cast %219 : vector<16x16xf32> to vector<1x16x16xf32>
    %224 = vector.shape_cast %220 : vector<16x16xf32> to vector<1x16x16xf32>
    %225 = vector.shape_cast %221 : vector<16x16xf32> to vector<1x16x16xf32>
    %226 = vector.shape_cast %222 : vector<16x16xf32> to vector<1x16x16xf32>
    %227 = tpu.concatenate %223, %224, %225, %226 in 0 : vector<1x16x16xf32>, vector<1x16x16xf32>, vector<1x16x16xf32>, vector<1x16x16xf32> -> vector<4x16x16xf32>
    %228 = vector.extract_strided_slice %209 {offsets = [0, 128], sizes = [16, 16], strides = [1, 1]} : vector<16x192xf32> to vector<16x16xf32>
    %229 = vector.extract_strided_slice %209 {offsets = [0, 144], sizes = [16, 16], strides = [1, 1]} : vector<16x192xf32> to vector<16x16xf32>
    %230 = vector.extract_strided_slice %209 {offsets = [0, 160], sizes = [16, 16], strides = [1, 1]} : vector<16x192xf32> to vector<16x16xf32>
    %231 = vector.extract_strided_slice %209 {offsets = [0, 176], sizes = [16, 16], strides = [1, 1]} : vector<16x192xf32> to vector<16x16xf32>
    %232 = vector.shape_cast %228 : vector<16x16xf32> to vector<1x16x16xf32>
    %233 = vector.shape_cast %229 : vector<16x16xf32> to vector<1x16x16xf32>
    %234 = vector.shape_cast %230 : vector<16x16xf32> to vector<1x16x16xf32>
    %235 = vector.shape_cast %231 : vector<16x16xf32> to vector<1x16x16xf32>
    %236 = tpu.concatenate %232, %233, %234, %235 in 0 : vector<1x16x16xf32>, vector<1x16x16xf32>, vector<1x16x16xf32>, vector<1x16x16xf32> -> vector<4x16x16xf32>
    %237 = vector.extract_strided_slice %218 {offsets = [0, 0, 0], sizes = [4, 16, 8], strides = [1, 1, 1]} : vector<4x16x16xf32> to vector<4x16x8xf32>
    %238 = vector.extract_strided_slice %218 {offsets = [0, 0, 8], sizes = [4, 16, 8], strides = [1, 1, 1]} : vector<4x16x16xf32> to vector<4x16x8xf32>
    %239 = vector.extract_strided_slice %227 {offsets = [0, 0, 0], sizes = [4, 16, 8], strides = [1, 1, 1]} : vector<4x16x16xf32> to vector<4x16x8xf32>
    %240 = vector.extract_strided_slice %227 {offsets = [0, 0, 8], sizes = [4, 16, 8], strides = [1, 1, 1]} : vector<4x16x16xf32> to vector<4x16x8xf32>
    %241 = vector.broadcast %2 : vector<1x16x8xf32> to vector<4x16x8xf32>
    %242 = arith.mulf %237, %241 : vector<4x16x8xf32>
    %243 = vector.broadcast %4 : vector<1x16x8xf32> to vector<4x16x8xf32>
    %244 = arith.mulf %238, %243 : vector<4x16x8xf32>
    %245 = arith.subf %242, %244 : vector<4x16x8xf32>
    %246 = arith.truncf %245 : vector<4x16x8xf32> to vector<4x16x8xbf16>
    %247 = vector.broadcast %2 : vector<1x16x8xf32> to vector<4x16x8xf32>
    %248 = arith.mulf %238, %247 : vector<4x16x8xf32>
    %249 = vector.broadcast %4 : vector<1x16x8xf32> to vector<4x16x8xf32>
    %250 = arith.mulf %237, %249 : vector<4x16x8xf32>
    %251 = arith.addf %248, %250 : vector<4x16x8xf32>
    %252 = arith.truncf %251 : vector<4x16x8xf32> to vector<4x16x8xbf16>
    %253 = vector.broadcast %2 : vector<1x16x8xf32> to vector<4x16x8xf32>
    %254 = arith.mulf %239, %253 : vector<4x16x8xf32>
    %255 = vector.broadcast %4 : vector<1x16x8xf32> to vector<4x16x8xf32>
    %256 = arith.mulf %240, %255 : vector<4x16x8xf32>
    %257 = arith.subf %254, %256 : vector<4x16x8xf32>
    %258 = arith.truncf %257 : vector<4x16x8xf32> to vector<4x16x8xbf16>
    %259 = vector.broadcast %2 : vector<1x16x8xf32> to vector<4x16x8xf32>
    %260 = arith.mulf %240, %259 : vector<4x16x8xf32>
    %261 = vector.broadcast %4 : vector<1x16x8xf32> to vector<4x16x8xf32>
    %262 = arith.mulf %239, %261 : vector<4x16x8xf32>
    %263 = arith.addf %260, %262 : vector<4x16x8xf32>
    %264 = arith.truncf %263 : vector<4x16x8xf32> to vector<4x16x8xbf16>
    "tpu.trace_start"() <{level = 10 : i32, message = "hqd,hkd->hqk"}> : () -> ()
    %cst_77 = arith.constant dense<0.000000e+00> : vector<4x16x16xf32>
    %265 = tpu.matmul %246, %258, %cst_77 {dimension_numbers = #tpu.dot_dimension_numbers<[2], [2], [1], [1], [0, 0, 0, 1, 1, 1], [0], [0]>} : vector<4x16x8xbf16>, vector<4x16x8xbf16>, vector<4x16x16xf32> -> vector<4x16x16xf32>
    %cst_78 = arith.constant dense<0.000000e+00> : vector<4x16x16xf32>
    %266 = tpu.matmul %252, %264, %cst_78 {dimension_numbers = #tpu.dot_dimension_numbers<[2], [2], [1], [1], [0, 0, 0, 1, 1, 1], [0], [0]>} : vector<4x16x8xbf16>, vector<4x16x8xbf16>, vector<4x16x16xf32> -> vector<4x16x16xf32>
    "tpu.trace_stop"() : () -> ()
    %267 = arith.addf %265, %266 : vector<4x16x16xf32>
    %cst_79 = arith.constant -1.000000e+30 : f32
    %268 = vector.shape_cast %8 : vector<1x16x16xi1> to vector<1x16x16xi1>
    %269 = vector.broadcast %268 : vector<1x16x16xi1> to vector<4x16x16xi1>
    %270 = vector.broadcast %cst_79 : f32 to vector<4x16x16xf32>
    %271 = arith.select %269, %267, %270 : vector<4x16x16xi1>, vector<4x16x16xf32>
    %cst_80 = arith.constant dense<0xFF800000> : vector<4x16xf32>
    %272 = vector.multi_reduction <maximumf>, %271, %cst_80 [2] : vector<4x16x16xf32> to vector<4x16xf32>
    %273 = vector.shape_cast %272 : vector<4x16xf32> to vector<4x16x1xf32>
    %274 = vector.broadcast %273 : vector<4x16x1xf32> to vector<4x16x16xf32>
    %275 = arith.subf %271, %274 : vector<4x16x16xf32>
    %276 = math.exp %275 : vector<4x16x16xf32>
    %cst_81 = arith.constant dense<0.000000e+00> : vector<4x16xf32>
    %277 = vector.multi_reduction <add>, %276, %cst_81 [2] : vector<4x16x16xf32> to vector<4x16xf32>
    %278 = vector.shape_cast %277 : vector<4x16xf32> to vector<4x16x1xf32>
    %279 = arith.truncf %276 : vector<4x16x16xf32> to vector<4x16x16xbf16>
    %280 = arith.truncf %236 : vector<4x16x16xf32> to vector<4x16x16xbf16>
    "tpu.trace_start"() <{level = 10 : i32, message = "hqk,hkd->hqd"}> : () -> ()
    %cst_82 = arith.constant dense<0.000000e+00> : vector<4x16x16xf32>
    %281 = tpu.matmul %279, %280, %cst_82 {dimension_numbers = #tpu.dot_dimension_numbers<[2], [1], [1], [2], [0, 0, 0, 1, 1, 2], [0], [0]>} : vector<4x16x16xbf16>, vector<4x16x16xbf16>, vector<4x16x16xf32> -> vector<4x16x16xf32>
    "tpu.trace_stop"() : () -> ()
    %282 = tpu.reciprocal %278 {approx = true} : vector<4x16x1xf32> -> vector<4x16x1xf32>
    %283 = vector.broadcast %282 : vector<4x16x1xf32> to vector<4x16x16xf32>
    %284 = arith.mulf %281, %283 : vector<4x16x16xf32>
    %285 = vector.extract_strided_slice %284 {offsets = [0, 0, 0], sizes = [1, 16, 16], strides = [1, 1, 1]} : vector<4x16x16xf32> to vector<1x16x16xf32>
    %286 = vector.shape_cast %285 : vector<1x16x16xf32> to vector<16x16xf32>
    %287 = arith.truncf %286 : vector<16x16xf32> to vector<16x16xbf16>
    %c1_83 = arith.constant 1 : index
    %c0_84 = arith.constant 0 : index
    %c0_85 = arith.constant 0 : index
    %c0_86 = arith.constant 0 : index
    %288 = vector.load %arg7[%c1_83, %c0_84, %c0_85, %c0_86] : memref<2x4x16x64xbf16, #tpu.memory_space<vmem>>, vector<1x1x16x64xbf16>
    %289 = vector.shape_cast %288 : vector<1x1x16x64xbf16> to vector<16x64xbf16>
    %cst_87 = arith.constant dense<0.000000e+00> : vector<16x64xf32>
    %290 = tpu.matmul %287, %289, %cst_87 {dimension_numbers = #tpu.dot_dimension_numbers<[1], [0], [0], [1], [0, 0, 1, 1], [], []>} : vector<16x16xbf16>, vector<16x64xbf16>, vector<16x64xf32> -> vector<16x64xf32>
    %291 = vector.extract_strided_slice %284 {offsets = [1, 0, 0], sizes = [1, 16, 16], strides = [1, 1, 1]} : vector<4x16x16xf32> to vector<1x16x16xf32>
    %292 = vector.shape_cast %291 : vector<1x16x16xf32> to vector<16x16xf32>
    %293 = arith.truncf %292 : vector<16x16xf32> to vector<16x16xbf16>
    %c1_88 = arith.constant 1 : index
    %c1_89 = arith.constant 1 : index
    %c0_90 = arith.constant 0 : index
    %c0_91 = arith.constant 0 : index
    %294 = vector.load %arg7[%c1_88, %c1_89, %c0_90, %c0_91] : memref<2x4x16x64xbf16, #tpu.memory_space<vmem>>, vector<1x1x16x64xbf16>
    %295 = vector.shape_cast %294 : vector<1x1x16x64xbf16> to vector<16x64xbf16>
    %cst_92 = arith.constant dense<0.000000e+00> : vector<16x64xf32>
    %296 = tpu.matmul %293, %295, %cst_92 {dimension_numbers = #tpu.dot_dimension_numbers<[1], [0], [0], [1], [0, 0, 1, 1], [], []>} : vector<16x16xbf16>, vector<16x64xbf16>, vector<16x64xf32> -> vector<16x64xf32>
    %297 = arith.addf %290, %296 : vector<16x64xf32>
    %298 = vector.extract_strided_slice %284 {offsets = [2, 0, 0], sizes = [1, 16, 16], strides = [1, 1, 1]} : vector<4x16x16xf32> to vector<1x16x16xf32>
    %299 = vector.shape_cast %298 : vector<1x16x16xf32> to vector<16x16xf32>
    %300 = arith.truncf %299 : vector<16x16xf32> to vector<16x16xbf16>
    %c1_93 = arith.constant 1 : index
    %c2_94 = arith.constant 2 : index
    %c0_95 = arith.constant 0 : index
    %c0_96 = arith.constant 0 : index
    %301 = vector.load %arg7[%c1_93, %c2_94, %c0_95, %c0_96] : memref<2x4x16x64xbf16, #tpu.memory_space<vmem>>, vector<1x1x16x64xbf16>
    %302 = vector.shape_cast %301 : vector<1x1x16x64xbf16> to vector<16x64xbf16>
    %cst_97 = arith.constant dense<0.000000e+00> : vector<16x64xf32>
    %303 = tpu.matmul %300, %302, %cst_97 {dimension_numbers = #tpu.dot_dimension_numbers<[1], [0], [0], [1], [0, 0, 1, 1], [], []>} : vector<16x16xbf16>, vector<16x64xbf16>, vector<16x64xf32> -> vector<16x64xf32>
    %304 = arith.addf %297, %303 : vector<16x64xf32>
    %305 = vector.extract_strided_slice %284 {offsets = [3, 0, 0], sizes = [1, 16, 16], strides = [1, 1, 1]} : vector<4x16x16xf32> to vector<1x16x16xf32>
    %306 = vector.shape_cast %305 : vector<1x16x16xf32> to vector<16x16xf32>
    %307 = arith.truncf %306 : vector<16x16xf32> to vector<16x16xbf16>
    %c1_98 = arith.constant 1 : index
    %c3_99 = arith.constant 3 : index
    %c0_100 = arith.constant 0 : index
    %c0_101 = arith.constant 0 : index
    %308 = vector.load %arg7[%c1_98, %c3_99, %c0_100, %c0_101] : memref<2x4x16x64xbf16, #tpu.memory_space<vmem>>, vector<1x1x16x64xbf16>
    %309 = vector.shape_cast %308 : vector<1x1x16x64xbf16> to vector<16x64xbf16>
    %cst_102 = arith.constant dense<0.000000e+00> : vector<16x64xf32>
    %310 = tpu.matmul %307, %309, %cst_102 {dimension_numbers = #tpu.dot_dimension_numbers<[1], [0], [0], [1], [0, 0, 1, 1], [], []>} : vector<16x16xbf16>, vector<16x64xbf16>, vector<16x64xf32> -> vector<16x64xf32>
    %311 = arith.addf %304, %310 : vector<16x64xf32>
    %312 = arith.addf %185, %311 : vector<16x64xf32>
    %cst_103 = arith.constant dense<0.000000e+00> : vector<16xf32>
    %313 = vector.multi_reduction <add>, %312, %cst_103 [1] : vector<16x64xf32> to vector<16xf32>
    %314 = vector.shape_cast %313 : vector<16xf32> to vector<16x1xf32>
    %cst_104 = arith.constant 6.400000e+01 : f32
    %315 = vector.broadcast %cst_104 : f32 to vector<16x1xf32>
    %316 = arith.divf %314, %315 : vector<16x1xf32>
    %317 = vector.broadcast %316 : vector<16x1xf32> to vector<16x64xf32>
    %318 = arith.subf %312, %317 : vector<16x64xf32>
    %319 = arith.mulf %318, %318 : vector<16x64xf32>
    %cst_105 = arith.constant dense<0.000000e+00> : vector<16xf32>
    %320 = vector.multi_reduction <add>, %319, %cst_105 [1] : vector<16x64xf32> to vector<16xf32>
    %321 = vector.shape_cast %320 : vector<16xf32> to vector<16x1xf32>
    %cst_106 = arith.constant 6.400000e+01 : f32
    %322 = vector.broadcast %cst_106 : f32 to vector<16x1xf32>
    %323 = arith.divf %321, %322 : vector<16x1xf32>
    %cst_107 = arith.constant 9.99999974E-6 : f32
    %324 = vector.broadcast %cst_107 : f32 to vector<16x1xf32>
    %325 = arith.addf %323, %324 : vector<16x1xf32>
    %326 = math.rsqrt %325 : vector<16x1xf32>
    %327 = vector.broadcast %326 : vector<16x1xf32> to vector<16x64xf32>
    %328 = arith.mulf %318, %327 : vector<16x64xf32>
    %c1_108 = arith.constant 1 : index
    %c0_109 = arith.constant 0 : index
    %c0_110 = arith.constant 0 : index
    %329 = vector.load %arg8[%c1_108, %c0_109, %c0_110] : memref<2x1x64xf32, #tpu.memory_space<vmem>>, vector<1x1x64xf32>
    %330 = vector.shape_cast %329 : vector<1x1x64xf32> to vector<1x64xf32>
    %331 = vector.broadcast %330 : vector<1x64xf32> to vector<16x64xf32>
    %332 = arith.mulf %328, %331 : vector<16x64xf32>
    %333 = arith.truncf %332 : vector<16x64xf32> to vector<16x64xbf16>
    %c1_111 = arith.constant 1 : index
    %c0_112 = arith.constant 0 : index
    %c0_113 = arith.constant 0 : index
    %334 = vector.load %arg9[%c1_111, %c0_112, %c0_113] : memref<2x64x256xbf16, #tpu.memory_space<vmem>>, vector<1x64x256xbf16>
    %335 = vector.shape_cast %334 : vector<1x64x256xbf16> to vector<64x256xbf16>
    %cst_114 = arith.constant dense<0.000000e+00> : vector<16x256xf32>
    %336 = tpu.matmul %333, %335, %cst_114 {dimension_numbers = #tpu.dot_dimension_numbers<[1], [0], [0], [1], [0, 0, 1, 1], [], []>} : vector<16x64xbf16>, vector<64x256xbf16>, vector<16x256xf32> -> vector<16x256xf32>
    %c1_115 = arith.constant 1 : index
    %c0_116 = arith.constant 0 : index
    %c0_117 = arith.constant 0 : index
    %337 = vector.load %arg10[%c1_115, %c0_116, %c0_117] : memref<2x1x256xf32, #tpu.memory_space<vmem>>, vector<1x1x256xf32>
    %338 = vector.shape_cast %337 : vector<1x1x256xf32> to vector<1x256xf32>
    %339 = vector.broadcast %338 : vector<1x256xf32> to vector<16x256xf32>
    %340 = arith.addf %336, %339 : vector<16x256xf32>
    %cst_118 = arith.constant 5.000000e-01 : f32
    %341 = vector.broadcast %cst_118 : f32 to vector<16x256xf32>
    %342 = arith.mulf %341, %340 : vector<16x256xf32>
    %cst_119 = arith.constant 4.471500e-02 : f32
    %343 = vector.broadcast %cst_119 : f32 to vector<16x256xf32>
    %344 = arith.mulf %343, %340 : vector<16x256xf32>
    %345 = arith.mulf %344, %340 : vector<16x256xf32>
    %346 = arith.mulf %345, %340 : vector<16x256xf32>
    %347 = arith.addf %340, %346 : vector<16x256xf32>
    %cst_120 = arith.constant 0.797884583 : f32
    %348 = vector.broadcast %cst_120 : f32 to vector<16x256xf32>
    %349 = arith.mulf %348, %347 : vector<16x256xf32>
    %350 = math.tanh %349 : vector<16x256xf32>
    %cst_121 = arith.constant 1.000000e+00 : f32
    %351 = vector.broadcast %cst_121 : f32 to vector<16x256xf32>
    %352 = arith.addf %351, %350 : vector<16x256xf32>
    %353 = arith.mulf %342, %352 : vector<16x256xf32>
    %354 = arith.truncf %353 : vector<16x256xf32> to vector<16x256xbf16>
    %c1_122 = arith.constant 1 : index
    %c0_123 = arith.constant 0 : index
    %c0_124 = arith.constant 0 : index
    %355 = vector.load %arg11[%c1_122, %c0_123, %c0_124] : memref<2x256x64xbf16, #tpu.memory_space<vmem>>, vector<1x256x64xbf16>
    %356 = vector.shape_cast %355 : vector<1x256x64xbf16> to vector<256x64xbf16>
    %cst_125 = arith.constant dense<0.000000e+00> : vector<16x64xf32>
    %357 = tpu.matmul %354, %356, %cst_125 {dimension_numbers = #tpu.dot_dimension_numbers<[1], [0], [0], [1], [0, 0, 1, 1], [], []>} : vector<16x256xbf16>, vector<256x64xbf16>, vector<16x64xf32> -> vector<16x64xf32>
    %c1_126 = arith.constant 1 : index
    %c0_127 = arith.constant 0 : index
    %c0_128 = arith.constant 0 : index
    %358 = vector.load %arg12[%c1_126, %c0_127, %c0_128] : memref<2x1x64xf32, #tpu.memory_space<vmem>>, vector<1x1x64xf32>
    %359 = vector.shape_cast %358 : vector<1x1x64xf32> to vector<1x64xf32>
    %360 = vector.broadcast %359 : vector<1x64xf32> to vector<16x64xf32>
    %361 = arith.addf %357, %360 : vector<16x64xf32>
    %362 = arith.addf %312, %361 : vector<16x64xf32>
    %cst_129 = arith.constant dense<0.000000e+00> : vector<16xf32>
    %363 = vector.multi_reduction <add>, %362, %cst_129 [1] : vector<16x64xf32> to vector<16xf32>
    %364 = vector.shape_cast %363 : vector<16xf32> to vector<16x1xf32>
    %cst_130 = arith.constant 6.400000e+01 : f32
    %365 = vector.broadcast %cst_130 : f32 to vector<16x1xf32>
    %366 = arith.divf %364, %365 : vector<16x1xf32>
    %367 = vector.broadcast %366 : vector<16x1xf32> to vector<16x64xf32>
    %368 = arith.subf %362, %367 : vector<16x64xf32>
    %369 = arith.mulf %368, %368 : vector<16x64xf32>
    %cst_131 = arith.constant dense<0.000000e+00> : vector<16xf32>
    %370 = vector.multi_reduction <add>, %369, %cst_131 [1] : vector<16x64xf32> to vector<16xf32>
    %371 = vector.shape_cast %370 : vector<16xf32> to vector<16x1xf32>
    %cst_132 = arith.constant 6.400000e+01 : f32
    %372 = vector.broadcast %cst_132 : f32 to vector<16x1xf32>
    %373 = arith.divf %371, %372 : vector<16x1xf32>
    %cst_133 = arith.constant 9.99999974E-6 : f32
    %374 = vector.broadcast %cst_133 : f32 to vector<16x1xf32>
    %375 = arith.addf %373, %374 : vector<16x1xf32>
    %376 = math.rsqrt %375 : vector<16x1xf32>
    %377 = vector.broadcast %376 : vector<16x1xf32> to vector<16x64xf32>
    %378 = arith.mulf %368, %377 : vector<16x64xf32>
    %c0_134 = arith.constant 0 : index
    %c0_135 = arith.constant 0 : index
    %379 = vector.load %arg13[%c0_134, %c0_135] : memref<1x64xf32, #tpu.memory_space<vmem>>, vector<1x64xf32>
    %380 = vector.broadcast %379 : vector<1x64xf32> to vector<16x64xf32>
    %381 = arith.mulf %378, %380 : vector<16x64xf32>
    %382 = arith.truncf %381 : vector<16x64xf32> to vector<16x64xbf16>
    %c0_136 = arith.constant 0 : index
    %c0_137 = arith.constant 0 : index
    %383 = vector.load %arg14[%c0_136, %c0_137] : memref<64x256xbf16, #tpu.memory_space<vmem>>, vector<64x256xbf16>
    %cst_138 = arith.constant dense<0.000000e+00> : vector<16x256xf32>
    %384 = tpu.matmul %382, %383, %cst_138 {dimension_numbers = #tpu.dot_dimension_numbers<[1], [0], [0], [1], [0, 0, 1, 1], [], []>} : vector<16x64xbf16>, vector<64x256xbf16>, vector<16x256xf32> -> vector<16x256xf32>
    %c0_139 = arith.constant 0 : index
    %c0_140 = arith.constant 0 : index
    %385 = vector.load %arg15[%c0_139, %c0_140] : memref<1x256xf32, #tpu.memory_space<vmem>>, vector<1x256xf32>
    %386 = vector.broadcast %385 : vector<1x256xf32> to vector<16x256xf32>
    %387 = arith.addf %384, %386 : vector<16x256xf32>
    %388 = tpu.iota {dimensions = array<i32: 1>} : vector<16x256xi32>
    %c0_141 = arith.constant 0 : index
    %c0_142 = arith.constant 0 : index
    %389 = vector.load %arg2[%c0_141, %c0_142] : memref<16x1xi32, #tpu.memory_space<vmem>>, vector<16x1xi32>
    %390 = vector.broadcast %389 : vector<16x1xi32> to vector<16x256xi32>
    %391 = arith.cmpi eq, %388, %390 : vector<16x256xi32>
    %cst_143 = arith.constant 0.000000e+00 : f32
    %392 = vector.broadcast %cst_143 : f32 to vector<16x256xf32>
    %393 = arith.select %391, %392, %387 : vector<16x256xi1>, vector<16x256xf32>
    %394 = arith.truncf %393 : vector<16x256xf32> to vector<16x256xbf16>
    %c0_144 = arith.constant 0 : index
    %c0_145 = arith.constant 0 : index
    %395 = vector.load %arg16[%c0_144, %c0_145] : memref<16x256xbf16, #tpu.memory_space<vmem>>, vector<16x256xbf16>
    tpu.vector_store %arg16[%c0_144, %c0_145], %394 {strides = array<i32>} : memref<16x256xbf16, #tpu.memory_space<vmem>>, vector<16x256xbf16>,
    return
  }
  func.func @transform_0(%arg0: i32) -> (i32, i32) {
    %c0_i32 = arith.constant 0 : i32
    %c0_i32_0 = arith.constant 0 : i32
    return %arg0, %c0_i32 : i32, i32
  }
  func.func @transform_1(%arg0: i32) -> (i32, i32) {
    %c0_i32 = arith.constant 0 : i32
    %c0_i32_0 = arith.constant 0 : i32
    return %arg0, %c0_i32 : i32, i32
  }
  func.func @transform_2(%arg0: i32) -> (i32, i32) {
    %c0_i32 = arith.constant 0 : i32
    %c0_i32_0 = arith.constant 0 : i32
    %c0_i32_1 = arith.constant 0 : i32
    return %c0_i32, %c0_i32_0 : i32, i32
  }
  func.func @transform_3(%arg0: i32) -> (i32, i32) {
    %c0_i32 = arith.constant 0 : i32
    %c0_i32_0 = arith.constant 0 : i32
    %c0_i32_1 = arith.constant 0 : i32
    return %c0_i32, %c0_i32_0 : i32, i32
  }
  func.func @transform_4(%arg0: i32) -> (i32, i32, i32) {
    %c0_i32 = arith.constant 0 : i32
    %c0_i32_0 = arith.constant 0 : i32
    %c0_i32_1 = arith.constant 0 : i32
    %c0_i32_2 = arith.constant 0 : i32
    return %c0_i32, %c0_i32_0, %c0_i32_1 : i32, i32, i32
  }
  func.func @transform_5(%arg0: i32) -> (i32, i32, i32) {
    %c0_i32 = arith.constant 0 : i32
    %c0_i32_0 = arith.constant 0 : i32
    %c0_i32_1 = arith.constant 0 : i32
    %c0_i32_2 = arith.constant 0 : i32
    return %c0_i32, %c0_i32_0, %c0_i32_1 : i32, i32, i32
  }
  func.func @transform_6(%arg0: i32) -> (i32, i32, i32, i32) {
    %c0_i32 = arith.constant 0 : i32
    %c0_i32_0 = arith.constant 0 : i32
    %c0_i32_1 = arith.constant 0 : i32
    %c0_i32_2 = arith.constant 0 : i32
    %c0_i32_3 = arith.constant 0 : i32
    return %c0_i32, %c0_i32_0, %c0_i32_1, %c0_i32_2 : i32, i32, i32, i32
  }
  func.func @transform_7(%arg0: i32) -> (i32, i32, i32) {
    %c0_i32 = arith.constant 0 : i32
    %c0_i32_0 = arith.constant 0 : i32
    %c0_i32_1 = arith.constant 0 : i32
    %c0_i32_2 = arith.constant 0 : i32
    return %c0_i32, %c0_i32_0, %c0_i32_1 : i32, i32, i32
  }
  func.func @transform_8(%arg0: i32) -> (i32, i32, i32) {
    %c0_i32 = arith.constant 0 : i32
    %c0_i32_0 = arith.constant 0 : i32
    %c0_i32_1 = arith.constant 0 : i32
    %c0_i32_2 = arith.constant 0 : i32
    return %c0_i32, %c0_i32_0, %c0_i32_1 : i32, i32, i32
  }
  func.func @transform_9(%arg0: i32) -> (i32, i32, i32) {
    %c0_i32 = arith.constant 0 : i32
    %c0_i32_0 = arith.constant 0 : i32
    %c0_i32_1 = arith.constant 0 : i32
    %c0_i32_2 = arith.constant 0 : i32
    return %c0_i32, %c0_i32_0, %c0_i32_1 : i32, i32, i32
  }
  func.func @transform_10(%arg0: i32) -> (i32, i32, i32) {
    %c0_i32 = arith.constant 0 : i32
    %c0_i32_0 = arith.constant 0 : i32
    %c0_i32_1 = arith.constant 0 : i32
    %c0_i32_2 = arith.constant 0 : i32
    return %c0_i32, %c0_i32_0, %c0_i32_1 : i32, i32, i32
  }
  func.func @transform_11(%arg0: i32) -> (i32, i32, i32) {
    %c0_i32 = arith.constant 0 : i32
    %c0_i32_0 = arith.constant 0 : i32
    %c0_i32_1 = arith.constant 0 : i32
    %c0_i32_2 = arith.constant 0 : i32
    return %c0_i32, %c0_i32_0, %c0_i32_1 : i32, i32, i32
  }
  func.func @transform_12(%arg0: i32) -> (i32, i32) {
    %c0_i32 = arith.constant 0 : i32
    %c0_i32_0 = arith.constant 0 : i32
    %c0_i32_1 = arith.constant 0 : i32
    return %c0_i32, %c0_i32_0 : i32, i32
  }
  func.func @transform_13(%arg0: i32) -> (i32, i32) {
    %c0_i32 = arith.constant 0 : i32
    %c0_i32_0 = arith.constant 0 : i32
    %c0_i32_1 = arith.constant 0 : i32
    return %c0_i32, %c0_i32_0 : i32, i32
  }
  func.func @transform_14(%arg0: i32) -> (i32, i32) {
    %c0_i32 = arith.constant 0 : i32
    %c0_i32_0 = arith.constant 0 : i32
    %c0_i32_1 = arith.constant 0 : i32
    return %c0_i32, %c0_i32_0 : i32, i32
  }
  func.func @transform_15(%arg0: i32) -> (i32, i32) {
    %c0_i32 = arith.constant 0 : i32
    %c0_i32_0 = arith.constant 0 : i32
    return %arg0, %c0_i32 : i32, i32
  }
}

</mosaic_0001>

<llo_original>
// kernel: tpu_custom_call.1
$region0: #{tpu_custom_call.1}
  #allocation0 [shape = 'u32[]', space=smem, size = 0x4, offset = 0x4, fixed_abs, tag = 'smem constant byte address 0x4 - core index']
  #allocation1 [shape = 'u32[144,128]{1,0:T(1,128)}', space=vmem, size = 0x12000, scoped, tag = 'internal scratch']
  %s0 = inlined_call_operand.vmem [shape: f32[32,64], index: 0, kind: input, shape index: {}]
  %s1 = inlined_call_operand.vmem [shape: s32[32,1], index: 1, kind: input, shape index: {}]
  %s2 = inlined_call_operand.vmem [shape: f32[16,8], index: 2, kind: input, shape index: {}]
  %s3 = inlined_call_operand.vmem [shape: f32[16,8], index: 3, kind: input, shape index: {}]
  %s4 = inlined_call_operand.vmem [shape: f32[2,1,64], index: 4, kind: input, shape index: {}]
  %s5 = inlined_call_operand.vmem [shape: bf16[2,64,192], index: 5, kind: input, shape index: {}]
  %s6 = inlined_call_operand.vmem [shape: bf16[2,4,16,64], index: 6, kind: input, shape index: {}]
  %s7 = inlined_call_operand.vmem [shape: f32[2,1,64], index: 7, kind: input, shape index: {}]
  %s8 = inlined_call_operand.vmem [shape: bf16[2,64,256], index: 8, kind: input, shape index: {}]
  %s9 = inlined_call_operand.vmem [shape: f32[2,1,256], index: 9, kind: input, shape index: {}]
  %s10 = inlined_call_operand.vmem [shape: bf16[2,256,64], index: 10, kind: input, shape index: {}]
  %s11 = inlined_call_operand.vmem [shape: f32[2,1,64], index: 11, kind: input, shape index: {}]
  %s12 = inlined_call_operand.vmem [shape: f32[1,64], index: 12, kind: input, shape index: {}]
  %s13 = inlined_call_operand.vmem [shape: bf16[64,256], index: 13, kind: input, shape index: {}]
  %s14 = inlined_call_operand.vmem [shape: f32[1,256], index: 14, kind: input, shape index: {}]
  %s15 = inlined_call_operand.hbm [shape: bf16[32,256], index: 15, kind: output, shape index: {}]
  %s16 = sld [smem:[#allocation0]]
  $region93: #{tpu_custom_call.1} parent=0
    _
  %s18 = ssub.s32 1, %s16
  %s19 = scalar_select 0, %s18, %s16
  $region1: #{tpu_custom_call.1} parent=0
    #allocation2 [shape = 'u8[16384]{0}', space=vmem, size = 0x4000, scoped, tag = 'output window, operand 0']
    #allocation3 [shape = 's32[2]{0}', space=sflag, size = 0x8, scoped, tag = 'scoped memory for tpu_custom_call.1']
    %20 = vsyncpa [#allocation3], 0
    %s21 = scalar_lea.sflag [#allocation3], 1
    %22 = vsyncpa %s21, 0
    loop: start=0, step=1, limit=4
    $region2: #{tpu_custom_call.1} parent=1 // loop_pre_header
      _
    $region3: #{tpu_custom_call.1} parent=1 // loop_header
      %s24 = sphi 0, %s28
      %p25 = scmp.ge.s32.totalorder %s24, 4
      %s34 = sphi 0, %s36
      %s37 = sphi 0, %s34
      %s38 = sphi 0, %s37
      %s54 = sphi 0, %s38
      %s60 = sphi 0, %s62
      %s63 = sphi 0, %s60
      %s64 = sphi 0, %s63
      %s80 = sphi 0, %s64
      %s84 = sphi 0, %s84
      %s86 = sphi 0, %s84
      %s87 = sphi 0, %s86
      %s101 = sphi 0, %s87
      %s105 = sphi 0, %s105
      %s107 = sphi 0, %s105
      %s108 = sphi 0, %s107
      %s122 = sphi 0, %s108
      %s126 = sphi 0, %s126
      %s128 = sphi 0, %s126
      %s129 = sphi 0, %s128
      %s143 = sphi 0, %s129
      %s147 = sphi 0, %s147
      %s149 = sphi 0, %s147
      %s150 = sphi 0, %s149
      %s164 = sphi 0, %s150
      %s168 = sphi 0, %s168
      %s170 = sphi 0, %s168
      %s171 = sphi 0, %s170
      %s185 = sphi 0, %s171
      %s189 = sphi 0, %s189
      %s191 = sphi 0, %s189
      %s192 = sphi 0, %s191
      %s206 = sphi 0, %s192
      %s210 = sphi 0, %s210
      %s212 = sphi 0, %s210
      %s213 = sphi 0, %s212
      %s227 = sphi 0, %s213
      %s231 = sphi 0, %s231
      %s233 = sphi 0, %s231
      %s234 = sphi 0, %s233
      %s248 = sphi 0, %s234
      %s252 = sphi 0, %s252
      %s254 = sphi 0, %s252
      %s255 = sphi 0, %s254
      %s269 = sphi 0, %s255
      %s273 = sphi 0, %s273
      %s275 = sphi 0, %s273
      %s276 = sphi 0, %s275
      %s290 = sphi 0, %s276
      %s294 = sphi 0, %s294
      %s296 = sphi 0, %s294
      %s297 = sphi 0, %s296
      %s311 = sphi 0, %s297
      %s315 = sphi 0, %s315
      %s317 = sphi 0, %s315
      %s318 = sphi 0, %s317
      %s332 = sphi 0, %s318
      %s336 = sphi 0, %s336
      %s338 = sphi 0, %s336
      %s339 = sphi 0, %s338
      %s353 = sphi 0, %s339
      %s359 = sphi 0, %s361
      %s362 = sphi 0, %s359
      %s363 = sphi 0, %s362
      %s379 = sphi 0, %s363
    $region4: #{tpu_custom_call.1} parent=1 // loop_header_branch
      %27 = sbr.rel (%p25) target = $region8
    $region5: #{tpu_custom_call.1} parent=1 // loop_body
      %s29 = ssub.s32 %s24, 1
      %s30 = ssub.s32 %s24, 2
      %s31 = sadd.s32 %s24, 1
      %s32 = ssub.s32 %s24, %s31
      %p33 = scmp.eq.s32.totalorder %s32, 0
      %s35 = sadd.s32 %s34, 1
      %s36 = scalar_select %p33, %s34, %s35
      %p39 = pneg %p33
      %p40 = scmp.eq.s32.totalorder %s24, 1
      %p41 = por %p39, %p40
      %p42 = scmp.ne.s32.totalorder %s34, %s37
      %p43 = scmp.eq.s32.totalorder %s24, 0
      %p44 = por %p42, %p43
      %p45 = scmp.ne.s32.totalorder %s34, %s37
      %p46 = scmp.eq.s32.totalorder %s29, 1
      %p47 = por %p45, %p46
      %p48 = scmp.ne.s32.totalorder %s37, %s38
      %p49 = scmp.eq.s32.totalorder %s29, 0
      %p50 = por %p48, %p49
      %p51 = scmp.ne.s32.totalorder %s37, %s38
      %p52 = scmp.eq.s32.totalorder %s30, 1
      %p53 = por %p51, %p52
      %p55 = scmp.ne.s32.totalorder %s38, %s54
      %p56 = scmp.eq.s32.totalorder %s30, 0
      %p57 = por %p55, %p56
      %s58 = ssub.s32 %s24, %s31
      %p59 = scmp.eq.s32.totalorder %s58, 0
      %s61 = sadd.s32 %s60, 1
      %s62 = scalar_select %p59, %s60, %s61
      %p65 = pneg %p59
      %p66 = scmp.eq.s32.totalorder %s24, 1
      %p67 = por %p65, %p66
      %p68 = scmp.ne.s32.totalorder %s60, %s63
      %p69 = scmp.eq.s32.totalorder %s24, 0
      %p70 = por %p68, %p69
      %p71 = scmp.ne.s32.totalorder %s60, %s63
      %p72 = scmp.eq.s32.totalorder %s29, 1
      %p73 = por %p71, %p72
      %p74 = scmp.ne.s32.totalorder %s63, %s64
      %p75 = scmp.eq.s32.totalorder %s29, 0
      %p76 = por %p74, %p75
      %p77 = scmp.ne.s32.totalorder %s63, %s64
      %p78 = scmp.eq.s32.totalorder %s30, 1
      %p79 = por %p77, %p78
      %p81 = scmp.ne.s32.totalorder %s64, %s80
      %p82 = scmp.eq.s32.totalorder %s30, 0
      %p83 = por %p81, %p82
      %s85 = sadd.s32 %s84, 1
      %p88 = scmp.eq.s32.totalorder %s24, 1
      %p89 = scmp.ne.s32.totalorder %s84, %s86
      %p90 = scmp.eq.s32.totalorder %s24, 0
      %p91 = por %p89, %p90
      %p92 = scmp.ne.s32.totalorder %s84, %s86
      %p93 = scmp.eq.s32.totalorder %s29, 1
      %p94 = por %p92, %p93
      %p95 = scmp.ne.s32.totalorder %s86, %s87
      %p96 = scmp.eq.s32.totalorder %s29, 0
      %p97 = por %p95, %p96
      %p98 = scmp.ne.s32.totalorder %s86, %s87
      %p99 = scmp.eq.s32.totalorder %s30, 1
      %p100 = por %p98, %p99
      %p102 = scmp.ne.s32.totalorder %s87, %s101
      %p103 = scmp.eq.s32.totalorder %s30, 0
      %p104 = por %p102, %p103
      %s106 = sadd.s32 %s105, 1
      %p109 = scmp.eq.s32.totalorder %s24, 1
      %p110 = scmp.ne.s32.totalorder %s105, %s107
      %p111 = scmp.eq.s32.totalorder %s24, 0
      %p112 = por %p110, %p111
      %p113 = scmp.ne.s32.totalorder %s105, %s107
      %p114 = scmp.eq.s32.totalorder %s29, 1
      %p115 = por %p113, %p114
      %p116 = scmp.ne.s32.totalorder %s107, %s108
      %p117 = scmp.eq.s32.totalorder %s29, 0
      %p118 = por %p116, %p117
      %p119 = scmp.ne.s32.totalorder %s107, %s108
      %p120 = scmp.eq.s32.totalorder %s30, 1
      %p121 = por %p119, %p120
      %p123 = scmp.ne.s32.totalorder %s108, %s122
      %p124 = scmp.eq.s32.totalorder %s30, 0
      %p125 = por %p123, %p124
      %s127 = sadd.s32 %s126, 1
      %p130 = scmp.eq.s32.totalorder %s24, 1
      %p131 = scmp.ne.s32.totalorder %s126, %s128
      %p132 = scmp.eq.s32.totalorder %s24, 0
      %p133 = por %p131, %p132
      %p134 = scmp.ne.s32.totalorder %s126, %s128
      %p135 = scmp.eq.s32.totalorder %s29, 1
      %p136 = por %p134, %p135
      %p137 = scmp.ne.s32.totalorder %s128, %s129
      %p138 = scmp.eq.s32.totalorder %s29, 0
      %p139 = por %p137, %p138
      %p140 = scmp.ne.s32.totalorder %s128, %s129
      %p141 = scmp.eq.s32.totalorder %s30, 1
      %p142 = por %p140, %p141
      %p144 = scmp.ne.s32.totalorder %s129, %s143
      %p145 = scmp.eq.s32.totalorder %s30, 0
      %p146 = por %p144, %p145
      %s148 = sadd.s32 %s147, 1
      %p151 = scmp.eq.s32.totalorder %s24, 1
      %p152 = scmp.ne.s32.totalorder %s147, %s149
      %p153 = scmp.eq.s32.totalorder %s24, 0
      %p154 = por %p152, %p153
      %p155 = scmp.ne.s32.totalorder %s147, %s149
      %p156 = scmp.eq.s32.totalorder %s29, 1
      %p157 = por %p155, %p156
      %p158 = scmp.ne.s32.totalorder %s149, %s150
      %p159 = scmp.eq.s32.totalorder %s29, 0
      %p160 = por %p158, %p159
      %p161 = scmp.ne.s32.totalorder %s149, %s150
      %p162 = scmp.eq.s32.totalorder %s30, 1
      %p163 = por %p161, %p162
      %p165 = scmp.ne.s32.totalorder %s150, %s164
      %p166 = scmp.eq.s32.totalorder %s30, 0
      %p167 = por %p165, %p166
      %s169 = sadd.s32 %s168, 1
      %p172 = scmp.eq.s32.totalorder %s24, 1
      %p173 = scmp.ne.s32.totalorder %s168, %s170
      %p174 = scmp.eq.s32.totalorder %s24, 0
      %p175 = por %p173, %p174
      %p176 = scmp.ne.s32.totalorder %s168, %s170
      %p177 = scmp.eq.s32.totalorder %s29, 1
      %p178 = por %p176, %p177
      %p179 = scmp.ne.s32.totalorder %s170, %s171
      %p180 = scmp.eq.s32.totalorder %s29, 0
      %p181 = por %p179, %p180
      %p182 = scmp.ne.s32.totalorder %s170, %s171
      %p183 = scmp.eq.s32.totalorder %s30, 1
      %p184 = por %p182, %p183
      %p186 = scmp.ne.s32.totalorder %s171, %s185
      %p187 = scmp.eq.s32.totalorder %s30, 0
      %p188 = por %p186, %p187
      %s190 = sadd.s32 %s189, 1
      %p193 = scmp.eq.s32.totalorder %s24, 1
      %p194 = scmp.ne.s32.totalorder %s189, %s191
      %p195 = scmp.eq.s32.totalorder %s24, 0
      %p196 = por %p194, %p195
      %p197 = scmp.ne.s32.totalorder %s189, %s191
      %p198 = scmp.eq.s32.totalorder %s29, 1
      %p199 = por %p197, %p198
      %p200 = scmp.ne.s32.totalorder %s191, %s192
      %p201 = scmp.eq.s32.totalorder %s29, 0
      %p202 = por %p200, %p201
      %p203 = scmp.ne.s32.totalorder %s191, %s192
      %p204 = scmp.eq.s32.totalorder %s30, 1
      %p205 = por %p203, %p204
      %p207 = scmp.ne.s32.totalorder %s192, %s206
      %p208 = scmp.eq.s32.totalorder %s30, 0
      %p209 = por %p207, %p208
      %s211 = sadd.s32 %s210, 1
      %p214 = scmp.eq.s32.totalorder %s24, 1
      %p215 = scmp.ne.s32.totalorder %s210, %s212
      %p216 = scmp.eq.s32.totalorder %s24, 0
      %p217 = por %p215, %p216
      %p218 = scmp.ne.s32.totalorder %s210, %s212
      %p219 = scmp.eq.s32.totalorder %s29, 1
      %p220 = por %p218, %p219
      %p221 = scmp.ne.s32.totalorder %s212, %s213
      %p222 = scmp.eq.s32.totalorder %s29, 0
      %p223 = por %p221, %p222
      %p224 = scmp.ne.s32.totalorder %s212, %s213
      %p225 = scmp.eq.s32.totalorder %s30, 1
      %p226 = por %p224, %p225
      %p228 = scmp.ne.s32.totalorder %s213, %s227
      %p229 = scmp.eq.s32.totalorder %s30, 0
      %p230 = por %p228, %p229
      %s232 = sadd.s32 %s231, 1
      %p235 = scmp.eq.s32.totalorder %s24, 1
      %p236 = scmp.ne.s32.totalorder %s231, %s233
      %p237 = scmp.eq.s32.totalorder %s24, 0
      %p238 = por %p236, %p237
      %p239 = scmp.ne.s32.totalorder %s231, %s233
      %p240 = scmp.eq.s32.totalorder %s29, 1
      %p241 = por %p239, %p240
      %p242 = scmp.ne.s32.totalorder %s233, %s234
      %p243 = scmp.eq.s32.totalorder %s29, 0
      %p244 = por %p242, %p243
      %p245 = scmp.ne.s32.totalorder %s233, %s234
      %p246 = scmp.eq.s32.totalorder %s30, 1
      %p247 = por %p245, %p246
      %p249 = scmp.ne.s32.totalorder %s234, %s248
      %p250 = scmp.eq.s32.totalorder %s30, 0
      %p251 = por %p249, %p250
      %s253 = sadd.s32 %s252, 1
      %p256 = scmp.eq.s32.totalorder %s24, 1
      %p257 = scmp.ne.s32.totalorder %s252, %s254
      %p258 = scmp.eq.s32.totalorder %s24, 0
      %p259 = por %p257, %p258
      %p260 = scmp.ne.s32.totalorder %s252, %s254
      %p261 = scmp.eq.s32.totalorder %s29, 1
      %p262 = por %p260, %p261
      %p263 = scmp.ne.s32.totalorder %s254, %s255
      %p264 = scmp.eq.s32.totalorder %s29, 0
      %p265 = por %p263, %p264
      %p266 = scmp.ne.s32.totalorder %s254, %s255
      %p267 = scmp.eq.s32.totalorder %s30, 1
      %p268 = por %p266, %p267
      %p270 = scmp.ne.s32.totalorder %s255, %s269
      %p271 = scmp.eq.s32.totalorder %s30, 0
      %p272 = por %p270, %p271
      %s274 = sadd.s32 %s273, 1
      %p277 = scmp.eq.s32.totalorder %s24, 1
      %p278 = scmp.ne.s32.totalorder %s273, %s275
      %p279 = scmp.eq.s32.totalorder %s24, 0
      %p280 = por %p278, %p279
      %p281 = scmp.ne.s32.totalorder %s273, %s275
      %p282 = scmp.eq.s32.totalorder %s29, 1
      %p283 = por %p281, %p282
      %p284 = scmp.ne.s32.totalorder %s275, %s276
      %p285 = scmp.eq.s32.totalorder %s29, 0
      %p286 = por %p284, %p285
      %p287 = scmp.ne.s32.totalorder %s275, %s276
      %p288 = scmp.eq.s32.totalorder %s30, 1
      %p289 = por %p287, %p288
      %p291 = scmp.ne.s32.totalorder %s276, %s290
      %p292 = scmp.eq.s32.totalorder %s30, 0
      %p293 = por %p291, %p292
      %s295 = sadd.s32 %s294, 1
      %p298 = scmp.eq.s32.totalorder %s24, 1
      %p299 = scmp.ne.s32.totalorder %s294, %s296
      %p300 = scmp.eq.s32.totalorder %s24, 0
      %p301 = por %p299, %p300
      %p302 = scmp.ne.s32.totalorder %s294, %s296
      %p303 = scmp.eq.s32.totalorder %s29, 1
      %p304 = por %p302, %p303
      %p305 = scmp.ne.s32.totalorder %s296, %s297
      %p306 = scmp.eq.s32.totalorder %s29, 0
      %p307 = por %p305, %p306
      %p308 = scmp.ne.s32.totalorder %s296, %s297
      %p309 = scmp.eq.s32.totalorder %s30, 1
      %p310 = por %p308, %p309
      %p312 = scmp.ne.s32.totalorder %s297, %s311
      %p313 = scmp.eq.s32.totalorder %s30, 0
      %p314 = por %p312, %p313
      %s316 = sadd.s32 %s315, 1
      %p319 = scmp.eq.s32.totalorder %s24, 1
      %p320 = scmp.ne.s32.totalorder %s315, %s317
      %p321 = scmp.eq.s32.totalorder %s24, 0
      %p322 = por %p320, %p321
      %p323 = scmp.ne.s32.totalorder %s315, %s317
      %p324 = scmp.eq.s32.totalorder %s29, 1
      %p325 = por %p323, %p324
      %p326 = scmp.ne.s32.totalorder %s317, %s318
      %p327 = scmp.eq.s32.totalorder %s29, 0
      %p328 = por %p326, %p327
      %p329 = scmp.ne.s32.totalorder %s317, %s318
      %p330 = scmp.eq.s32.totalorder %s30, 1
      %p331 = por %p329, %p330
      %p333 = scmp.ne.s32.totalorder %s318, %s332
      %p334 = scmp.eq.s32.totalorder %s30, 0
      %p335 = por %p333, %p334
      %s337 = sadd.s32 %s336, 1
      %p340 = scmp.eq.s32.totalorder %s24, 1
      %p341 = scmp.ne.s32.totalorder %s336, %s338
      %p342 = scmp.eq.s32.totalorder %s24, 0
      %p343 = por %p341, %p342
      %p344 = scmp.ne.s32.totalorder %s336, %s338
      %p345 = scmp.eq.s32.totalorder %s29, 1
      %p346 = por %p344, %p345
      %p347 = scmp.ne.s32.totalorder %s338, %s339
      %p348 = scmp.eq.s32.totalorder %s29, 0
      %p349 = por %p347, %p348
      %p350 = scmp.ne.s32.totalorder %s338, %s339
      %p351 = scmp.eq.s32.totalorder %s30, 1
      %p352 = por %p350, %p351
      %p354 = scmp.ne.s32.totalorder %s339, %s353
      %p355 = scmp.eq.s32.totalorder %s30, 0
      %p356 = por %p354, %p355
      %s357 = ssub.s32 %s24, %s31
      %p358 = scmp.eq.s32.totalorder %s357, 0
      %s360 = sadd.s32 %s359, 1
      %s361 = scalar_select %p358, %s359, %s360
      %p364 = pneg %p358
      %p365 = scmp.eq.s32.totalorder %s24, 1
      %p366 = por %p364, %p365
      %p367 = scmp.ne.s32.totalorder %s359, %s362
      %p368 = scmp.eq.s32.totalorder %s24, 0
      %p369 = por %p367, %p368
      %p370 = scmp.ne.s32.totalorder %s359, %s362
      %p371 = scmp.eq.s32.totalorder %s29, 1
      %p372 = por %p370, %p371
      %p373 = scmp.ne.s32.totalorder %s362, %s363
      %p374 = scmp.eq.s32.totalorder %s29, 0
      %p375 = por %p373, %p374
      %p376 = scmp.ne.s32.totalorder %s362, %s363
      %p377 = scmp.eq.s32.totalorder %s30, 1
      %p378 = por %p376, %p377
      %p380 = scmp.ne.s32.totalorder %s363, %s379
      %p381 = scmp.eq.s32.totalorder %s30, 0
      %p382 = por %p380, %p381
      %p383 = scmp.le.s32.totalorder 1, %s24
      %p384 = scmp.lt.s32.totalorder %s24, 3
      %p385 = pnand %p383, %p384
      %p386 = pneg %p385
      // Predicated region
      $region9: #{tpu_custom_call.1} parent=5 // pred_check
        _
      $region10: #{tpu_custom_call.1} parent=5 // pred_check_branch
        %388 = sbr.rel (%p385) target = $region12
      $region11: #{tpu_custom_call.1} parent=5 // pred_region
        %s389 = ssub.s32 %s24, 1
        // Predicated region
        $region13: #{tpu_custom_call.1} parent=11 // pred_check
          %p390 = pneg %p97
        $region14: #{tpu_custom_call.1} parent=11 // pred_check_branch
          %392 = sbr.rel (%p390) target = $region16
        $region15: #{tpu_custom_call.1} parent=11 // pred_region
          _
        $region16: #{tpu_custom_call.1} parent=11 // pred_fallthru
          _
        // Predicated region
        $region17: #{tpu_custom_call.1} parent=11 // pred_check
          %p393 = pneg %p118
        $region18: #{tpu_custom_call.1} parent=11 // pred_check_branch
          %395 = sbr.rel (%p393) target = $region20
        $region19: #{tpu_custom_call.1} parent=11 // pred_region
          _
        $region20: #{tpu_custom_call.1} parent=11 // pred_fallthru
          _
        // Predicated region
        $region21: #{tpu_custom_call.1} parent=11 // pred_check
          %p396 = pneg %p139
        $region22: #{tpu_custom_call.1} parent=11 // pred_check_branch
          %398 = sbr.rel (%p396) target = $region24
        $region23: #{tpu_custom_call.1} parent=11 // pred_region
          _
        $region24: #{tpu_custom_call.1} parent=11 // pred_fallthru
          _
        // Predicated region
        $region25: #{tpu_custom_call.1} parent=11 // pred_check
          %p399 = pneg %p160
        $region26: #{tpu_custom_call.1} parent=11 // pred_check_branch
          %401 = sbr.rel (%p399) target = $region28
        $region27: #{tpu_custom_call.1} parent=11 // pred_region
          _
        $region28: #{tpu_custom_call.1} parent=11 // pred_fallthru
          _
        // Predicated region
        $region29: #{tpu_custom_call.1} parent=11 // pred_check
          %p402 = pneg %p181
        $region30: #{tpu_custom_call.1} parent=11 // pred_check_branch
          %404 = sbr.rel (%p402) target = $region32
        $region31: #{tpu_custom_call.1} parent=11 // pred_region
          _
        $region32: #{tpu_custom_call.1} parent=11 // pred_fallthru
          _
        // Predicated region
        $region33: #{tpu_custom_call.1} parent=11 // pred_check
          %p405 = pneg %p202
        $region34: #{tpu_custom_call.1} parent=11 // pred_check_branch
          %407 = sbr.rel (%p405) target = $region36
        $region35: #{tpu_custom_call.1} parent=11 // pred_region
          _
        $region36: #{tpu_custom_call.1} parent=11 // pred_fallthru
          _
        // Predicated region
        $region37: #{tpu_custom_call.1} parent=11 // pred_check
          %p408 = pneg %p223
        $region38: #{tpu_custom_call.1} parent=11 // pred_check_branch
          %410 = sbr.rel (%p408) target = $region40
        $region39: #{tpu_custom_call.1} parent=11 // pred_region
          _
        $region40: #{tpu_custom_call.1} parent=11 // pred_fallthru
          _
        // Predicated region
        $region41: #{tpu_custom_call.1} parent=11 // pred_check
          %p411 = pneg %p244
        $region42: #{tpu_custom_call.1} parent=11 // pred_check_branch
          %413 = sbr.rel (%p411) target = $region44
        $region43: #{tpu_custom_call.1} parent=11 // pred_region
          _
        $region44: #{tpu_custom_call.1} parent=11 // pred_fallthru
          _
        // Predicated region
        $region45: #{tpu_custom_call.1} parent=11 // pred_check
          %p414 = pneg %p265
        $region46: #{tpu_custom_call.1} parent=11 // pred_check_branch
          %416 = sbr.rel (%p414) target = $region48
        $region47: #{tpu_custom_call.1} parent=11 // pred_region
          _
        $region48: #{tpu_custom_call.1} parent=11 // pred_fallthru
          _
        // Predicated region
        $region49: #{tpu_custom_call.1} parent=11 // pred_check
          %p417 = pneg %p286
        $region50: #{tpu_custom_call.1} parent=11 // pred_check_branch
          %419 = sbr.rel (%p417) target = $region52
        $region51: #{tpu_custom_call.1} parent=11 // pred_region
          _
        $region52: #{tpu_custom_call.1} parent=11 // pred_fallthru
          _
        // Predicated region
        $region53: #{tpu_custom_call.1} parent=11 // pred_check
          %p420 = pneg %p307
        $region54: #{tpu_custom_call.1} parent=11 // pred_check_branch
          %422 = sbr.rel (%p420) target = $region56
        $region55: #{tpu_custom_call.1} parent=11 // pred_region
          _
        $region56: #{tpu_custom_call.1} parent=11 // pred_fallthru
          _
        // Predicated region
        $region57: #{tpu_custom_call.1} parent=11 // pred_check
          %p423 = pneg %p328
        $region58: #{tpu_custom_call.1} parent=11 // pred_check_branch
          %425 = sbr.rel (%p423) target = $region60
        $region59: #{tpu_custom_call.1} parent=11 // pred_region
          _
        $region60: #{tpu_custom_call.1} parent=11 // pred_fallthru
          _
        // Predicated region
        $region61: #{tpu_custom_call.1} parent=11 // pred_check
          %p426 = pneg %p349
        $region62: #{tpu_custom_call.1} parent=11 // pred_check_branch
          %428 = sbr.rel (%p426) target = $region64
        $region63: #{tpu_custom_call.1} parent=11 // pred_region
          _
        $region64: #{tpu_custom_call.1} parent=11 // pred_fallthru
          _
      $region12: #{tpu_custom_call.1} parent=5 // pred_fallthru
        _
      %p429 = scmp.lt.s32.totalorder %s24, 2
      // Predicated region
      $region65: #{tpu_custom_call.1} parent=5 // pred_check
        %p430 = pneg %p429
      $region66: #{tpu_custom_call.1} parent=5 // pred_check_branch
        %432 = sbr.rel (%p430) target = $region68
      $region67: #{tpu_custom_call.1} parent=5 // pred_region
        // Predicated region
        $region69: #{tpu_custom_call.1} parent=67 // pred_check
          %p433 = pneg %p44
        $region70: #{tpu_custom_call.1} parent=67 // pred_check_branch
          %435 = sbr.rel (%p433) target = $region72
        $region71: #{tpu_custom_call.1} parent=67 // pred_region
          %s436 = smul.u32 2, %s24
          %p437 = scmp.lt.s32.totalorder %s436, 3
          %s438 = scalar_select %p437, %s436, 3
          %s439 = smul.addr %s438, 8
          %s440 = scalar_lea.vmem %s0, %s439
          %s441 = smul.u32 2, %s24
        $region72: #{tpu_custom_call.1} parent=67 // pred_fallthru
          _
        // Predicated region
        $region73: #{tpu_custom_call.1} parent=67 // pred_check
          %p442 = pneg %p70
        $region74: #{tpu_custom_call.1} parent=67 // pred_check_branch
          %444 = sbr.rel (%p442) target = $region76
        $region75: #{tpu_custom_call.1} parent=67 // pred_region
          %s445 = smul.u32 2, %s24
          %p446 = scmp.lt.s32.totalorder %s445, 3
          %s447 = scalar_select %p446, %s445, 3
          %s448 = smul.addr %s447, 8
          %s449 = scalar_lea.vmem %s1, %s448
          %s450 = smul.u32 2, %s24
        $region76: #{tpu_custom_call.1} parent=67 // pred_fallthru
          _
      $region68: #{tpu_custom_call.1} parent=5 // pred_fallthru
        _
      %p451 = scmp.le.s32.totalorder 1, %s24
      %p452 = scmp.lt.s32.totalorder %s24, 3
      %p453 = pnand %p451, %p452
      %p454 = pneg %p453
      // Predicated region
      $region77: #{tpu_custom_call.1} parent=5 // pred_check
        _
      $region78: #{tpu_custom_call.1} parent=5 // pred_check_branch
        %456 = sbr.rel (%p453) target = $region80
      $region79: #{tpu_custom_call.1} parent=5 // pred_region
        %s457 = ssub.s32 %s24, 1
        %s458 = smul.u32 2, %s29
        %p459 = scmp.lt.s32.totalorder %s458, 3
        %s460 = scalar_select %p459, %s458, 3
        %s461 = smul.addr %s460, 8
        %s462 = scalar_lea.vmem %s0, %s461
        %p463 = pneg %p50
        %p464 = pneg %p47
        %s465 = smul.u32 2, %s29
        %p466 = scmp.lt.s32.totalorder %s465, 3
        %s467 = scalar_select %p466, %s465, 3
        %s468 = smul.addr %s467, 8
        %s469 = scalar_lea.vmem %s1, %s468
        %p470 = pneg %p76
        %p471 = pneg %p73
        %p472 = pneg %p97
        %p473 = pneg %p94
        %p474 = pneg %p118
        %p475 = pneg %p115
        %p476 = pneg %p139
        %p477 = pneg %p136
        %p478 = pneg %p160
        %p479 = pneg %p157
        %p480 = pneg %p181
        %p481 = pneg %p178
        %p482 = pneg %p202
        %p483 = pneg %p199
        %p484 = pneg %p223
        %p485 = pneg %p220
        %p486 = pneg %p244
        %p487 = pneg %p241
        %p488 = pneg %p265
        %p489 = pneg %p262
        %p490 = pneg %p286
        %p491 = pneg %p283
        %p492 = pneg %p307
        %p493 = pneg %p304
        %p494 = pneg %p328
        %p495 = pneg %p325
        %p496 = pneg %p349
        %p497 = pneg %p346
        %p498 = pneg %p375
        %p499 = pneg %p372
        %s500 = sand.u32 %s362, 1
        %s501 = scalar_lea.sflag [#allocation3], %s500
        %s502 = sand.u32 %s362, 1
        %s503 = smul.addr %s502, 16
        %s504 = scalar_lea.vmem [#allocation2], %s503
        %s505 = smul.u32 2, %s29
        %p506 = scmp.lt.s32.totalorder %s505, 3
        %s507 = scalar_select %p506, %s505, 3
        %s508 = smul.addr %s507, 8
        %s509 = scalar_lea.vmem %s0, %s508
        %s510 = smul.u32 2, %s29
        %s511 = smul.u32 2, %s29
        %p512 = scmp.lt.s32.totalorder %s511, 3
        %s513 = scalar_select %p512, %s511, 3
        %s514 = smul.addr %s513, 8
        %s515 = scalar_lea.vmem %s1, %s514
        %s516 = smul.u32 2, %s29
        %s517 = smul.u32 2, %s29
        %v519 = vld [vmem:[%s509] sm:$0xff]
        %v520 = vld [vmem:[%s509 + $0x8] sm:$0xff]
        %v521 = vld [vmem:[%s2] sm:$0xff]
        %v522 = vld [vmem:[%s2 + $0x8] sm:$0xff]
        %v523 = vld [vmem:[%s3] sm:$0xff]
        %v524 = vld [vmem:[%s3 + $0x8] sm:$0xff]
        %v525 = vlaneseq
        %v526 = vshrl.u32 %v525, 7
        %v527 = vadd.s32 %v526, 8
        %v528 = vlaneseq
        %v529 = vand.u32 %v528, 127
        %vm530 = vcmp.le.s32.totalorder %v529, %v526
        %vm531 = vcmp.le.s32.totalorder %v529, %v527
        %vm532 = vcmask 523264
        %v533 = vsel %vm532, %v519, 0.0
        %534 = vadd.xlane.f32.xlu0 %v533
        %v535 = vpop.xlane.xlu0 %534
        %v536 = vsel %vm532, %v520, 0.0
        %537 = vadd.xlane.f32.xlu0 %v536
        %v538 = vpop.xlane.xlu0 %537
        %v539 = vrcp.pop 64.0
        %v540 = vmul.f32 %v535, %v539
        %v541 = vmul.f32 %v538, %v539
        %v542 = vsub.f32 %v519, %v540
        %v543 = vsub.f32 %v520, %v541
        %v544 = vmul.f32 %v542, %v542
        %v545 = vmul.f32 %v543, %v543
        %v546 = vsel %vm532, %v544, 0.0
        %547 = vadd.xlane.f32.xlu0 %v546
        %v548 = vpop.xlane.xlu0 %547
        %v549 = vsel %vm532, %v545, 0.0
        %550 = vadd.xlane.f32.xlu0 %v549
        %v551 = vpop.xlane.xlu0 %550
        %v552 = vmul.f32 %v548, %v539
        %v553 = vmul.f32 %v551, %v539
        %v554 = vadd.f32 %v552, 1e-05
        %v555 = vadd.f32 %v553, 1e-05
        %v556 = vrsqrt.pop %v554
        %v557 = vrsqrt.pop %v555
        %v558 = vmul.f32 %v542, %v556
        %v559 = vmul.f32 %v543, %v557
        %v560 = vld [vmem:[%s4] sm:$0x1]
        %v562 = vlaneseq
        %v563 = vshrl.u32 %v562, 7
        %v564 = vsub.s32 0, %v563
        %v565 = vrot.slane %v560, %v564
        %v567 = vmul.f32 %v558, %v565
        %v568 = vmul.f32 %v559, %v565
        %v569 = vpack.c.bf16 %v568, %v567
        %v570 = vld [vmem:[%s5] sm:$0xff]
        %v571 = vld [vmem:[%s5 + $0x8] sm:$0xff]
        %v572 = vld [vmem:[%s5 + $0x10] sm:$0xff]
        %v573 = vld [vmem:[%s5 + $0x18] sm:$0xff]
        %v574 = vld [vmem:[%s5 + $0x20] sm:$0xff]
        %v575 = vld [vmem:[%s5 + $0x28] sm:$0xff]
        %v576 = vld [vmem:[%s5 + $0x30] sm:$0xff]
        %v577 = vld [vmem:[%s5 + $0x38] sm:$0xff]
        %v586 = vunpack.c.l.b16 %v570
        %v587 = vunpack.c.h.b16 %v570
        %v588 = vunpack.c.l.b16 %v571
        %v589 = vunpack.c.h.b16 %v571
        %v590 = vunpack.c.l.b16 %v572
        %v591 = vunpack.c.h.b16 %v572
        %v592 = vunpack.c.l.b16 %v573
        %v593 = vunpack.c.h.b16 %v573
        %v594 = vunpack.c.l.b16 %v574
        %v595 = vunpack.c.h.b16 %v574
        %v596 = vunpack.c.l.b16 %v575
        %v597 = vunpack.c.h.b16 %v575
        %v598 = vunpack.c.l.b16 %v576
        %v599 = vunpack.c.h.b16 %v576
        %v600 = vunpack.c.l.b16 %v577
        %v601 = vunpack.c.h.b16 %v577
        %v602 = vpack.c.b16 %v588, %v586
        %v603 = vpack.c.b16 %v589, %v587
        %v604 = vpack.c.b16 %v592, %v590
        %v605 = vpack.c.b16 %v593, %v591
        %v606 = vpack.c.b16 %v596, %v594
        %v607 = vpack.c.b16 %v597, %v595
        %v608 = vpack.c.b16 %v600, %v598
        %v609 = vpack.c.b16 %v601, %v599
        %v619 = vsel %vm532, %v569, 0
        %621 = vmatprep.subr.bf16.mxu0 %v603
        %622 = vmatpush1.bf16.msra.mxu0 %v602
        %623 = vmatprep.subr.bf16.mxu0 %v605
        %624 = vmatpush1.bf16.msra.mxu0 %v604
        %625 = vmatprep.subr.bf16.mxu0 %v607
        %626 = vmatpush1.bf16.msra.mxu0 %v606
        %627 = vmatprep.subr.bf16.mxu0 %v609
        %628 = vmatpush1.bf16.msra.mxu0 %v608
        %629 = vmatprep.subr.bf16.mxu0 0
        %630 = vmatpush1.bf16.msra.mxu0 0
        %631 = vmatprep.subr.bf16.mxu0 0
        %632 = vmatpush1.bf16.msra.mxu0 0
        %633 = vmatprep.subr.bf16.mxu0 0
        %634 = vmatpush1.bf16.msra.mxu0 0
        %635 = vmatprep.subr.bf16.mxu0 0
        %636 = vmatpush1.bf16.msra.mxu0 0
        %637 = vmatprep.subr.bf16.mxu0 0
        %638 = vmatpush1.bf16.msra.mxu0 0
        %639 = vmatprep.subr.bf16.mxu0 0
        %640 = vmatpush1.bf16.msra.mxu0 0
        %641 = vmatprep.subr.bf16.mxu0 0
        %642 = vmatpush1.bf16.msra.mxu0 0
        %643 = vmatprep.subr.bf16.mxu0 0
        %644 = vmatpush1.bf16.msra.mxu0 0
        %645 = vmatprep.subr.bf16.mxu0 0
        %646 = vmatpush1.bf16.msra.mxu0 0
        %647 = vmatprep.subr.bf16.mxu0 0
        %648 = vmatpush1.bf16.msra.mxu0 0
        %649 = vmatprep.subr.bf16.mxu0 0
        %650 = vmatpush1.bf16.msra.mxu0 0
        %651 = vmatprep.subr.bf16.mxu0 0
        %652 = vmatpush1.bf16.msra.mxu0 0
        %653 = vmatprep.mubr.bf16.mxu0 0
        %654 = vmatmul.mubr.bf16.gmra.mrb[0].mxu0 %v619
        %v655 = vpop.f32.mrb[0].mxu0
        %v656 = vadd.f32 0.0, %v655
        %v657 = vpop.f32.mrb[0].mxu0
        %v658 = vadd.f32 0.0, %v657
        %v659 = vpop.f32.mrb[0].mxu0
        %v660 = vadd.f32 0.0, %v659
        %v661 = vpop.f32.mrb[0].mxu0
        %v662 = vadd.f32 0.0, %v661
        %663 = vdwg.mxu0
        %666 = vrot.lane.b32.xlu0 %v656, 112
        %v667 = vpop.permute.xlu0 %666
        %668 = vrot.lane.b32.xlu0 %v660, 112
        %v669 = vpop.permute.xlu0 %668
        %672 = vrot.lane.b32.xlu0 %v656, 96
        %v673 = vpop.permute.xlu0 %672
        %674 = vrot.lane.b32.xlu0 %v660, 96
        %v675 = vpop.permute.xlu0 %674
        %678 = vrot.lane.b32.xlu0 %v656, 80
        %v679 = vpop.permute.xlu0 %678
        %680 = vrot.lane.b32.xlu0 %v660, 80
        %v681 = vpop.permute.xlu0 %680
        %686 = vrot.lane.b32.xlu0 %v658, 112
        %v687 = vpop.permute.xlu0 %686
        %688 = vrot.lane.b32.xlu0 %v662, 112
        %v689 = vpop.permute.xlu0 %688
        %692 = vrot.lane.b32.xlu0 %v658, 96
        %v693 = vpop.permute.xlu0 %692
        %694 = vrot.lane.b32.xlu0 %v662, 96
        %v695 = vpop.permute.xlu0 %694
        %698 = vrot.lane.b32.xlu0 %v658, 80
        %v699 = vpop.permute.xlu0 %698
        %700 = vrot.lane.b32.xlu0 %v662, 80
        %v701 = vpop.permute.xlu0 %700
        %v704 = vmul.f32 %v656, %v521
        %v705 = vmul.f32 %v660, %v522
        %v706 = vmul.f32 %v667, %v521
        %v707 = vmul.f32 %v669, %v522
        %v708 = vmul.f32 %v673, %v521
        %v709 = vmul.f32 %v675, %v522
        %v710 = vmul.f32 %v679, %v521
        %v711 = vmul.f32 %v681, %v522
        %714 = vrot.lane.b32.xlu0 %v523, 8
        %v715 = vpop.permute.xlu0 %714
        %716 = vrot.lane.b32.xlu0 %v524, 8
        %v717 = vpop.permute.xlu0 %716
        %v720 = vmul.f32 %v656, %v715
        %v721 = vmul.f32 %v660, %v717
        %v722 = vmul.f32 %v667, %v715
        %v723 = vmul.f32 %v669, %v717
        %v724 = vmul.f32 %v673, %v715
        %v725 = vmul.f32 %v675, %v717
        %v726 = vmul.f32 %v679, %v715
        %v727 = vmul.f32 %v681, %v717
        %736 = vrot.lane.b32.xlu0 %v720, 120
        %v737 = vpop.permute.xlu0 %736
        %738 = vrot.lane.b32.xlu0 %v721, 120
        %v739 = vpop.permute.xlu0 %738
        %740 = vrot.lane.b32.xlu0 %v722, 120
        %v741 = vpop.permute.xlu0 %740
        %742 = vrot.lane.b32.xlu0 %v723, 120
        %v743 = vpop.permute.xlu0 %742
        %744 = vrot.lane.b32.xlu0 %v724, 120
        %v745 = vpop.permute.xlu0 %744
        %746 = vrot.lane.b32.xlu0 %v725, 120
        %v747 = vpop.permute.xlu0 %746
        %748 = vrot.lane.b32.xlu0 %v726, 120
        %v749 = vpop.permute.xlu0 %748
        %750 = vrot.lane.b32.xlu0 %v727, 120
        %v751 = vpop.permute.xlu0 %750
        %v760 = vsub.f32 %v704, %v737
        %v761 = vsub.f32 %v705, %v739
        %v762 = vsub.f32 %v706, %v741
        %v763 = vsub.f32 %v707, %v743
        %v764 = vsub.f32 %v708, %v745
        %v765 = vsub.f32 %v709, %v747
        %v766 = vsub.f32 %v710, %v749
        %v767 = vsub.f32 %v711, %v751
        %v768 = vpack.c.bf16 %v761, %v760
        %v769 = vpack.c.bf16 %v763, %v762
        %v770 = vpack.c.bf16 %v765, %v764
        %v771 = vpack.c.bf16 %v767, %v766
        %774 = vrot.lane.b32.xlu0 %v521, 8
        %v775 = vpop.permute.xlu0 %774
        %776 = vrot.lane.b32.xlu0 %v522, 8
        %v777 = vpop.permute.xlu0 %776
        %v780 = vmul.f32 %v656, %v775
        %v781 = vmul.f32 %v660, %v777
        %v782 = vmul.f32 %v667, %v775
        %v783 = vmul.f32 %v669, %v777
        %v784 = vmul.f32 %v673, %v775
        %v785 = vmul.f32 %v675, %v777
        %v786 = vmul.f32 %v679, %v775
        %v787 = vmul.f32 %v681, %v777
        %v788 = vmul.f32 %v656, %v523
        %v789 = vmul.f32 %v660, %v524
        %v790 = vmul.f32 %v667, %v523
        %v791 = vmul.f32 %v669, %v524
        %v792 = vmul.f32 %v673, %v523
        %v793 = vmul.f32 %v675, %v524
        %v794 = vmul.f32 %v679, %v523
        %v795 = vmul.f32 %v681, %v524
        %804 = vrot.lane.b32.xlu0 %v788, 8
        %v805 = vpop.permute.xlu0 %804
        %806 = vrot.lane.b32.xlu0 %v789, 8
        %v807 = vpop.permute.xlu0 %806
        %808 = vrot.lane.b32.xlu0 %v790, 8
        %v809 = vpop.permute.xlu0 %808
        %810 = vrot.lane.b32.xlu0 %v791, 8
        %v811 = vpop.permute.xlu0 %810
        %812 = vrot.lane.b32.xlu0 %v792, 8
        %v813 = vpop.permute.xlu0 %812
        %814 = vrot.lane.b32.xlu0 %v793, 8
        %v815 = vpop.permute.xlu0 %814
        %816 = vrot.lane.b32.xlu0 %v794, 8
        %v817 = vpop.permute.xlu0 %816
        %818 = vrot.lane.b32.xlu0 %v795, 8
        %v819 = vpop.permute.xlu0 %818
        %v828 = vadd.f32 %v780, %v805
        %v829 = vadd.f32 %v781, %v807
        %v830 = vadd.f32 %v782, %v809
        %v831 = vadd.f32 %v783, %v811
        %v832 = vadd.f32 %v784, %v813
        %v833 = vadd.f32 %v785, %v815
        %v834 = vadd.f32 %v786, %v817
        %v835 = vadd.f32 %v787, %v819
        %v836 = vpack.c.bf16 %v829, %v828
        %v837 = vpack.c.bf16 %v831, %v830
        %v838 = vpack.c.bf16 %v833, %v832
        %v839 = vpack.c.bf16 %v835, %v834
        %840 = vrot.lane.b32.xlu0 %v521, 64
        %v841 = vpop.permute.xlu0 %840
        %842 = vrot.lane.b32.xlu0 %v522, 64
        %v843 = vpop.permute.xlu0 %842
        %v846 = vmul.f32 %v656, %v841
        %v847 = vmul.f32 %v660, %v843
        %v848 = vmul.f32 %v667, %v841
        %v849 = vmul.f32 %v669, %v843
        %v850 = vmul.f32 %v673, %v841
        %v851 = vmul.f32 %v675, %v843
        %v852 = vmul.f32 %v679, %v841
        %v853 = vmul.f32 %v681, %v843
        %854 = vrot.lane.b32.xlu0 %v523, 72
        %v855 = vpop.permute.xlu0 %854
        %856 = vrot.lane.b32.xlu0 %v524, 72
        %v857 = vpop.permute.xlu0 %856
        %v860 = vmul.f32 %v656, %v855
        %v861 = vmul.f32 %v660, %v857
        %v862 = vmul.f32 %v667, %v855
        %v863 = vmul.f32 %v669, %v857
        %v864 = vmul.f32 %v673, %v855
        %v865 = vmul.f32 %v675, %v857
        %v866 = vmul.f32 %v679, %v855
        %v867 = vmul.f32 %v681, %v857
        %876 = vrot.lane.b32.xlu0 %v860, 120
        %v877 = vpop.permute.xlu0 %876
        %878 = vrot.lane.b32.xlu0 %v861, 120
        %v879 = vpop.permute.xlu0 %878
        %880 = vrot.lane.b32.xlu0 %v862, 120
        %v881 = vpop.permute.xlu0 %880
        %882 = vrot.lane.b32.xlu0 %v863, 120
        %v883 = vpop.permute.xlu0 %882
        %884 = vrot.lane.b32.xlu0 %v864, 120
        %v885 = vpop.permute.xlu0 %884
        %886 = vrot.lane.b32.xlu0 %v865, 120
        %v887 = vpop.permute.xlu0 %886
        %888 = vrot.lane.b32.xlu0 %v866, 120
        %v889 = vpop.permute.xlu0 %888
        %890 = vrot.lane.b32.xlu0 %v867, 120
        %v891 = vpop.permute.xlu0 %890
        %v900 = vsub.f32 %v846, %v877
        %v901 = vsub.f32 %v847, %v879
        %v902 = vsub.f32 %v848, %v881
        %v903 = vsub.f32 %v849, %v883
        %v904 = vsub.f32 %v850, %v885
        %v905 = vsub.f32 %v851, %v887
        %v906 = vsub.f32 %v852, %v889
        %v907 = vsub.f32 %v853, %v891
        %v908 = vpack.c.bf16 %v901, %v900
        %v909 = vpack.c.bf16 %v903, %v902
        %v910 = vpack.c.bf16 %v905, %v904
        %v911 = vpack.c.bf16 %v907, %v906
        %912 = vrot.lane.b32.xlu0 %v521, 72
        %v913 = vpop.permute.xlu0 %912
        %914 = vrot.lane.b32.xlu0 %v522, 72
        %v915 = vpop.permute.xlu0 %914
        %v918 = vmul.f32 %v656, %v913
        %v919 = vmul.f32 %v660, %v915
        %v920 = vmul.f32 %v667, %v913
        %v921 = vmul.f32 %v669, %v915
        %v922 = vmul.f32 %v673, %v913
        %v923 = vmul.f32 %v675, %v915
        %v924 = vmul.f32 %v679, %v913
        %v925 = vmul.f32 %v681, %v915
        %926 = vrot.lane.b32.xlu0 %v523, 64
        %v927 = vpop.permute.xlu0 %926
        %928 = vrot.lane.b32.xlu0 %v524, 64
        %v929 = vpop.permute.xlu0 %928
        %v932 = vmul.f32 %v656, %v927
        %v933 = vmul.f32 %v660, %v929
        %v934 = vmul.f32 %v667, %v927
        %v935 = vmul.f32 %v669, %v929
        %v936 = vmul.f32 %v673, %v927
        %v937 = vmul.f32 %v675, %v929
        %v938 = vmul.f32 %v679, %v927
        %v939 = vmul.f32 %v681, %v929
        %948 = vrot.lane.b32.xlu0 %v932, 8
        %v949 = vpop.permute.xlu0 %948
        %950 = vrot.lane.b32.xlu0 %v933, 8
        %v951 = vpop.permute.xlu0 %950
        %952 = vrot.lane.b32.xlu0 %v934, 8
        %v953 = vpop.permute.xlu0 %952
        %954 = vrot.lane.b32.xlu0 %v935, 8
        %v955 = vpop.permute.xlu0 %954
        %956 = vrot.lane.b32.xlu0 %v936, 8
        %v957 = vpop.permute.xlu0 %956
        %958 = vrot.lane.b32.xlu0 %v937, 8
        %v959 = vpop.permute.xlu0 %958
        %960 = vrot.lane.b32.xlu0 %v938, 8
        %v961 = vpop.permute.xlu0 %960
        %962 = vrot.lane.b32.xlu0 %v939, 8
        %v963 = vpop.permute.xlu0 %962
        %v972 = vadd.f32 %v918, %v949
        %v973 = vadd.f32 %v919, %v951
        %v974 = vadd.f32 %v920, %v953
        %v975 = vadd.f32 %v921, %v955
        %v976 = vadd.f32 %v922, %v957
        %v977 = vadd.f32 %v923, %v959
        %v978 = vadd.f32 %v924, %v961
        %v979 = vadd.f32 %v925, %v963
        %v980 = vpack.c.bf16 %v973, %v972
        %v981 = vpack.c.bf16 %v975, %v974
        %v982 = vpack.c.bf16 %v977, %v976
        %v983 = vpack.c.bf16 %v979, %v978
        %985 = vrot.lane.b32.xlu0 %v836, 120
        %v986 = vpop.permute.xlu0 %985
        %988 = vrot.lane.b32.xlu0 %v980, 56
        %v989 = vpop.permute.xlu0 %988
        %vm990 = vcmask 64512
        %v992 = vsel %vm990, %v986, 0
        %v995 = vsel %vm990, %v989, 0
        %997 = vmatprep.subr.bf16.mxu0 0
        %998 = vmatpush1.bf16.xpose.msra.mxu0 %v995
        %999 = vmatprep.subr.bf16.mxu0 0
        %1000 = vmatpush1.bf16.xpose.msra.mxu0 0
        %1001 = vmatprep.subr.bf16.mxu0 0
        %1002 = vmatpush1.bf16.xpose.msra.mxu0 0
        %1003 = vmatprep.subr.bf16.mxu0 0
        %1004 = vmatpush1.bf16.xpose.msra.mxu0 0
        %1005 = vmatprep.subr.bf16.mxu0 0
        %1006 = vmatpush1.bf16.xpose.msra.mxu0 0
        %1007 = vmatprep.subr.bf16.mxu0 0
        %1008 = vmatpush1.bf16.xpose.msra.mxu0 0
        %1009 = vmatprep.subr.bf16.mxu0 0
        %1010 = vmatpush1.bf16.xpose.msra.mxu0 0
        %1011 = vmatprep.subr.bf16.mxu0 0
        %1012 = vmatpush1.bf16.xpose.msra.mxu0 0
        %1013 = vmatprep.subr.bf16.mxu0 0
        %1014 = vmatpush1.bf16.xpose.msra.mxu0 0
        %1015 = vmatprep.subr.bf16.mxu0 0
        %1016 = vmatpush1.bf16.xpose.msra.mxu0 0
        %1017 = vmatprep.subr.bf16.mxu0 0
        %1018 = vmatpush1.bf16.xpose.msra.mxu0 0
        %1019 = vmatprep.subr.bf16.mxu0 0
        %1020 = vmatpush1.bf16.xpose.msra.mxu0 0
        %1021 = vmatprep.subr.bf16.mxu0 0
        %1022 = vmatpush1.bf16.xpose.msra.mxu0 0
        %1023 = vmatprep.subr.bf16.mxu0 0
        %1024 = vmatpush1.bf16.xpose.msra.mxu0 0
        %1025 = vmatprep.subr.bf16.mxu0 0
        %1026 = vmatpush1.bf16.xpose.msra.mxu0 0
        %1027 = vmatprep.subr.bf16.mxu0 0
        %1028 = vmatpush1.bf16.xpose.msra.mxu0 0
        %1029 = vmatprep.mubr.bf16.mxu0 0
        %1030 = vmatmul.mubr.bf16.gmra.mrb[0].mxu0 %v992
        %v1031 = vpop.f32.mrb[0].mxu0
        %v1032 = vadd.f32 0.0, %v1031
        %v1033 = vpop.f32.mrb[0].mxu0
        %v1034 = vpop.f32.mrb[0].mxu0
        %v1035 = vadd.f32 0.0, %v1034
        %v1036 = vpop.f32.mrb[0].mxu0
        %1037 = vdwg.mxu0
        %1039 = vrot.lane.b32.xlu0 %v837, 120
        %v1040 = vpop.permute.xlu0 %1039
        %1042 = vrot.lane.b32.xlu0 %v981, 56
        %v1043 = vpop.permute.xlu0 %1042
        %v1045 = vsel %vm990, %v1040, 0
        %v1048 = vsel %vm990, %v1043, 0
        %1050 = vmatprep.subr.bf16.mxu0 0
        %1051 = vmatpush1.bf16.xpose.msra.mxu0 %v1048
        %1052 = vmatprep.subr.bf16.mxu0 0
        %1053 = vmatpush1.bf16.xpose.msra.mxu0 0
        %1054 = vmatprep.subr.bf16.mxu0 0
        %1055 = vmatpush1.bf16.xpose.msra.mxu0 0
        %1056 = vmatprep.subr.bf16.mxu0 0
        %1057 = vmatpush1.bf16.xpose.msra.mxu0 0
        %1058 = vmatprep.subr.bf16.mxu0 0
        %1059 = vmatpush1.bf16.xpose.msra.mxu0 0
        %1060 = vmatprep.subr.bf16.mxu0 0
        %1061 = vmatpush1.bf16.xpose.msra.mxu0 0
        %1062 = vmatprep.subr.bf16.mxu0 0
        %1063 = vmatpush1.bf16.xpose.msra.mxu0 0
        %1064 = vmatprep.subr.bf16.mxu0 0
        %1065 = vmatpush1.bf16.xpose.msra.mxu0 0
        %1066 = vmatprep.subr.bf16.mxu0 0
        %1067 = vmatpush1.bf16.xpose.msra.mxu0 0
        %1068 = vmatprep.subr.bf16.mxu0 0
        %1069 = vmatpush1.bf16.xpose.msra.mxu0 0
        %1070 = vmatprep.subr.bf16.mxu0 0
        %1071 = vmatpush1.bf16.xpose.msra.mxu0 0
        %1072 = vmatprep.subr.bf16.mxu0 0
        %1073 = vmatpush1.bf16.xpose.msra.mxu0 0
        %1074 = vmatprep.subr.bf16.mxu0 0
        %1075 = vmatpush1.bf16.xpose.msra.mxu0 0
        %1076 = vmatprep.subr.bf16.mxu0 0
        %1077 = vmatpush1.bf16.xpose.msra.mxu0 0
        %1078 = vmatprep.subr.bf16.mxu0 0
        %1079 = vmatpush1.bf16.xpose.msra.mxu0 0
        %1080 = vmatprep.subr.bf16.mxu0 0
        %1081 = vmatpush1.bf16.xpose.msra.mxu0 0
        %1082 = vmatprep.mubr.bf16.mxu0 0
        %1083 = vmatmul.mubr.bf16.gmra.mrb[0].mxu0 %v1045
        %v1084 = vpop.f32.mrb[0].mxu0
        %v1085 = vadd.f32 0.0, %v1084
        %v1086 = vpop.f32.mrb[0].mxu0
        %v1087 = vpop.f32.mrb[0].mxu0
        %v1088 = vadd.f32 0.0, %v1087
        %v1089 = vpop.f32.mrb[0].mxu0
        %1090 = vdwg.mxu0
        %1092 = vrot.lane.b32.xlu0 %v838, 120
        %v1093 = vpop.permute.xlu0 %1092
        %1095 = vrot.lane.b32.xlu0 %v982, 56
        %v1096 = vpop.permute.xlu0 %1095
        %v1098 = vsel %vm990, %v1093, 0
        %v1101 = vsel %vm990, %v1096, 0
        %1103 = vmatprep.subr.bf16.mxu0 0
        %1104 = vmatpush1.bf16.xpose.msra.mxu0 %v1101
        %1105 = vmatprep.subr.bf16.mxu0 0
        %1106 = vmatpush1.bf16.xpose.msra.mxu0 0
        %1107 = vmatprep.subr.bf16.mxu0 0
        %1108 = vmatpush1.bf16.xpose.msra.mxu0 0
        %1109 = vmatprep.subr.bf16.mxu0 0
        %1110 = vmatpush1.bf16.xpose.msra.mxu0 0
        %1111 = vmatprep.subr.bf16.mxu0 0
        %1112 = vmatpush1.bf16.xpose.msra.mxu0 0
        %1113 = vmatprep.subr.bf16.mxu0 0
        %1114 = vmatpush1.bf16.xpose.msra.mxu0 0
        %1115 = vmatprep.subr.bf16.mxu0 0
        %1116 = vmatpush1.bf16.xpose.msra.mxu0 0
        %1117 = vmatprep.subr.bf16.mxu0 0
        %1118 = vmatpush1.bf16.xpose.msra.mxu0 0
        %1119 = vmatprep.subr.bf16.mxu0 0
        %1120 = vmatpush1.bf16.xpose.msra.mxu0 0
        %1121 = vmatprep.subr.bf16.mxu0 0
        %1122 = vmatpush1.bf16.xpose.msra.mxu0 0
        %1123 = vmatprep.subr.bf16.mxu0 0
        %1124 = vmatpush1.bf16.xpose.msra.mxu0 0
        %1125 = vmatprep.subr.bf16.mxu0 0
        %1126 = vmatpush1.bf16.xpose.msra.mxu0 0
        %1127 = vmatprep.subr.bf16.mxu0 0
        %1128 = vmatpush1.bf16.xpose.msra.mxu0 0
        %1129 = vmatprep.subr.bf16.mxu0 0
        %1130 = vmatpush1.bf16.xpose.msra.mxu0 0
        %1131 = vmatprep.subr.bf16.mxu0 0
        %1132 = vmatpush1.bf16.xpose.msra.mxu0 0
        %1133 = vmatprep.subr.bf16.mxu0 0
        %1134 = vmatpush1.bf16.xpose.msra.mxu0 0
        %1135 = vmatprep.mubr.bf16.mxu0 0
        %1136 = vmatmul.mubr.bf16.gmra.mrb[0].mxu0 %v1098
        %v1137 = vpop.f32.mrb[0].mxu0
        %v1138 = vadd.f32 0.0, %v1137
        %v1139 = vpop.f32.mrb[0].mxu0
        %v1140 = vpop.f32.mrb[0].mxu0
        %v1141 = vadd.f32 0.0, %v1140
        %v1142 = vpop.f32.mrb[0].mxu0
        %1143 = vdwg.mxu0
        %1145 = vrot.lane.b32.xlu0 %v839, 120
        %v1146 = vpop.permute.xlu0 %1145
        %1148 = vrot.lane.b32.xlu0 %v983, 56
        %v1149 = vpop.permute.xlu0 %1148
        %v1151 = vsel %vm990, %v1146, 0
        %v1154 = vsel %vm990, %v1149, 0
        %1156 = vmatprep.subr.bf16.mxu0 0
        %1157 = vmatpush1.bf16.xpose.msra.mxu0 %v1154
        %1158 = vmatprep.subr.bf16.mxu0 0
        %1159 = vmatpush1.bf16.xpose.msra.mxu0 0
        %1160 = vmatprep.subr.bf16.mxu0 0
        %1161 = vmatpush1.bf16.xpose.msra.mxu0 0
        %1162 = vmatprep.subr.bf16.mxu0 0
        %1163 = vmatpush1.bf16.xpose.msra.mxu0 0
        %1164 = vmatprep.subr.bf16.mxu0 0
        %1165 = vmatpush1.bf16.xpose.msra.mxu0 0
        %1166 = vmatprep.subr.bf16.mxu0 0
        %1167 = vmatpush1.bf16.xpose.msra.mxu0 0
        %1168 = vmatprep.subr.bf16.mxu0 0
        %1169 = vmatpush1.bf16.xpose.msra.mxu0 0
        %1170 = vmatprep.subr.bf16.mxu0 0
        %1171 = vmatpush1.bf16.xpose.msra.mxu0 0
        %1172 = vmatprep.subr.bf16.mxu0 0
        %1173 = vmatpush1.bf16.xpose.msra.mxu0 0
        %1174 = vmatprep.subr.bf16.mxu0 0
        %1175 = vmatpush1.bf16.xpose.msra.mxu0 0
        %1176 = vmatprep.subr.bf16.mxu0 0
        %1177 = vmatpush1.bf16.xpose.msra.mxu0 0
        %1178 = vmatprep.subr.bf16.mxu0 0
        %1179 = vmatpush1.bf16.xpose.msra.mxu0 0
        %1180 = vmatprep.subr.bf16.mxu0 0
        %1181 = vmatpush1.bf16.xpose.msra.mxu0 0
        %1182 = vmatprep.subr.bf16.mxu0 0
        %1183 = vmatpush1.bf16.xpose.msra.mxu0 0
        %1184 = vmatprep.subr.bf16.mxu0 0
        %1185 = vmatpush1.bf16.xpose.msra.mxu0 0
        %1186 = vmatprep.subr.bf16.mxu0 0
        %1187 = vmatpush1.bf16.xpose.msra.mxu0 0
        %1188 = vmatprep.mubr.bf16.mxu0 0
        %1189 = vmatmul.mubr.bf16.gmra.mrb[0].mxu0 %v1151
        %v1190 = vpop.f32.mrb[0].mxu0
        %v1191 = vadd.f32 0.0, %v1190
        %v1192 = vpop.f32.mrb[0].mxu0
        %v1193 = vpop.f32.mrb[0].mxu0
        %v1194 = vadd.f32 0.0, %v1193
        %v1195 = vpop.f32.mrb[0].mxu0
        %1196 = vdwg.mxu0
        %1198 = vrot.lane.b32.xlu0 %v908, 64
        %v1199 = vpop.permute.xlu0 %1198
        %v1201 = vsel %vm990, %v768, 0
        %v1204 = vsel %vm990, %v1199, 0
        %1206 = vmatprep.subr.bf16.mxu0 0
        %1207 = vmatpush1.bf16.xpose.msra.mxu0 %v1204
        %1208 = vmatprep.subr.bf16.mxu0 0
        %1209 = vmatpush1.bf16.xpose.msra.mxu0 0
        %1210 = vmatprep.subr.bf16.mxu0 0
        %1211 = vmatpush1.bf16.xpose.msra.mxu0 0
        %1212 = vmatprep.subr.bf16.mxu0 0
        %1213 = vmatpush1.bf16.xpose.msra.mxu0 0
        %1214 = vmatprep.subr.bf16.mxu0 0
        %1215 = vmatpush1.bf16.xpose.msra.mxu0 0
        %1216 = vmatprep.subr.bf16.mxu0 0
        %1217 = vmatpush1.bf16.xpose.msra.mxu0 0
        %1218 = vmatprep.subr.bf16.mxu0 0
        %1219 = vmatpush1.bf16.xpose.msra.mxu0 0
        %1220 = vmatprep.subr.bf16.mxu0 0
        %1221 = vmatpush1.bf16.xpose.msra.mxu0 0
        %1222 = vmatprep.subr.bf16.mxu0 0
        %1223 = vmatpush1.bf16.xpose.msra.mxu0 0
        %1224 = vmatprep.subr.bf16.mxu0 0
        %1225 = vmatpush1.bf16.xpose.msra.mxu0 0
        %1226 = vmatprep.subr.bf16.mxu0 0
        %1227 = vmatpush1.bf16.xpose.msra.mxu0 0
        %1228 = vmatprep.subr.bf16.mxu0 0
        %1229 = vmatpush1.bf16.xpose.msra.mxu0 0
        %1230 = vmatprep.subr.bf16.mxu0 0
        %1231 = vmatpush1.bf16.xpose.msra.mxu0 0
        %1232 = vmatprep.subr.bf16.mxu0 0
        %1233 = vmatpush1.bf16.xpose.msra.mxu0 0
        %1234 = vmatprep.subr.bf16.mxu0 0
        %1235 = vmatpush1.bf16.xpose.msra.mxu0 0
        %1236 = vmatprep.subr.bf16.mxu0 0
        %1237 = vmatpush1.bf16.xpose.msra.mxu0 0
        %1238 = vmatprep.mubr.bf16.mxu0 0
        %1239 = vmatmul.mubr.bf16.gmra.mrb[0].mxu0 %v1201
        %v1240 = vpop.f32.mrb[0].mxu0
        %v1241 = vadd.f32 %v1032, %v1240
        %v1242 = vpop.f32.mrb[0].mxu0
        %v1243 = vpop.f32.mrb[0].mxu0
        %v1244 = vadd.f32 %v1035, %v1243
        %v1245 = vpop.f32.mrb[0].mxu0
        %1246 = vdwg.mxu0
        %1248 = vrot.lane.b32.xlu0 %v909, 64
        %v1249 = vpop.permute.xlu0 %1248
        %v1251 = vsel %vm990, %v769, 0
        %v1254 = vsel %vm990, %v1249, 0
        %1256 = vmatprep.subr.bf16.mxu0 0
        %1257 = vmatpush1.bf16.xpose.msra.mxu0 %v1254
        %1258 = vmatprep.subr.bf16.mxu0 0
        %1259 = vmatpush1.bf16.xpose.msra.mxu0 0
        %1260 = vmatprep.subr.bf16.mxu0 0
        %1261 = vmatpush1.bf16.xpose.msra.mxu0 0
        %1262 = vmatprep.subr.bf16.mxu0 0
        %1263 = vmatpush1.bf16.xpose.msra.mxu0 0
        %1264 = vmatprep.subr.bf16.mxu0 0
        %1265 = vmatpush1.bf16.xpose.msra.mxu0 0
        %1266 = vmatprep.subr.bf16.mxu0 0
        %1267 = vmatpush1.bf16.xpose.msra.mxu0 0
        %1268 = vmatprep.subr.bf16.mxu0 0
        %1269 = vmatpush1.bf16.xpose.msra.mxu0 0
        %1270 = vmatprep.subr.bf16.mxu0 0
        %1271 = vmatpush1.bf16.xpose.msra.mxu0 0
        %1272 = vmatprep.subr.bf16.mxu0 0
        %1273 = vmatpush1.bf16.xpose.msra.mxu0 0
        %1274 = vmatprep.subr.bf16.mxu0 0
        %1275 = vmatpush1.bf16.xpose.msra.mxu0 0
        %1276 = vmatprep.subr.bf16.mxu0 0
        %1277 = vmatpush1.bf16.xpose.msra.mxu0 0
        %1278 = vmatprep.subr.bf16.mxu0 0
        %1279 = vmatpush1.bf16.xpose.msra.mxu0 0
        %1280 = vmatprep.subr.bf16.mxu0 0
        %1281 = vmatpush1.bf16.xpose.msra.mxu0 0
        %1282 = vmatprep.subr.bf16.mxu0 0
        %1283 = vmatpush1.bf16.xpose.msra.mxu0 0
        %1284 = vmatprep.subr.bf16.mxu0 0
        %1285 = vmatpush1.bf16.xpose.msra.mxu0 0
        %1286 = vmatprep.subr.bf16.mxu0 0
        %1287 = vmatpush1.bf16.xpose.msra.mxu0 0
        %1288 = vmatprep.mubr.bf16.mxu0 0
        %1289 = vmatmul.mubr.bf16.gmra.mrb[0].mxu0 %v1251
        %v1290 = vpop.f32.mrb[0].mxu0
        %v1291 = vadd.f32 %v1085, %v1290
        %v1292 = vpop.f32.mrb[0].mxu0
        %v1293 = vpop.f32.mrb[0].mxu0
        %v1294 = vadd.f32 %v1088, %v1293
        %v1295 = vpop.f32.mrb[0].mxu0
        %1296 = vdwg.mxu0
        %1298 = vrot.lane.b32.xlu0 %v910, 64
        %v1299 = vpop.permute.xlu0 %1298
        %v1301 = vsel %vm990, %v770, 0
        %v1304 = vsel %vm990, %v1299, 0
        %1306 = vmatprep.subr.bf16.mxu0 0
        %1307 = vmatpush1.bf16.xpose.msra.mxu0 %v1304
        %1308 = vmatprep.subr.bf16.mxu0 0
        %1309 = vmatpush1.bf16.xpose.msra.mxu0 0
        %1310 = vmatprep.subr.bf16.mxu0 0
        %1311 = vmatpush1.bf16.xpose.msra.mxu0 0
        %1312 = vmatprep.subr.bf16.mxu0 0
        %1313 = vmatpush1.bf16.xpose.msra.mxu0 0
        %1314 = vmatprep.subr.bf16.mxu0 0
        %1315 = vmatpush1.bf16.xpose.msra.mxu0 0
        %1316 = vmatprep.subr.bf16.mxu0 0
        %1317 = vmatpush1.bf16.xpose.msra.mxu0 0
        %1318 = vmatprep.subr.bf16.mxu0 0
        %1319 = vmatpush1.bf16.xpose.msra.mxu0 0
        %1320 = vmatprep.subr.bf16.mxu0 0
        %1321 = vmatpush1.bf16.xpose.msra.mxu0 0
        %1322 = vmatprep.subr.bf16.mxu0 0
        %1323 = vmatpush1.bf16.xpose.msra.mxu0 0
        %1324 = vmatprep.subr.bf16.mxu0 0
        %1325 = vmatpush1.bf16.xpose.msra.mxu0 0
        %1326 = vmatprep.subr.bf16.mxu0 0
        %1327 = vmatpush1.bf16.xpose.msra.mxu0 0
        %1328 = vmatprep.subr.bf16.mxu0 0
        %1329 = vmatpush1.bf16.xpose.msra.mxu0 0
        %1330 = vmatprep.subr.bf16.mxu0 0
        %1331 = vmatpush1.bf16.xpose.msra.mxu0 0
        %1332 = vmatprep.subr.bf16.mxu0 0
        %1333 = vmatpush1.bf16.xpose.msra.mxu0 0
        %1334 = vmatprep.subr.bf16.mxu0 0
        %1335 = vmatpush1.bf16.xpose.msra.mxu0 0
        %1336 = vmatprep.subr.bf16.mxu0 0
        %1337 = vmatpush1.bf16.xpose.msra.mxu0 0
        %1338 = vmatprep.mubr.bf16.mxu0 0
        %1339 = vmatmul.mubr.bf16.gmra.mrb[0].mxu0 %v1301
        %v1340 = vpop.f32.mrb[0].mxu0
        %v1341 = vadd.f32 %v1138, %v1340
        %v1342 = vpop.f32.mrb[0].mxu0
        %v1343 = vpop.f32.mrb[0].mxu0
        %v1344 = vadd.f32 %v1141, %v1343
        %v1345 = vpop.f32.mrb[0].mxu0
        %1346 = vdwg.mxu0
        %1348 = vrot.lane.b32.xlu0 %v911, 64
        %v1349 = vpop.permute.xlu0 %1348
        %v1351 = vsel %vm990, %v771, 0
        %v1354 = vsel %vm990, %v1349, 0
        %1356 = vmatprep.subr.bf16.mxu0 0
        %1357 = vmatpush1.bf16.xpose.msra.mxu0 %v1354
        %1358 = vmatprep.subr.bf16.mxu0 0
        %1359 = vmatpush1.bf16.xpose.msra.mxu0 0
        %1360 = vmatprep.subr.bf16.mxu0 0
        %1361 = vmatpush1.bf16.xpose.msra.mxu0 0
        %1362 = vmatprep.subr.bf16.mxu0 0
        %1363 = vmatpush1.bf16.xpose.msra.mxu0 0
        %1364 = vmatprep.subr.bf16.mxu0 0
        %1365 = vmatpush1.bf16.xpose.msra.mxu0 0
        %1366 = vmatprep.subr.bf16.mxu0 0
        %1367 = vmatpush1.bf16.xpose.msra.mxu0 0
        %1368 = vmatprep.subr.bf16.mxu0 0
        %1369 = vmatpush1.bf16.xpose.msra.mxu0 0
        %1370 = vmatprep.subr.bf16.mxu0 0
        %1371 = vmatpush1.bf16.xpose.msra.mxu0 0
        %1372 = vmatprep.subr.bf16.mxu0 0
        %1373 = vmatpush1.bf16.xpose.msra.mxu0 0
        %1374 = vmatprep.subr.bf16.mxu0 0
        %1375 = vmatpush1.bf16.xpose.msra.mxu0 0
        %1376 = vmatprep.subr.bf16.mxu0 0
        %1377 = vmatpush1.bf16.xpose.msra.mxu0 0
        %1378 = vmatprep.subr.bf16.mxu0 0
        %1379 = vmatpush1.bf16.xpose.msra.mxu0 0
        %1380 = vmatprep.subr.bf16.mxu0 0
        %1381 = vmatpush1.bf16.xpose.msra.mxu0 0
        %1382 = vmatprep.subr.bf16.mxu0 0
        %1383 = vmatpush1.bf16.xpose.msra.mxu0 0
        %1384 = vmatprep.subr.bf16.mxu0 0
        %1385 = vmatpush1.bf16.xpose.msra.mxu0 0
        %1386 = vmatprep.subr.bf16.mxu0 0
        %1387 = vmatpush1.bf16.xpose.msra.mxu0 0
        %1388 = vmatprep.mubr.bf16.mxu0 0
        %1389 = vmatmul.mubr.bf16.gmra.mrb[0].mxu0 %v1351
        %v1390 = vpop.f32.mrb[0].mxu0
        %v1391 = vadd.f32 %v1191, %v1390
        %v1392 = vpop.f32.mrb[0].mxu0
        %v1393 = vpop.f32.mrb[0].mxu0
        %v1394 = vadd.f32 %v1194, %v1393
        %v1395 = vpop.f32.mrb[0].mxu0
        %1396 = vdwg.mxu0
        %v1397 = vsel %vm530, 1, 0
        %v1398 = vsel %vm531, 1, 0
        %vm1399 = vcmp.eq.s32.totalorder %v1397, 1
        %vm1400 = vcmp.eq.s32.totalorder %v1398, 1
        %v1401 = vsel %vm1399, %v1241, -1e+30
        %v1402 = vsel %vm1400, %v1244, -1e+30
        %v1403 = vsel %vm1399, %v1291, -1e+30
        %v1404 = vsel %vm1400, %v1294, -1e+30
        %v1405 = vsel %vm1399, %v1341, -1e+30
        %v1406 = vsel %vm1400, %v1344, -1e+30
        %v1407 = vsel %vm1399, %v1391, -1e+30
        %v1408 = vsel %vm1400, %v1394, -1e+30
        %vm1409 = vcmask 130048
        %v1410 = vsel %vm1409, %v1401, -inf
        %1411 = vmax.xlane.f32.xlu0 %v1410
        %v1412 = vpop.xlane.xlu0 %1411
        %v1413 = vsel %vm1409, %v1402, -inf
        %1414 = vmax.xlane.f32.xlu0 %v1413
        %v1415 = vpop.xlane.xlu0 %1414
        %v1416 = vsel %vm1409, %v1403, -inf
        %1417 = vmax.xlane.f32.xlu0 %v1416
        %v1418 = vpop.xlane.xlu0 %1417
        %v1419 = vsel %vm1409, %v1404, -inf
        %1420 = vmax.xlane.f32.xlu0 %v1419
        %v1421 = vpop.xlane.xlu0 %1420
        %v1422 = vsel %vm1409, %v1405, -inf
        %1423 = vmax.xlane.f32.xlu0 %v1422
        %v1424 = vpop.xlane.xlu0 %1423
        %v1425 = vsel %vm1409, %v1406, -inf
        %1426 = vmax.xlane.f32.xlu0 %v1425
        %v1427 = vpop.xlane.xlu0 %1426
        %v1428 = vsel %vm1409, %v1407, -inf
        %1429 = vmax.xlane.f32.xlu0 %v1428
        %v1430 = vpop.xlane.xlu0 %1429
        %v1431 = vsel %vm1409, %v1408, -inf
        %1432 = vmax.xlane.f32.xlu0 %v1431
        %v1433 = vpop.xlane.xlu0 %1432
        %v1434 = vsub.f32 %v1401, %v1412
        %v1435 = vsub.f32 %v1402, %v1415
        %v1436 = vsub.f32 %v1403, %v1418
        %v1437 = vsub.f32 %v1404, %v1421
        %v1438 = vsub.f32 %v1405, %v1424
        %v1439 = vsub.f32 %v1406, %v1427
        %v1440 = vsub.f32 %v1407, %v1430
        %v1441 = vsub.f32 %v1408, %v1433
        %v1442 = vmul.f32 %v1434, 1.442695
        %v1443 = vpow.pop %v1442
        %v1444 = vmul.f32 %v1435, 1.442695
        %v1445 = vpow.pop %v1444
        %v1446 = vmul.f32 %v1436, 1.442695
        %v1447 = vpow.pop %v1446
        %v1448 = vmul.f32 %v1437, 1.442695
        %v1449 = vpow.pop %v1448
        %v1450 = vmul.f32 %v1438, 1.442695
        %v1451 = vpow.pop %v1450
        %v1452 = vmul.f32 %v1439, 1.442695
        %v1453 = vpow.pop %v1452
        %v1454 = vmul.f32 %v1440, 1.442695
        %v1455 = vpow.pop %v1454
        %v1456 = vmul.f32 %v1441, 1.442695
        %v1457 = vpow.pop %v1456
        %v1458 = vsel %vm1409, %v1443, 0.0
        %1459 = vadd.xlane.f32.xlu0 %v1458
        %v1460 = vpop.xlane.xlu0 %1459
        %v1461 = vsel %vm1409, %v1445, 0.0
        %1462 = vadd.xlane.f32.xlu0 %v1461
        %v1463 = vpop.xlane.xlu0 %1462
        %v1464 = vsel %vm1409, %v1447, 0.0
        %1465 = vadd.xlane.f32.xlu0 %v1464
        %v1466 = vpop.xlane.xlu0 %1465
        %v1467 = vsel %vm1409, %v1449, 0.0
        %1468 = vadd.xlane.f32.xlu0 %v1467
        %v1469 = vpop.xlane.xlu0 %1468
        %v1470 = vsel %vm1409, %v1451, 0.0
        %1471 = vadd.xlane.f32.xlu0 %v1470
        %v1472 = vpop.xlane.xlu0 %1471
        %v1473 = vsel %vm1409, %v1453, 0.0
        %1474 = vadd.xlane.f32.xlu0 %v1473
        %v1475 = vpop.xlane.xlu0 %1474
        %v1476 = vsel %vm1409, %v1455, 0.0
        %1477 = vadd.xlane.f32.xlu0 %v1476
        %v1478 = vpop.xlane.xlu0 %1477
        %v1479 = vsel %vm1409, %v1457, 0.0
        %1480 = vadd.xlane.f32.xlu0 %v1479
        %v1481 = vpop.xlane.xlu0 %1480
        %v1482 = vpack.c.bf16 %v1445, %v1443
        %v1483 = vpack.c.bf16 %v1449, %v1447
        %v1484 = vpack.c.bf16 %v1453, %v1451
        %v1485 = vpack.c.bf16 %v1457, %v1455
        %v1486 = vpack.c.bf16 %v662, %v658
        %v1487 = vpack.c.bf16 %v689, %v687
        %v1488 = vpack.c.bf16 %v695, %v693
        %v1489 = vpack.c.bf16 %v701, %v699
        %v1491 = vsel %vm1409, %v1482, 0
        %1493 = vmatprep.subr.bf16.mxu0 0
        %1494 = vmatpush1.bf16.msra.mxu0 %v1486
        %1495 = vmatprep.subr.bf16.mxu0 0
        %1496 = vmatpush1.bf16.msra.mxu0 0
        %1497 = vmatprep.subr.bf16.mxu0 0
        %1498 = vmatpush1.bf16.msra.mxu0 0
        %1499 = vmatprep.subr.bf16.mxu0 0
        %1500 = vmatpush1.bf16.msra.mxu0 0
        %1501 = vmatprep.subr.bf16.mxu0 0
        %1502 = vmatpush1.bf16.msra.mxu0 0
        %1503 = vmatprep.subr.bf16.mxu0 0
        %1504 = vmatpush1.bf16.msra.mxu0 0
        %1505 = vmatprep.subr.bf16.mxu0 0
        %1506 = vmatpush1.bf16.msra.mxu0 0
        %1507 = vmatprep.subr.bf16.mxu0 0
        %1508 = vmatpush1.bf16.msra.mxu0 0
        %1509 = vmatprep.subr.bf16.mxu0 0
        %1510 = vmatpush1.bf16.msra.mxu0 0
        %1511 = vmatprep.subr.bf16.mxu0 0
        %1512 = vmatpush1.bf16.msra.mxu0 0
        %1513 = vmatprep.subr.bf16.mxu0 0
        %1514 = vmatpush1.bf16.msra.mxu0 0
        %1515 = vmatprep.subr.bf16.mxu0 0
        %1516 = vmatpush1.bf16.msra.mxu0 0
        %1517 = vmatprep.subr.bf16.mxu0 0
        %1518 = vmatpush1.bf16.msra.mxu0 0
        %1519 = vmatprep.subr.bf16.mxu0 0
        %1520 = vmatpush1.bf16.msra.mxu0 0
        %1521 = vmatprep.subr.bf16.mxu0 0
        %1522 = vmatpush1.bf16.msra.mxu0 0
        %1523 = vmatprep.subr.bf16.mxu0 0
        %1524 = vmatpush1.bf16.msra.mxu0 0
        %1525 = vmatprep.mubr.bf16.mxu0 0
        %1526 = vmatmul.mubr.bf16.gmra.mrb[0].mxu0 %v1491
        %v1527 = vpop.f32.mrb[0].mxu0
        %v1528 = vadd.f32 0.0, %v1527
        %v1529 = vpop.f32.mrb[0].mxu0
        %v1530 = vpop.f32.mrb[0].mxu0
        %v1531 = vadd.f32 0.0, %v1530
        %v1532 = vpop.f32.mrb[0].mxu0
        %1533 = vdwg.mxu0
        %v1535 = vsel %vm1409, %v1483, 0
        %1537 = vmatprep.subr.bf16.mxu0 0
        %1538 = vmatpush1.bf16.msra.mxu0 %v1487
        %1539 = vmatprep.subr.bf16.mxu0 0
        %1540 = vmatpush1.bf16.msra.mxu0 0
        %1541 = vmatprep.subr.bf16.mxu0 0
        %1542 = vmatpush1.bf16.msra.mxu0 0
        %1543 = vmatprep.subr.bf16.mxu0 0
        %1544 = vmatpush1.bf16.msra.mxu0 0
        %1545 = vmatprep.subr.bf16.mxu0 0
        %1546 = vmatpush1.bf16.msra.mxu0 0
        %1547 = vmatprep.subr.bf16.mxu0 0
        %1548 = vmatpush1.bf16.msra.mxu0 0
        %1549 = vmatprep.subr.bf16.mxu0 0
        %1550 = vmatpush1.bf16.msra.mxu0 0
        %1551 = vmatprep.subr.bf16.mxu0 0
        %1552 = vmatpush1.bf16.msra.mxu0 0
        %1553 = vmatprep.subr.bf16.mxu0 0
        %1554 = vmatpush1.bf16.msra.mxu0 0
        %1555 = vmatprep.subr.bf16.mxu0 0
        %1556 = vmatpush1.bf16.msra.mxu0 0
        %1557 = vmatprep.subr.bf16.mxu0 0
        %1558 = vmatpush1.bf16.msra.mxu0 0
        %1559 = vmatprep.subr.bf16.mxu0 0
        %1560 = vmatpush1.bf16.msra.mxu0 0
        %1561 = vmatprep.subr.bf16.mxu0 0
        %1562 = vmatpush1.bf16.msra.mxu0 0
        %1563 = vmatprep.subr.bf16.mxu0 0
        %1564 = vmatpush1.bf16.msra.mxu0 0
        %1565 = vmatprep.subr.bf16.mxu0 0
        %1566 = vmatpush1.bf16.msra.mxu0 0
        %1567 = vmatprep.subr.bf16.mxu0 0
        %1568 = vmatpush1.bf16.msra.mxu0 0
        %1569 = vmatprep.mubr.bf16.mxu0 0
        %1570 = vmatmul.mubr.bf16.gmra.mrb[0].mxu0 %v1535
        %v1571 = vpop.f32.mrb[0].mxu0
        %v1572 = vadd.f32 0.0, %v1571
        %v1573 = vpop.f32.mrb[0].mxu0
        %v1574 = vpop.f32.mrb[0].mxu0
        %v1575 = vadd.f32 0.0, %v1574
        %v1576 = vpop.f32.mrb[0].mxu0
        %1577 = vdwg.mxu0
        %v1579 = vsel %vm1409, %v1484, 0
        %1581 = vmatprep.subr.bf16.mxu0 0
        %1582 = vmatpush1.bf16.msra.mxu0 %v1488
        %1583 = vmatprep.subr.bf16.mxu0 0
        %1584 = vmatpush1.bf16.msra.mxu0 0
        %1585 = vmatprep.subr.bf16.mxu0 0
        %1586 = vmatpush1.bf16.msra.mxu0 0
        %1587 = vmatprep.subr.bf16.mxu0 0
        %1588 = vmatpush1.bf16.msra.mxu0 0
        %1589 = vmatprep.subr.bf16.mxu0 0
        %1590 = vmatpush1.bf16.msra.mxu0 0
        %1591 = vmatprep.subr.bf16.mxu0 0
        %1592 = vmatpush1.bf16.msra.mxu0 0
        %1593 = vmatprep.subr.bf16.mxu0 0
        %1594 = vmatpush1.bf16.msra.mxu0 0
        %1595 = vmatprep.subr.bf16.mxu0 0
        %1596 = vmatpush1.bf16.msra.mxu0 0
        %1597 = vmatprep.subr.bf16.mxu0 0
        %1598 = vmatpush1.bf16.msra.mxu0 0
        %1599 = vmatprep.subr.bf16.mxu0 0
        %1600 = vmatpush1.bf16.msra.mxu0 0
        %1601 = vmatprep.subr.bf16.mxu0 0
        %1602 = vmatpush1.bf16.msra.mxu0 0
        %1603 = vmatprep.subr.bf16.mxu0 0
        %1604 = vmatpush1.bf16.msra.mxu0 0
        %1605 = vmatprep.subr.bf16.mxu0 0
        %1606 = vmatpush1.bf16.msra.mxu0 0
        %1607 = vmatprep.subr.bf16.mxu0 0
        %1608 = vmatpush1.bf16.msra.mxu0 0
        %1609 = vmatprep.subr.bf16.mxu0 0
        %1610 = vmatpush1.bf16.msra.mxu0 0
        %1611 = vmatprep.subr.bf16.mxu0 0
        %1612 = vmatpush1.bf16.msra.mxu0 0
        %1613 = vmatprep.mubr.bf16.mxu0 0
        %1614 = vmatmul.mubr.bf16.gmra.mrb[0].mxu0 %v1579
        %v1615 = vpop.f32.mrb[0].mxu0
        %v1616 = vadd.f32 0.0, %v1615
        %v1617 = vpop.f32.mrb[0].mxu0
        %v1618 = vpop.f32.mrb[0].mxu0
        %v1619 = vadd.f32 0.0, %v1618
        %v1620 = vpop.f32.mrb[0].mxu0
        %1621 = vdwg.mxu0
        %v1623 = vsel %vm1409, %v1485, 0
        %1625 = vmatprep.subr.bf16.mxu0 0
        %1626 = vmatpush1.bf16.msra.mxu0 %v1489
        %1627 = vmatprep.subr.bf16.mxu0 0
        %1628 = vmatpush1.bf16.msra.mxu0 0
        %1629 = vmatprep.subr.bf16.mxu0 0
        %1630 = vmatpush1.bf16.msra.mxu0 0
        %1631 = vmatprep.subr.bf16.mxu0 0
        %1632 = vmatpush1.bf16.msra.mxu0 0
        %1633 = vmatprep.subr.bf16.mxu0 0
        %1634 = vmatpush1.bf16.msra.mxu0 0
        %1635 = vmatprep.subr.bf16.mxu0 0
        %1636 = vmatpush1.bf16.msra.mxu0 0
        %1637 = vmatprep.subr.bf16.mxu0 0
        %1638 = vmatpush1.bf16.msra.mxu0 0
        %1639 = vmatprep.subr.bf16.mxu0 0
        %1640 = vmatpush1.bf16.msra.mxu0 0
        %1641 = vmatprep.subr.bf16.mxu0 0
        %1642 = vmatpush1.bf16.msra.mxu0 0
        %1643 = vmatprep.subr.bf16.mxu0 0
        %1644 = vmatpush1.bf16.msra.mxu0 0
        %1645 = vmatprep.subr.bf16.mxu0 0
        %1646 = vmatpush1.bf16.msra.mxu0 0
        %1647 = vmatprep.subr.bf16.mxu0 0
        %1648 = vmatpush1.bf16.msra.mxu0 0
        %1649 = vmatprep.subr.bf16.mxu0 0
        %1650 = vmatpush1.bf16.msra.mxu0 0
        %1651 = vmatprep.subr.bf16.mxu0 0
        %1652 = vmatpush1.bf16.msra.mxu0 0
        %1653 = vmatprep.subr.bf16.mxu0 0
        %1654 = vmatpush1.bf16.msra.mxu0 0
        %1655 = vmatprep.subr.bf16.mxu0 0
        %1656 = vmatpush1.bf16.msra.mxu0 0
        %1657 = vmatprep.mubr.bf16.mxu0 0
        %1658 = vmatmul.mubr.bf16.gmra.mrb[0].mxu0 %v1623
        %v1659 = vpop.f32.mrb[0].mxu0
        %v1660 = vadd.f32 0.0, %v1659
        %v1661 = vpop.f32.mrb[0].mxu0
        %v1662 = vpop.f32.mrb[0].mxu0
        %v1663 = vadd.f32 0.0, %v1662
        %v1664 = vpop.f32.mrb[0].mxu0
        %1665 = vdwg.mxu0
        %v1666 = vrcp.pop %v1460
        %v1667 = vrcp.pop %v1463
        %v1668 = vrcp.pop %v1466
        %v1669 = vrcp.pop %v1469
        %v1670 = vrcp.pop %v1472
        %v1671 = vrcp.pop %v1475
        %v1672 = vrcp.pop %v1478
        %v1673 = vrcp.pop %v1481
        %v1674 = vmul.f32 %v1528, %v1666
        %v1675 = vmul.f32 %v1531, %v1667
        %v1676 = vmul.f32 %v1572, %v1668
        %v1677 = vmul.f32 %v1575, %v1669
        %v1678 = vmul.f32 %v1616, %v1670
        %v1679 = vmul.f32 %v1619, %v1671
        %v1680 = vmul.f32 %v1660, %v1672
        %v1681 = vmul.f32 %v1663, %v1673
        %v1682 = vpack.c.bf16 %v1675, %v1674
        %v1683 = vld [vmem:[%s6] sm:$0xf]
        %v1684 = vld [vmem:[%s6 + $0x4] sm:$0xf]
        %v1685 = vpack.c.bf16 %v1677, %v1676
        %s1686 = scalar_lea.vmem %s6, 8
        %v1687 = vld [vmem:[%s1686] sm:$0xf]
        %v1688 = vld [vmem:[%s1686 + $0x4] sm:$0xf]
        %v1691 = vunpack.c.l.b16 %v1687
        %v1692 = vunpack.c.l.b16 %v1688
        %v1693 = vpack.c.b16 %v1692, %v1691
        %v1696 = vsel %vm1409, %v1685, 0
        %1698 = vmatprep.subr.bf16.mxu0 0
        %1699 = vmatpush1.bf16.msra.mxu0 %v1693
        %1700 = vmatprep.subr.bf16.mxu0 0
        %1701 = vmatpush1.bf16.msra.mxu0 0
        %1702 = vmatprep.subr.bf16.mxu0 0
        %1703 = vmatpush1.bf16.msra.mxu0 0
        %1704 = vmatprep.subr.bf16.mxu0 0
        %1705 = vmatpush1.bf16.msra.mxu0 0
        %1706 = vmatprep.subr.bf16.mxu0 0
        %1707 = vmatpush1.bf16.msra.mxu0 0
        %1708 = vmatprep.subr.bf16.mxu0 0
        %1709 = vmatpush1.bf16.msra.mxu0 0
        %1710 = vmatprep.subr.bf16.mxu0 0
        %1711 = vmatpush1.bf16.msra.mxu0 0
        %1712 = vmatprep.subr.bf16.mxu0 0
        %1713 = vmatpush1.bf16.msra.mxu0 0
        %1714 = vmatprep.subr.bf16.mxu0 0
        %1715 = vmatpush1.bf16.msra.mxu0 0
        %1716 = vmatprep.subr.bf16.mxu0 0
        %1717 = vmatpush1.bf16.msra.mxu0 0
        %1718 = vmatprep.subr.bf16.mxu0 0
        %1719 = vmatpush1.bf16.msra.mxu0 0
        %1720 = vmatprep.subr.bf16.mxu0 0
        %1721 = vmatpush1.bf16.msra.mxu0 0
        %1722 = vmatprep.subr.bf16.mxu0 0
        %1723 = vmatpush1.bf16.msra.mxu0 0
        %1724 = vmatprep.subr.bf16.mxu0 0
        %1725 = vmatpush1.bf16.msra.mxu0 0
        %1726 = vmatprep.subr.bf16.mxu0 0
        %1727 = vmatpush1.bf16.msra.mxu0 0
        %1728 = vmatprep.subr.bf16.mxu0 0
        %1729 = vmatpush1.bf16.msra.mxu0 0
        %1730 = vmatprep.mubr.bf16.mxu0 0
        %1731 = vmatmul.mubr.bf16.gmra.mrb[0].mxu0 %v1696
        %v1732 = vpop.f32.mrb[0].mxu0
        %v1733 = vadd.f32 0.0, %v1732
        %v1734 = vpop.f32.mrb[0].mxu0
        %v1735 = vpop.f32.mrb[0].mxu0
        %v1736 = vadd.f32 0.0, %v1735
        %v1737 = vpop.f32.mrb[0].mxu0
        %1738 = vdwg.mxu0
        %v1741 = vunpack.c.l.b16 %v1683
        %v1742 = vunpack.c.l.b16 %v1684
        %v1743 = vpack.c.b16 %v1742, %v1741
        %v1746 = vsel %vm1409, %v1682, 0
        %1748 = vmatprep.subr.bf16.mxu0 0
        %1749 = vmatpush1.bf16.msra.mxu0 %v1743
        %1750 = vmatprep.subr.bf16.mxu0 0
        %1751 = vmatpush1.bf16.msra.mxu0 0
        %1752 = vmatprep.subr.bf16.mxu0 0
        %1753 = vmatpush1.bf16.msra.mxu0 0
        %1754 = vmatprep.subr.bf16.mxu0 0
        %1755 = vmatpush1.bf16.msra.mxu0 0
        %1756 = vmatprep.subr.bf16.mxu0 0
        %1757 = vmatpush1.bf16.msra.mxu0 0
        %1758 = vmatprep.subr.bf16.mxu0 0
        %1759 = vmatpush1.bf16.msra.mxu0 0
        %1760 = vmatprep.subr.bf16.mxu0 0
        %1761 = vmatpush1.bf16.msra.mxu0 0
        %1762 = vmatprep.subr.bf16.mxu0 0
        %1763 = vmatpush1.bf16.msra.mxu0 0
        %1764 = vmatprep.subr.bf16.mxu0 0
        %1765 = vmatpush1.bf16.msra.mxu0 0
        %1766 = vmatprep.subr.bf16.mxu0 0
        %1767 = vmatpush1.bf16.msra.mxu0 0
        %1768 = vmatprep.subr.bf16.mxu0 0
        %1769 = vmatpush1.bf16.msra.mxu0 0
        %1770 = vmatprep.subr.bf16.mxu0 0
        %1771 = vmatpush1.bf16.msra.mxu0 0
        %1772 = vmatprep.subr.bf16.mxu0 0
        %1773 = vmatpush1.bf16.msra.mxu0 0
        %1774 = vmatprep.subr.bf16.mxu0 0
        %1775 = vmatpush1.bf16.msra.mxu0 0
        %1776 = vmatprep.subr.bf16.mxu0 0
        %1777 = vmatpush1.bf16.msra.mxu0 0
        %1778 = vmatprep.subr.bf16.mxu0 0
        %1779 = vmatpush1.bf16.msra.mxu0 0
        %1780 = vmatprep.mubr.bf16.mxu0 0
        %1781 = vmatmul.mubr.bf16.gmra.mrb[0].mxu0 %v1746
        %v1782 = vpop.f32.mrb[0].mxu0
        %v1783 = vadd.f32 %v1733, %v1782
        %v1784 = vpop.f32.mrb[0].mxu0
        %v1785 = vpop.f32.mrb[0].mxu0
        %v1786 = vadd.f32 %v1736, %v1785
        %v1787 = vpop.f32.mrb[0].mxu0
        %1788 = vdwg.mxu0
        %v1789 = vpack.c.bf16 %v1679, %v1678
        %s1790 = scalar_lea.vmem %s6, 16
        %v1791 = vld [vmem:[%s1790] sm:$0xf]
        %v1792 = vld [vmem:[%s1790 + $0x4] sm:$0xf]
        %v1795 = vunpack.c.l.b16 %v1791
        %v1796 = vunpack.c.l.b16 %v1792
        %v1797 = vpack.c.b16 %v1796, %v1795
        %v1800 = vsel %vm1409, %v1789, 0
        %1802 = vmatprep.subr.bf16.mxu0 0
        %1803 = vmatpush1.bf16.msra.mxu0 %v1797
        %1804 = vmatprep.subr.bf16.mxu0 0
        %1805 = vmatpush1.bf16.msra.mxu0 0
        %1806 = vmatprep.subr.bf16.mxu0 0
        %1807 = vmatpush1.bf16.msra.mxu0 0
        %1808 = vmatprep.subr.bf16.mxu0 0
        %1809 = vmatpush1.bf16.msra.mxu0 0
        %1810 = vmatprep.subr.bf16.mxu0 0
        %1811 = vmatpush1.bf16.msra.mxu0 0
        %1812 = vmatprep.subr.bf16.mxu0 0
        %1813 = vmatpush1.bf16.msra.mxu0 0
        %1814 = vmatprep.subr.bf16.mxu0 0
        %1815 = vmatpush1.bf16.msra.mxu0 0
        %1816 = vmatprep.subr.bf16.mxu0 0
        %1817 = vmatpush1.bf16.msra.mxu0 0
        %1818 = vmatprep.subr.bf16.mxu0 0
        %1819 = vmatpush1.bf16.msra.mxu0 0
        %1820 = vmatprep.subr.bf16.mxu0 0
        %1821 = vmatpush1.bf16.msra.mxu0 0
        %1822 = vmatprep.subr.bf16.mxu0 0
        %1823 = vmatpush1.bf16.msra.mxu0 0
        %1824 = vmatprep.subr.bf16.mxu0 0
        %1825 = vmatpush1.bf16.msra.mxu0 0
        %1826 = vmatprep.subr.bf16.mxu0 0
        %1827 = vmatpush1.bf16.msra.mxu0 0
        %1828 = vmatprep.subr.bf16.mxu0 0
        %1829 = vmatpush1.bf16.msra.mxu0 0
        %1830 = vmatprep.subr.bf16.mxu0 0
        %1831 = vmatpush1.bf16.msra.mxu0 0
        %1832 = vmatprep.subr.bf16.mxu0 0
        %1833 = vmatpush1.bf16.msra.mxu0 0
        %1834 = vmatprep.mubr.bf16.mxu0 0
        %1835 = vmatmul.mubr.bf16.gmra.mrb[0].mxu0 %v1800
        %v1836 = vpop.f32.mrb[0].mxu0
        %v1837 = vadd.f32 0.0, %v1836
        %v1838 = vpop.f32.mrb[0].mxu0
        %v1839 = vpop.f32.mrb[0].mxu0
        %v1840 = vadd.f32 0.0, %v1839
        %v1841 = vpop.f32.mrb[0].mxu0
        %1842 = vdwg.mxu0
        %v1843 = vadd.f32 %v1783, %v1837
        %v1844 = vadd.f32 %v1786, %v1840
        %v1845 = vpack.c.bf16 %v1681, %v1680
        %s1846 = scalar_lea.vmem %s6, 24
        %v1847 = vld [vmem:[%s1846] sm:$0xf]
        %v1848 = vld [vmem:[%s1846 + $0x4] sm:$0xf]
        %v1851 = vunpack.c.l.b16 %v1847
        %v1852 = vunpack.c.l.b16 %v1848
        %v1853 = vpack.c.b16 %v1852, %v1851
        %v1856 = vsel %vm1409, %v1845, 0
        %1858 = vmatprep.subr.bf16.mxu0 0
        %1859 = vmatpush1.bf16.msra.mxu0 %v1853
        %1860 = vmatprep.subr.bf16.mxu0 0
        %1861 = vmatpush1.bf16.msra.mxu0 0
        %1862 = vmatprep.subr.bf16.mxu0 0
        %1863 = vmatpush1.bf16.msra.mxu0 0
        %1864 = vmatprep.subr.bf16.mxu0 0
        %1865 = vmatpush1.bf16.msra.mxu0 0
        %1866 = vmatprep.subr.bf16.mxu0 0
        %1867 = vmatpush1.bf16.msra.mxu0 0
        %1868 = vmatprep.subr.bf16.mxu0 0
        %1869 = vmatpush1.bf16.msra.mxu0 0
        %1870 = vmatprep.subr.bf16.mxu0 0
        %1871 = vmatpush1.bf16.msra.mxu0 0
        %1872 = vmatprep.subr.bf16.mxu0 0
        %1873 = vmatpush1.bf16.msra.mxu0 0
        %1874 = vmatprep.subr.bf16.mxu0 0
        %1875 = vmatpush1.bf16.msra.mxu0 0
        %1876 = vmatprep.subr.bf16.mxu0 0
        %1877 = vmatpush1.bf16.msra.mxu0 0
        %1878 = vmatprep.subr.bf16.mxu0 0
        %1879 = vmatpush1.bf16.msra.mxu0 0
        %1880 = vmatprep.subr.bf16.mxu0 0
        %1881 = vmatpush1.bf16.msra.mxu0 0
        %1882 = vmatprep.subr.bf16.mxu0 0
        %1883 = vmatpush1.bf16.msra.mxu0 0
        %1884 = vmatprep.subr.bf16.mxu0 0
        %1885 = vmatpush1.bf16.msra.mxu0 0
        %1886 = vmatprep.subr.bf16.mxu0 0
        %1887 = vmatpush1.bf16.msra.mxu0 0
        %1888 = vmatprep.subr.bf16.mxu0 0
        %1889 = vmatpush1.bf16.msra.mxu0 0
        %1890 = vmatprep.mubr.bf16.mxu0 0
        %1891 = vmatmul.mubr.bf16.gmra.mrb[0].mxu0 %v1856
        %v1892 = vpop.f32.mrb[0].mxu0
        %v1893 = vadd.f32 0.0, %v1892
        %v1894 = vpop.f32.mrb[0].mxu0
        %v1895 = vpop.f32.mrb[0].mxu0
        %v1896 = vadd.f32 0.0, %v1895
        %v1897 = vpop.f32.mrb[0].mxu0
        %1898 = vdwg.mxu0
        %v1899 = vadd.f32 %v1843, %v1893
        %v1900 = vadd.f32 %v1844, %v1896
        %v1901 = vadd.f32 %v519, %v1899
        %v1902 = vadd.f32 %v520, %v1900
        %v1903 = vsel %vm532, %v1901, 0.0
        %1904 = vadd.xlane.f32.xlu0 %v1903
        %v1905 = vpop.xlane.xlu0 %1904
        %v1906 = vsel %vm532, %v1902, 0.0
        %1907 = vadd.xlane.f32.xlu0 %v1906
        %v1908 = vpop.xlane.xlu0 %1907
        %v1909 = vmul.f32 %v1905, %v539
        %v1910 = vmul.f32 %v1908, %v539
        %v1911 = vsub.f32 %v1901, %v1909
        %v1912 = vsub.f32 %v1902, %v1910
        %v1913 = vmul.f32 %v1911, %v1911
        %v1914 = vmul.f32 %v1912, %v1912
        %v1915 = vsel %vm532, %v1913, 0.0
        %1916 = vadd.xlane.f32.xlu0 %v1915
        %v1917 = vpop.xlane.xlu0 %1916
        %v1918 = vsel %vm532, %v1914, 0.0
        %1919 = vadd.xlane.f32.xlu0 %v1918
        %v1920 = vpop.xlane.xlu0 %1919
        %v1921 = vmul.f32 %v1917, %v539
        %v1922 = vmul.f32 %v1920, %v539
        %v1923 = vadd.f32 %v1921, 1e-05
        %v1924 = vadd.f32 %v1922, 1e-05
        %v1925 = vrsqrt.pop %v1923
        %v1926 = vrsqrt.pop %v1924
        %v1927 = vmul.f32 %v1911, %v1925
        %v1928 = vmul.f32 %v1912, %v1926
        %v1929 = vld [vmem:[%s7] sm:$0x1]
        %v1931 = vlaneseq
        %v1932 = vshrl.u32 %v1931, 7
        %v1933 = vsub.s32 0, %v1932
        %v1934 = vrot.slane %v1929, %v1933
        %v1936 = vmul.f32 %v1927, %v1934
        %v1937 = vmul.f32 %v1928, %v1934
        %v1938 = vpack.c.bf16 %v1937, %v1936
        %v1939 = vld [vmem:[%s8] sm:$0xff]
        %v1940 = vld [vmem:[%s8 + $0x8] sm:$0xff]
        %v1941 = vld [vmem:[%s8 + $0x10] sm:$0xff]
        %v1942 = vld [vmem:[%s8 + $0x18] sm:$0xff]
        %v1943 = vld [vmem:[%s8 + $0x20] sm:$0xff]
        %v1944 = vld [vmem:[%s8 + $0x28] sm:$0xff]
        %v1945 = vld [vmem:[%s8 + $0x30] sm:$0xff]
        %v1946 = vld [vmem:[%s8 + $0x38] sm:$0xff]
        %v1947 = vld [vmem:[%s9] sm:$0x3]
        %v1949 = vlaneseq
        %v1950 = vshrl.u32 %v1949, 7
        %v1951 = vsub.s32 0, %v1950
        %v1952 = vrot.slane %v1947, %v1951
        %v1953 = vlaneseq
        %v1954 = vshrl.u32 %v1953, 7
        %v1955 = vsub.s32 1, %v1954
        %v1956 = vrot.slane %v1947, %v1955
        %v1967 = vunpack.c.l.b16 %v1939
        %v1968 = vunpack.c.h.b16 %v1939
        %v1969 = vunpack.c.l.b16 %v1940
        %v1970 = vunpack.c.h.b16 %v1940
        %v1971 = vunpack.c.l.b16 %v1941
        %v1972 = vunpack.c.h.b16 %v1941
        %v1973 = vunpack.c.l.b16 %v1942
        %v1974 = vunpack.c.h.b16 %v1942
        %v1975 = vunpack.c.l.b16 %v1943
        %v1976 = vunpack.c.h.b16 %v1943
        %v1977 = vunpack.c.l.b16 %v1944
        %v1978 = vunpack.c.h.b16 %v1944
        %v1979 = vunpack.c.l.b16 %v1945
        %v1980 = vunpack.c.h.b16 %v1945
        %v1981 = vunpack.c.l.b16 %v1946
        %v1982 = vunpack.c.h.b16 %v1946
        %v1983 = vpack.c.b16 %v1969, %v1967
        %v1984 = vpack.c.b16 %v1970, %v1968
        %v1985 = vpack.c.b16 %v1973, %v1971
        %v1986 = vpack.c.b16 %v1974, %v1972
        %v1987 = vpack.c.b16 %v1977, %v1975
        %v1988 = vpack.c.b16 %v1978, %v1976
        %v1989 = vpack.c.b16 %v1981, %v1979
        %v1990 = vpack.c.b16 %v1982, %v1980
        %v2000 = vsel %vm532, %v1938, 0
        %2002 = vmatprep.subr.bf16.mxu0 %v1984
        %2003 = vmatpush1.bf16.msra.mxu0 %v1983
        %2004 = vmatprep.subr.bf16.mxu0 %v1986
        %2005 = vmatpush1.bf16.msra.mxu0 %v1985
        %2006 = vmatprep.subr.bf16.mxu0 %v1988
        %2007 = vmatpush1.bf16.msra.mxu0 %v1987
        %2008 = vmatprep.subr.bf16.mxu0 %v1990
        %2009 = vmatpush1.bf16.msra.mxu0 %v1989
        %2010 = vmatprep.subr.bf16.mxu0 0
        %2011 = vmatpush1.bf16.msra.mxu0 0
        %2012 = vmatprep.subr.bf16.mxu0 0
        %2013 = vmatpush1.bf16.msra.mxu0 0
        %2014 = vmatprep.subr.bf16.mxu0 0
        %2015 = vmatpush1.bf16.msra.mxu0 0
        %2016 = vmatprep.subr.bf16.mxu0 0
        %2017 = vmatpush1.bf16.msra.mxu0 0
        %2018 = vmatprep.subr.bf16.mxu0 0
        %2019 = vmatpush1.bf16.msra.mxu0 0
        %2020 = vmatprep.subr.bf16.mxu0 0
        %2021 = vmatpush1.bf16.msra.mxu0 0
        %2022 = vmatprep.subr.bf16.mxu0 0
        %2023 = vmatpush1.bf16.msra.mxu0 0
        %2024 = vmatprep.subr.bf16.mxu0 0
        %2025 = vmatpush1.bf16.msra.mxu0 0
        %2026 = vmatprep.subr.bf16.mxu0 0
        %2027 = vmatpush1.bf16.msra.mxu0 0
        %2028 = vmatprep.subr.bf16.mxu0 0
        %2029 = vmatpush1.bf16.msra.mxu0 0
        %2030 = vmatprep.subr.bf16.mxu0 0
        %2031 = vmatpush1.bf16.msra.mxu0 0
        %2032 = vmatprep.subr.bf16.mxu0 0
        %2033 = vmatpush1.bf16.msra.mxu0 0
        %2034 = vmatprep.mubr.bf16.mxu0 0
        %2035 = vmatmul.mubr.bf16.gmra.mrb[0].mxu0 %v2000
        %v2036 = vpop.f32.mrb[0].mxu0
        %v2037 = vadd.f32 %v1952, %v2036
        %v2038 = vpop.f32.mrb[0].mxu0
        %v2039 = vadd.f32 %v1956, %v2038
        %v2040 = vpop.f32.mrb[0].mxu0
        %v2041 = vadd.f32 %v1952, %v2040
        %v2042 = vpop.f32.mrb[0].mxu0
        %v2043 = vadd.f32 %v1956, %v2042
        %2044 = vdwg.mxu0
        %v2045 = vmul.f32 %v2037, 0.5
        %v2046 = vmul.f32 %v2039, 0.5
        %v2047 = vmul.f32 %v2041, 0.5
        %v2048 = vmul.f32 %v2043, 0.5
        %v2049 = vmul.f32 %v2037, 0.044715
        %v2050 = vmul.f32 %v2039, 0.044715
        %v2051 = vmul.f32 %v2041, 0.044715
        %v2052 = vmul.f32 %v2043, 0.044715
        %v2053 = vmul.f32 %v2049, %v2037
        %v2054 = vmul.f32 %v2050, %v2039
        %v2055 = vmul.f32 %v2051, %v2041
        %v2056 = vmul.f32 %v2052, %v2043
        %v2057 = vmul.f32 %v2053, %v2037
        %v2058 = vmul.f32 %v2054, %v2039
        %v2059 = vmul.f32 %v2055, %v2041
        %v2060 = vmul.f32 %v2056, %v2043
        %v2061 = vadd.f32 %v2037, %v2057
        %v2062 = vadd.f32 %v2039, %v2058
        %v2063 = vadd.f32 %v2041, %v2059
        %v2064 = vadd.f32 %v2043, %v2060
        %v2065 = vmul.f32 %v2061, 0.7978846
        %v2066 = vmul.f32 %v2062, 0.7978846
        %v2067 = vmul.f32 %v2063, 0.7978846
        %v2068 = vmul.f32 %v2064, 0.7978846
        %v2069 = vtanh.pop %v2065
        %v2070 = vtanh.pop %v2066
        %v2071 = vtanh.pop %v2067
        %v2072 = vtanh.pop %v2068
        %v2073 = vadd.f32 %v2069, 1.0
        %v2074 = vadd.f32 %v2070, 1.0
        %v2075 = vadd.f32 %v2071, 1.0
        %v2076 = vadd.f32 %v2072, 1.0
        %v2077 = vmul.f32 %v2045, %v2073
        %v2078 = vmul.f32 %v2046, %v2074
        %v2079 = vmul.f32 %v2047, %v2075
        %v2080 = vmul.f32 %v2048, %v2076
        %v2081 = vpack.c.bf16 %v2079, %v2077
        %v2082 = vpack.c.bf16 %v2080, %v2078
        %v2083 = vld [vmem:[%s10] sm:$0xf]
        %v2084 = vld [vmem:[%s10 + $0x4] sm:$0xf]
        %v2085 = vld [vmem:[%s10 + $0x8] sm:$0xf]
        %v2086 = vld [vmem:[%s10 + $0xc] sm:$0xf]
        %v2087 = vld [vmem:[%s10 + $0x10] sm:$0xf]
        %v2088 = vld [vmem:[%s10 + $0x14] sm:$0xf]
        %v2089 = vld [vmem:[%s10 + $0x18] sm:$0xf]
        %v2090 = vld [vmem:[%s10 + $0x1c] sm:$0xf]
        %v2091 = vld [vmem:[%s10 + $0x20] sm:$0xf]
        %v2092 = vld [vmem:[%s10 + $0x24] sm:$0xf]
        %v2093 = vld [vmem:[%s10 + $0x28] sm:$0xf]
        %v2094 = vld [vmem:[%s10 + $0x2c] sm:$0xf]
        %v2095 = vld [vmem:[%s10 + $0x30] sm:$0xf]
        %v2096 = vld [vmem:[%s10 + $0x34] sm:$0xf]
        %v2097 = vld [vmem:[%s10 + $0x38] sm:$0xf]
        %v2098 = vld [vmem:[%s10 + $0x3c] sm:$0xf]
        %v2099 = vld [vmem:[%s10 + $0x40] sm:$0xf]
        %v2100 = vld [vmem:[%s10 + $0x44] sm:$0xf]
        %v2101 = vld [vmem:[%s10 + $0x48] sm:$0xf]
        %v2102 = vld [vmem:[%s10 + $0x4c] sm:$0xf]
        %v2103 = vld [vmem:[%s10 + $0x50] sm:$0xf]
        %v2104 = vld [vmem:[%s10 + $0x54] sm:$0xf]
        %v2105 = vld [vmem:[%s10 + $0x58] sm:$0xf]
        %v2106 = vld [vmem:[%s10 + $0x5c] sm:$0xf]
        %v2107 = vld [vmem:[%s10 + $0x60] sm:$0xf]
        %v2108 = vld [vmem:[%s10 + $0x64] sm:$0xf]
        %v2109 = vld [vmem:[%s10 + $0x68] sm:$0xf]
        %v2110 = vld [vmem:[%s10 + $0x6c] sm:$0xf]
        %v2111 = vld [vmem:[%s10 + $0x70] sm:$0xf]
        %v2112 = vld [vmem:[%s10 + $0x74] sm:$0xf]
        %v2113 = vld [vmem:[%s10 + $0x78] sm:$0xf]
        %v2114 = vld [vmem:[%s10 + $0x7c] sm:$0xf]
        %v2115 = vld [vmem:[%s11] sm:$0x1]
        %v2117 = vlaneseq
        %v2118 = vshrl.u32 %v2117, 7
        %v2119 = vsub.s32 0, %v2118
        %v2120 = vrot.slane %v2115, %v2119
        %v2154 = vunpack.c.l.b16 %v2083
        %v2155 = vunpack.c.l.b16 %v2084
        %v2156 = vunpack.c.l.b16 %v2085
        %v2157 = vunpack.c.l.b16 %v2086
        %v2158 = vunpack.c.l.b16 %v2087
        %v2159 = vunpack.c.l.b16 %v2088
        %v2160 = vunpack.c.l.b16 %v2089
        %v2161 = vunpack.c.l.b16 %v2090
        %v2162 = vunpack.c.l.b16 %v2091
        %v2163 = vunpack.c.l.b16 %v2092
        %v2164 = vunpack.c.l.b16 %v2093
        %v2165 = vunpack.c.l.b16 %v2094
        %v2166 = vunpack.c.l.b16 %v2095
        %v2167 = vunpack.c.l.b16 %v2096
        %v2168 = vunpack.c.l.b16 %v2097
        %v2169 = vunpack.c.l.b16 %v2098
        %v2170 = vunpack.c.l.b16 %v2099
        %v2171 = vunpack.c.l.b16 %v2100
        %v2172 = vunpack.c.l.b16 %v2101
        %v2173 = vunpack.c.l.b16 %v2102
        %v2174 = vunpack.c.l.b16 %v2103
        %v2175 = vunpack.c.l.b16 %v2104
        %v2176 = vunpack.c.l.b16 %v2105
        %v2177 = vunpack.c.l.b16 %v2106
        %v2178 = vunpack.c.l.b16 %v2107
        %v2179 = vunpack.c.l.b16 %v2108
        %v2180 = vunpack.c.l.b16 %v2109
        %v2181 = vunpack.c.l.b16 %v2110
        %v2182 = vunpack.c.l.b16 %v2111
        %v2183 = vunpack.c.l.b16 %v2112
        %v2184 = vunpack.c.l.b16 %v2113
        %v2185 = vunpack.c.l.b16 %v2114
        %v2186 = vpack.c.b16 %v2155, %v2154
        %v2187 = vpack.c.b16 %v2157, %v2156
        %v2188 = vpack.c.b16 %v2159, %v2158
        %v2189 = vpack.c.b16 %v2161, %v2160
        %v2190 = vpack.c.b16 %v2163, %v2162
        %v2191 = vpack.c.b16 %v2165, %v2164
        %v2192 = vpack.c.b16 %v2167, %v2166
        %v2193 = vpack.c.b16 %v2169, %v2168
        %v2194 = vpack.c.b16 %v2171, %v2170
        %v2195 = vpack.c.b16 %v2173, %v2172
        %v2196 = vpack.c.b16 %v2175, %v2174
        %v2197 = vpack.c.b16 %v2177, %v2176
        %v2198 = vpack.c.b16 %v2179, %v2178
        %v2199 = vpack.c.b16 %v2181, %v2180
        %v2200 = vpack.c.b16 %v2183, %v2182
        %v2201 = vpack.c.b16 %v2185, %v2184
        %2218 = vmatprep.subr.bf16.mxu0 0
        %2219 = vmatpush1.bf16.msra.mxu0 %v2186
        %2220 = vmatprep.subr.bf16.mxu0 0
        %2221 = vmatpush1.bf16.msra.mxu0 %v2187
        %2222 = vmatprep.subr.bf16.mxu0 0
        %2223 = vmatpush1.bf16.msra.mxu0 %v2188
        %2224 = vmatprep.subr.bf16.mxu0 0
        %2225 = vmatpush1.bf16.msra.mxu0 %v2189
        %2226 = vmatprep.subr.bf16.mxu0 0
        %2227 = vmatpush1.bf16.msra.mxu0 %v2190
        %2228 = vmatprep.subr.bf16.mxu0 0
        %2229 = vmatpush1.bf16.msra.mxu0 %v2191
        %2230 = vmatprep.subr.bf16.mxu0 0
        %2231 = vmatpush1.bf16.msra.mxu0 %v2192
        %2232 = vmatprep.subr.bf16.mxu0 0
        %2233 = vmatpush1.bf16.msra.mxu0 %v2193
        %2234 = vmatprep.subr.bf16.mxu0 0
        %2235 = vmatpush1.bf16.msra.mxu0 %v2194
        %2236 = vmatprep.subr.bf16.mxu0 0
        %2237 = vmatpush1.bf16.msra.mxu0 %v2195
        %2238 = vmatprep.subr.bf16.mxu0 0
        %2239 = vmatpush1.bf16.msra.mxu0 %v2196
        %2240 = vmatprep.subr.bf16.mxu0 0
        %2241 = vmatpush1.bf16.msra.mxu0 %v2197
        %2242 = vmatprep.subr.bf16.mxu0 0
        %2243 = vmatpush1.bf16.msra.mxu0 %v2198
        %2244 = vmatprep.subr.bf16.mxu0 0
        %2245 = vmatpush1.bf16.msra.mxu0 %v2199
        %2246 = vmatprep.subr.bf16.mxu0 0
        %2247 = vmatpush1.bf16.msra.mxu0 %v2200
        %2248 = vmatprep.subr.bf16.mxu0 0
        %2249 = vmatpush1.bf16.msra.mxu0 %v2201
        %2250 = vmatprep.mubr.bf16.mxu0 %v2082
        %2251 = vmatmul.mubr.bf16.gmra.mrb[0].mxu0 %v2081
        %v2252 = vpop.f32.mrb[0].mxu0
        %v2253 = vadd.f32 %v2120, %v2252
        %v2254 = vpop.f32.mrb[0].mxu0
        %v2255 = vpop.f32.mrb[0].mxu0
        %v2256 = vadd.f32 %v2120, %v2255
        %v2257 = vpop.f32.mrb[0].mxu0
        %2258 = vdwg.mxu0
        %v2259 = vadd.f32 %v1901, %v2253
        %v2260 = vadd.f32 %v1902, %v2256
        %v2261 = vsel %vm532, %v2259, 0.0
        %2262 = vadd.xlane.f32.xlu0 %v2261
        %v2263 = vpop.xlane.xlu0 %2262
        %v2264 = vsel %vm532, %v2260, 0.0
        %2265 = vadd.xlane.f32.xlu0 %v2264
        %v2266 = vpop.xlane.xlu0 %2265
        %v2267 = vmul.f32 %v2263, %v539
        %v2268 = vmul.f32 %v2266, %v539
        %v2269 = vsub.f32 %v2259, %v2267
        %v2270 = vsub.f32 %v2260, %v2268
        %v2271 = vmul.f32 %v2269, %v2269
        %v2272 = vmul.f32 %v2270, %v2270
        %v2273 = vsel %vm532, %v2271, 0.0
        %2274 = vadd.xlane.f32.xlu0 %v2273
        %v2275 = vpop.xlane.xlu0 %2274
        %v2276 = vsel %vm532, %v2272, 0.0
        %2277 = vadd.xlane.f32.xlu0 %v2276
        %v2278 = vpop.xlane.xlu0 %2277
        %v2279 = vmul.f32 %v2275, %v539
        %v2280 = vmul.f32 %v2278, %v539
        %v2281 = vadd.f32 %v2279, 1e-05
        %v2282 = vadd.f32 %v2280, 1e-05
        %v2283 = vrsqrt.pop %v2281
        %v2284 = vrsqrt.pop %v2282
        %v2285 = vmul.f32 %v2269, %v2283
        %v2286 = vmul.f32 %v2270, %v2284
        %s2287 = scalar_lea.vmem %s4, 1
        %v2288 = vld [vmem:[%s2287] sm:$0x1]
        %v2290 = vlaneseq
        %v2291 = vshrl.u32 %v2290, 7
        %v2292 = vsub.s32 0, %v2291
        %v2293 = vrot.slane %v2288, %v2292
        %v2295 = vmul.f32 %v2285, %v2293
        %v2296 = vmul.f32 %v2286, %v2293
        %v2297 = vpack.c.bf16 %v2296, %v2295
        %s2298 = scalar_lea.vmem %s5, 64
        %v2299 = vld [vmem:[%s2298] sm:$0xff]
        %v2300 = vld [vmem:[%s2298 + $0x8] sm:$0xff]
        %v2301 = vld [vmem:[%s2298 + $0x10] sm:$0xff]
        %v2302 = vld [vmem:[%s2298 + $0x18] sm:$0xff]
        %v2303 = vld [vmem:[%s2298 + $0x20] sm:$0xff]
        %v2304 = vld [vmem:[%s2298 + $0x28] sm:$0xff]
        %v2305 = vld [vmem:[%s2298 + $0x30] sm:$0xff]
        %v2306 = vld [vmem:[%s2298 + $0x38] sm:$0xff]
        %v2315 = vunpack.c.l.b16 %v2299
        %v2316 = vunpack.c.h.b16 %v2299
        %v2317 = vunpack.c.l.b16 %v2300
        %v2318 = vunpack.c.h.b16 %v2300
        %v2319 = vunpack.c.l.b16 %v2301
        %v2320 = vunpack.c.h.b16 %v2301
        %v2321 = vunpack.c.l.b16 %v2302
        %v2322 = vunpack.c.h.b16 %v2302
        %v2323 = vunpack.c.l.b16 %v2303
        %v2324 = vunpack.c.h.b16 %v2303
        %v2325 = vunpack.c.l.b16 %v2304
        %v2326 = vunpack.c.h.b16 %v2304
        %v2327 = vunpack.c.l.b16 %v2305
        %v2328 = vunpack.c.h.b16 %v2305
        %v2329 = vunpack.c.l.b16 %v2306
        %v2330 = vunpack.c.h.b16 %v2306
        %v2331 = vpack.c.b16 %v2317, %v2315
        %v2332 = vpack.c.b16 %v2318, %v2316
        %v2333 = vpack.c.b16 %v2321, %v2319
        %v2334 = vpack.c.b16 %v2322, %v2320
        %v2335 = vpack.c.b16 %v2325, %v2323
        %v2336 = vpack.c.b16 %v2326, %v2324
        %v2337 = vpack.c.b16 %v2329, %v2327
        %v2338 = vpack.c.b16 %v2330, %v2328
        %v2348 = vsel %vm532, %v2297, 0
        %2350 = vmatprep.subr.bf16.mxu0 %v2332
        %2351 = vmatpush1.bf16.msra.mxu0 %v2331
        %2352 = vmatprep.subr.bf16.mxu0 %v2334
        %2353 = vmatpush1.bf16.msra.mxu0 %v2333
        %2354 = vmatprep.subr.bf16.mxu0 %v2336
        %2355 = vmatpush1.bf16.msra.mxu0 %v2335
        %2356 = vmatprep.subr.bf16.mxu0 %v2338
        %2357 = vmatpush1.bf16.msra.mxu0 %v2337
        %2358 = vmatprep.subr.bf16.mxu0 0
        %2359 = vmatpush1.bf16.msra.mxu0 0
        %2360 = vmatprep.subr.bf16.mxu0 0
        %2361 = vmatpush1.bf16.msra.mxu0 0
        %2362 = vmatprep.subr.bf16.mxu0 0
        %2363 = vmatpush1.bf16.msra.mxu0 0
        %2364 = vmatprep.subr.bf16.mxu0 0
        %2365 = vmatpush1.bf16.msra.mxu0 0
        %2366 = vmatprep.subr.bf16.mxu0 0
        %2367 = vmatpush1.bf16.msra.mxu0 0
        %2368 = vmatprep.subr.bf16.mxu0 0
        %2369 = vmatpush1.bf16.msra.mxu0 0
        %2370 = vmatprep.subr.bf16.mxu0 0
        %2371 = vmatpush1.bf16.msra.mxu0 0
        %2372 = vmatprep.subr.bf16.mxu0 0
        %2373 = vmatpush1.bf16.msra.mxu0 0
        %2374 = vmatprep.subr.bf16.mxu0 0
        %2375 = vmatpush1.bf16.msra.mxu0 0
        %2376 = vmatprep.subr.bf16.mxu0 0
        %2377 = vmatpush1.bf16.msra.mxu0 0
        %2378 = vmatprep.subr.bf16.mxu0 0
        %2379 = vmatpush1.bf16.msra.mxu0 0
        %2380 = vmatprep.subr.bf16.mxu0 0
        %2381 = vmatpush1.bf16.msra.mxu0 0
        %2382 = vmatprep.mubr.bf16.mxu0 0
        %2383 = vmatmul.mubr.bf16.gmra.mrb[0].mxu0 %v2348
        %v2384 = vpop.f32.mrb[0].mxu0
        %v2385 = vadd.f32 0.0, %v2384
        %v2386 = vpop.f32.mrb[0].mxu0
        %v2387 = vadd.f32 0.0, %v2386
        %v2388 = vpop.f32.mrb[0].mxu0
        %v2389 = vadd.f32 0.0, %v2388
        %v2390 = vpop.f32.mrb[0].mxu0
        %v2391 = vadd.f32 0.0, %v2390
        %2392 = vdwg.mxu0
        %2395 = vrot.lane.b32.xlu0 %v2385, 112
        %v2396 = vpop.permute.xlu0 %2395
        %2397 = vrot.lane.b32.xlu0 %v2389, 112
        %v2398 = vpop.permute.xlu0 %2397
        %2401 = vrot.lane.b32.xlu0 %v2385, 96
        %v2402 = vpop.permute.xlu0 %2401
        %2403 = vrot.lane.b32.xlu0 %v2389, 96
        %v2404 = vpop.permute.xlu0 %2403
        %2407 = vrot.lane.b32.xlu0 %v2385, 80
        %v2408 = vpop.permute.xlu0 %2407
        %2409 = vrot.lane.b32.xlu0 %v2389, 80
        %v2410 = vpop.permute.xlu0 %2409
        %2415 = vrot.lane.b32.xlu0 %v2387, 112
        %v2416 = vpop.permute.xlu0 %2415
        %2417 = vrot.lane.b32.xlu0 %v2391, 112
        %v2418 = vpop.permute.xlu0 %2417
        %2421 = vrot.lane.b32.xlu0 %v2387, 96
        %v2422 = vpop.permute.xlu0 %2421
        %2423 = vrot.lane.b32.xlu0 %v2391, 96
        %v2424 = vpop.permute.xlu0 %2423
        %2427 = vrot.lane.b32.xlu0 %v2387, 80
        %v2428 = vpop.permute.xlu0 %2427
        %2429 = vrot.lane.b32.xlu0 %v2391, 80
        %v2430 = vpop.permute.xlu0 %2429
        %v2433 = vmul.f32 %v2385, %v521
        %v2434 = vmul.f32 %v2389, %v522
        %v2435 = vmul.f32 %v2396, %v521
        %v2436 = vmul.f32 %v2398, %v522
        %v2437 = vmul.f32 %v2402, %v521
        %v2438 = vmul.f32 %v2404, %v522
        %v2439 = vmul.f32 %v2408, %v521
        %v2440 = vmul.f32 %v2410, %v522
        %v2441 = vmul.f32 %v2385, %v715
        %v2442 = vmul.f32 %v2389, %v717
        %v2443 = vmul.f32 %v2396, %v715
        %v2444 = vmul.f32 %v2398, %v717
        %v2445 = vmul.f32 %v2402, %v715
        %v2446 = vmul.f32 %v2404, %v717
        %v2447 = vmul.f32 %v2408, %v715
        %v2448 = vmul.f32 %v2410, %v717
        %2457 = vrot.lane.b32.xlu0 %v2441, 120
        %v2458 = vpop.permute.xlu0 %2457
        %2459 = vrot.lane.b32.xlu0 %v2442, 120
        %v2460 = vpop.permute.xlu0 %2459
        %2461 = vrot.lane.b32.xlu0 %v2443, 120
        %v2462 = vpop.permute.xlu0 %2461
        %2463 = vrot.lane.b32.xlu0 %v2444, 120
        %v2464 = vpop.permute.xlu0 %2463
        %2465 = vrot.lane.b32.xlu0 %v2445, 120
        %v2466 = vpop.permute.xlu0 %2465
        %2467 = vrot.lane.b32.xlu0 %v2446, 120
        %v2468 = vpop.permute.xlu0 %2467
        %2469 = vrot.lane.b32.xlu0 %v2447, 120
        %v2470 = vpop.permute.xlu0 %2469
        %2471 = vrot.lane.b32.xlu0 %v2448, 120
        %v2472 = vpop.permute.xlu0 %2471
        %v2481 = vsub.f32 %v2433, %v2458
        %v2482 = vsub.f32 %v2434, %v2460
        %v2483 = vsub.f32 %v2435, %v2462
        %v2484 = vsub.f32 %v2436, %v2464
        %v2485 = vsub.f32 %v2437, %v2466
        %v2486 = vsub.f32 %v2438, %v2468
        %v2487 = vsub.f32 %v2439, %v2470
        %v2488 = vsub.f32 %v2440, %v2472
        %v2489 = vpack.c.bf16 %v2482, %v2481
        %v2490 = vpack.c.bf16 %v2484, %v2483
        %v2491 = vpack.c.bf16 %v2486, %v2485
        %v2492 = vpack.c.bf16 %v2488, %v2487
        %v2493 = vmul.f32 %v2385, %v775
        %v2494 = vmul.f32 %v2389, %v777
        %v2495 = vmul.f32 %v2396, %v775
        %v2496 = vmul.f32 %v2398, %v777
        %v2497 = vmul.f32 %v2402, %v775
        %v2498 = vmul.f32 %v2404, %v777
        %v2499 = vmul.f32 %v2408, %v775
        %v2500 = vmul.f32 %v2410, %v777
        %v2501 = vmul.f32 %v2385, %v523
        %v2502 = vmul.f32 %v2389, %v524
        %v2503 = vmul.f32 %v2396, %v523
        %v2504 = vmul.f32 %v2398, %v524
        %v2505 = vmul.f32 %v2402, %v523
        %v2506 = vmul.f32 %v2404, %v524
        %v2507 = vmul.f32 %v2408, %v523
        %v2508 = vmul.f32 %v2410, %v524
        %2517 = vrot.lane.b32.xlu0 %v2501, 8
        %v2518 = vpop.permute.xlu0 %2517
        %2519 = vrot.lane.b32.xlu0 %v2502, 8
        %v2520 = vpop.permute.xlu0 %2519
        %2521 = vrot.lane.b32.xlu0 %v2503, 8
        %v2522 = vpop.permute.xlu0 %2521
        %2523 = vrot.lane.b32.xlu0 %v2504, 8
        %v2524 = vpop.permute.xlu0 %2523
        %2525 = vrot.lane.b32.xlu0 %v2505, 8
        %v2526 = vpop.permute.xlu0 %2525
        %2527 = vrot.lane.b32.xlu0 %v2506, 8
        %v2528 = vpop.permute.xlu0 %2527
        %2529 = vrot.lane.b32.xlu0 %v2507, 8
        %v2530 = vpop.permute.xlu0 %2529
        %2531 = vrot.lane.b32.xlu0 %v2508, 8
        %v2532 = vpop.permute.xlu0 %2531
        %v2541 = vadd.f32 %v2493, %v2518
        %v2542 = vadd.f32 %v2494, %v2520
        %v2543 = vadd.f32 %v2495, %v2522
        %v2544 = vadd.f32 %v2496, %v2524
        %v2545 = vadd.f32 %v2497, %v2526
        %v2546 = vadd.f32 %v2498, %v2528
        %v2547 = vadd.f32 %v2499, %v2530
        %v2548 = vadd.f32 %v2500, %v2532
        %v2549 = vpack.c.bf16 %v2542, %v2541
        %v2550 = vpack.c.bf16 %v2544, %v2543
        %v2551 = vpack.c.bf16 %v2546, %v2545
        %v2552 = vpack.c.bf16 %v2548, %v2547
        %v2553 = vmul.f32 %v2385, %v841
        %v2554 = vmul.f32 %v2389, %v843
        %v2555 = vmul.f32 %v2396, %v841
        %v2556 = vmul.f32 %v2398, %v843
        %v2557 = vmul.f32 %v2402, %v841
        %v2558 = vmul.f32 %v2404, %v843
        %v2559 = vmul.f32 %v2408, %v841
        %v2560 = vmul.f32 %v2410, %v843
        %v2561 = vmul.f32 %v2385, %v855
        %v2562 = vmul.f32 %v2389, %v857
        %v2563 = vmul.f32 %v2396, %v855
        %v2564 = vmul.f32 %v2398, %v857
        %v2565 = vmul.f32 %v2402, %v855
        %v2566 = vmul.f32 %v2404, %v857
        %v2567 = vmul.f32 %v2408, %v855
        %v2568 = vmul.f32 %v2410, %v857
        %2577 = vrot.lane.b32.xlu0 %v2561, 120
        %v2578 = vpop.permute.xlu0 %2577
        %2579 = vrot.lane.b32.xlu0 %v2562, 120
        %v2580 = vpop.permute.xlu0 %2579
        %2581 = vrot.lane.b32.xlu0 %v2563, 120
        %v2582 = vpop.permute.xlu0 %2581
        %2583 = vrot.lane.b32.xlu0 %v2564, 120
        %v2584 = vpop.permute.xlu0 %2583
        %2585 = vrot.lane.b32.xlu0 %v2565, 120
        %v2586 = vpop.permute.xlu0 %2585
        %2587 = vrot.lane.b32.xlu0 %v2566, 120
        %v2588 = vpop.permute.xlu0 %2587
        %2589 = vrot.lane.b32.xlu0 %v2567, 120
        %v2590 = vpop.permute.xlu0 %2589
        %2591 = vrot.lane.b32.xlu0 %v2568, 120
        %v2592 = vpop.permute.xlu0 %2591
        %v2601 = vsub.f32 %v2553, %v2578
        %v2602 = vsub.f32 %v2554, %v2580
        %v2603 = vsub.f32 %v2555, %v2582
        %v2604 = vsub.f32 %v2556, %v2584
        %v2605 = vsub.f32 %v2557, %v2586
        %v2606 = vsub.f32 %v2558, %v2588
        %v2607 = vsub.f32 %v2559, %v2590
        %v2608 = vsub.f32 %v2560, %v2592
        %v2609 = vpack.c.bf16 %v2602, %v2601
        %v2610 = vpack.c.bf16 %v2604, %v2603
        %v2611 = vpack.c.bf16 %v2606, %v2605
        %v2612 = vpack.c.bf16 %v2608, %v2607
        %v2613 = vmul.f32 %v2385, %v913
        %v2614 = vmul.f32 %v2389, %v915
        %v2615 = vmul.f32 %v2396, %v913
        %v2616 = vmul.f32 %v2398, %v915
        %v2617 = vmul.f32 %v2402, %v913
        %v2618 = vmul.f32 %v2404, %v915
        %v2619 = vmul.f32 %v2408, %v913
        %v2620 = vmul.f32 %v2410, %v915
        %v2621 = vmul.f32 %v2385, %v927
        %v2622 = vmul.f32 %v2389, %v929
        %v2623 = vmul.f32 %v2396, %v927
        %v2624 = vmul.f32 %v2398, %v929
        %v2625 = vmul.f32 %v2402, %v927
        %v2626 = vmul.f32 %v2404, %v929
        %v2627 = vmul.f32 %v2408, %v927
        %v2628 = vmul.f32 %v2410, %v929
        %2637 = vrot.lane.b32.xlu0 %v2621, 8
        %v2638 = vpop.permute.xlu0 %2637
        %2639 = vrot.lane.b32.xlu0 %v2622, 8
        %v2640 = vpop.permute.xlu0 %2639
        %2641 = vrot.lane.b32.xlu0 %v2623, 8
        %v2642 = vpop.permute.xlu0 %2641
        %2643 = vrot.lane.b32.xlu0 %v2624, 8
        %v2644 = vpop.permute.xlu0 %2643
        %2645 = vrot.lane.b32.xlu0 %v2625, 8
        %v2646 = vpop.permute.xlu0 %2645
        %2647 = vrot.lane.b32.xlu0 %v2626, 8
        %v2648 = vpop.permute.xlu0 %2647
        %2649 = vrot.lane.b32.xlu0 %v2627, 8
        %v2650 = vpop.permute.xlu0 %2649
        %2651 = vrot.lane.b32.xlu0 %v2628, 8
        %v2652 = vpop.permute.xlu0 %2651
        %v2661 = vadd.f32 %v2613, %v2638
        %v2662 = vadd.f32 %v2614, %v2640
        %v2663 = vadd.f32 %v2615, %v2642
        %v2664 = vadd.f32 %v2616, %v2644
        %v2665 = vadd.f32 %v2617, %v2646
        %v2666 = vadd.f32 %v2618, %v2648
        %v2667 = vadd.f32 %v2619, %v2650
        %v2668 = vadd.f32 %v2620, %v2652
        %v2669 = vpack.c.bf16 %v2662, %v2661
        %v2670 = vpack.c.bf16 %v2664, %v2663
        %v2671 = vpack.c.bf16 %v2666, %v2665
        %v2672 = vpack.c.bf16 %v2668, %v2667
        %2674 = vrot.lane.b32.xlu0 %v2549, 120
        %v2675 = vpop.permute.xlu0 %2674
        %2677 = vrot.lane.b32.xlu0 %v2669, 56
        %v2678 = vpop.permute.xlu0 %2677
        %v2680 = vsel %vm990, %v2675, 0
        %v2683 = vsel %vm990, %v2678, 0
        %2685 = vmatprep.subr.bf16.mxu0 0
        %2686 = vmatpush1.bf16.xpose.msra.mxu0 %v2683
        %2687 = vmatprep.subr.bf16.mxu0 0
        %2688 = vmatpush1.bf16.xpose.msra.mxu0 0
        %2689 = vmatprep.subr.bf16.mxu0 0
        %2690 = vmatpush1.bf16.xpose.msra.mxu0 0
        %2691 = vmatprep.subr.bf16.mxu0 0
        %2692 = vmatpush1.bf16.xpose.msra.mxu0 0
        %2693 = vmatprep.subr.bf16.mxu0 0
        %2694 = vmatpush1.bf16.xpose.msra.mxu0 0
        %2695 = vmatprep.subr.bf16.mxu0 0
        %2696 = vmatpush1.bf16.xpose.msra.mxu0 0
        %2697 = vmatprep.subr.bf16.mxu0 0
        %2698 = vmatpush1.bf16.xpose.msra.mxu0 0
        %2699 = vmatprep.subr.bf16.mxu0 0
        %2700 = vmatpush1.bf16.xpose.msra.mxu0 0
        %2701 = vmatprep.subr.bf16.mxu0 0
        %2702 = vmatpush1.bf16.xpose.msra.mxu0 0
        %2703 = vmatprep.subr.bf16.mxu0 0
        %2704 = vmatpush1.bf16.xpose.msra.mxu0 0
        %2705 = vmatprep.subr.bf16.mxu0 0
        %2706 = vmatpush1.bf16.xpose.msra.mxu0 0
        %2707 = vmatprep.subr.bf16.mxu0 0
        %2708 = vmatpush1.bf16.xpose.msra.mxu0 0
        %2709 = vmatprep.subr.bf16.mxu0 0
        %2710 = vmatpush1.bf16.xpose.msra.mxu0 0
        %2711 = vmatprep.subr.bf16.mxu0 0
        %2712 = vmatpush1.bf16.xpose.msra.mxu0 0
        %2713 = vmatprep.subr.bf16.mxu0 0
        %2714 = vmatpush1.bf16.xpose.msra.mxu0 0
        %2715 = vmatprep.subr.bf16.mxu0 0
        %2716 = vmatpush1.bf16.xpose.msra.mxu0 0
        %2717 = vmatprep.mubr.bf16.mxu0 0
        %2718 = vmatmul.mubr.bf16.gmra.mrb[0].mxu0 %v2680
        %v2719 = vpop.f32.mrb[0].mxu0
        %v2720 = vadd.f32 0.0, %v2719
        %v2721 = vpop.f32.mrb[0].mxu0
        %v2722 = vpop.f32.mrb[0].mxu0
        %v2723 = vadd.f32 0.0, %v2722
        %v2724 = vpop.f32.mrb[0].mxu0
        %2725 = vdwg.mxu0
        %2727 = vrot.lane.b32.xlu0 %v2550, 120
        %v2728 = vpop.permute.xlu0 %2727
        %2730 = vrot.lane.b32.xlu0 %v2670, 56
        %v2731 = vpop.permute.xlu0 %2730
        %v2733 = vsel %vm990, %v2728, 0
        %v2736 = vsel %vm990, %v2731, 0
        %2738 = vmatprep.subr.bf16.mxu0 0
        %2739 = vmatpush1.bf16.xpose.msra.mxu0 %v2736
        %2740 = vmatprep.subr.bf16.mxu0 0
        %2741 = vmatpush1.bf16.xpose.msra.mxu0 0
        %2742 = vmatprep.subr.bf16.mxu0 0
        %2743 = vmatpush1.bf16.xpose.msra.mxu0 0
        %2744 = vmatprep.subr.bf16.mxu0 0
        %2745 = vmatpush1.bf16.xpose.msra.mxu0 0
        %2746 = vmatprep.subr.bf16.mxu0 0
        %2747 = vmatpush1.bf16.xpose.msra.mxu0 0
        %2748 = vmatprep.subr.bf16.mxu0 0
        %2749 = vmatpush1.bf16.xpose.msra.mxu0 0
        %2750 = vmatprep.subr.bf16.mxu0 0
        %2751 = vmatpush1.bf16.xpose.msra.mxu0 0
        %2752 = vmatprep.subr.bf16.mxu0 0
        %2753 = vmatpush1.bf16.xpose.msra.mxu0 0
        %2754 = vmatprep.subr.bf16.mxu0 0
        %2755 = vmatpush1.bf16.xpose.msra.mxu0 0
        %2756 = vmatprep.subr.bf16.mxu0 0
        %2757 = vmatpush1.bf16.xpose.msra.mxu0 0
        %2758 = vmatprep.subr.bf16.mxu0 0
        %2759 = vmatpush1.bf16.xpose.msra.mxu0 0
        %2760 = vmatprep.subr.bf16.mxu0 0
        %2761 = vmatpush1.bf16.xpose.msra.mxu0 0
        %2762 = vmatprep.subr.bf16.mxu0 0
        %2763 = vmatpush1.bf16.xpose.msra.mxu0 0
        %2764 = vmatprep.subr.bf16.mxu0 0
        %2765 = vmatpush1.bf16.xpose.msra.mxu0 0
        %2766 = vmatprep.subr.bf16.mxu0 0
        %2767 = vmatpush1.bf16.xpose.msra.mxu0 0
        %2768 = vmatprep.subr.bf16.mxu0 0
        %2769 = vmatpush1.bf16.xpose.msra.mxu0 0
        %2770 = vmatprep.mubr.bf16.mxu0 0
        %2771 = vmatmul.mubr.bf16.gmra.mrb[0].mxu0 %v2733
        %v2772 = vpop.f32.mrb[0].mxu0
        %v2773 = vadd.f32 0.0, %v2772
        %v2774 = vpop.f32.mrb[0].mxu0
        %v2775 = vpop.f32.mrb[0].mxu0
        %v2776 = vadd.f32 0.0, %v2775
        %v2777 = vpop.f32.mrb[0].mxu0
        %2778 = vdwg.mxu0
        %2780 = vrot.lane.b32.xlu0 %v2551, 120
        %v2781 = vpop.permute.xlu0 %2780
        %2783 = vrot.lane.b32.xlu0 %v2671, 56
        %v2784 = vpop.permute.xlu0 %2783
        %v2786 = vsel %vm990, %v2781, 0
        %v2789 = vsel %vm990, %v2784, 0
        %2791 = vmatprep.subr.bf16.mxu0 0
        %2792 = vmatpush1.bf16.xpose.msra.mxu0 %v2789
        %2793 = vmatprep.subr.bf16.mxu0 0
        %2794 = vmatpush1.bf16.xpose.msra.mxu0 0
        %2795 = vmatprep.subr.bf16.mxu0 0
        %2796 = vmatpush1.bf16.xpose.msra.mxu0 0
        %2797 = vmatprep.subr.bf16.mxu0 0
        %2798 = vmatpush1.bf16.xpose.msra.mxu0 0
        %2799 = vmatprep.subr.bf16.mxu0 0
        %2800 = vmatpush1.bf16.xpose.msra.mxu0 0
        %2801 = vmatprep.subr.bf16.mxu0 0
        %2802 = vmatpush1.bf16.xpose.msra.mxu0 0
        %2803 = vmatprep.subr.bf16.mxu0 0
        %2804 = vmatpush1.bf16.xpose.msra.mxu0 0
        %2805 = vmatprep.subr.bf16.mxu0 0
        %2806 = vmatpush1.bf16.xpose.msra.mxu0 0
        %2807 = vmatprep.subr.bf16.mxu0 0
        %2808 = vmatpush1.bf16.xpose.msra.mxu0 0
        %2809 = vmatprep.subr.bf16.mxu0 0
        %2810 = vmatpush1.bf16.xpose.msra.mxu0 0
        %2811 = vmatprep.subr.bf16.mxu0 0
        %2812 = vmatpush1.bf16.xpose.msra.mxu0 0
        %2813 = vmatprep.subr.bf16.mxu0 0
        %2814 = vmatpush1.bf16.xpose.msra.mxu0 0
        %2815 = vmatprep.subr.bf16.mxu0 0
        %2816 = vmatpush1.bf16.xpose.msra.mxu0 0
        %2817 = vmatprep.subr.bf16.mxu0 0
        %2818 = vmatpush1.bf16.xpose.msra.mxu0 0
        %2819 = vmatprep.subr.bf16.mxu0 0
        %2820 = vmatpush1.bf16.xpose.msra.mxu0 0
        %2821 = vmatprep.subr.bf16.mxu0 0
        %2822 = vmatpush1.bf16.xpose.msra.mxu0 0
        %2823 = vmatprep.mubr.bf16.mxu0 0
        %2824 = vmatmul.mubr.bf16.gmra.mrb[0].mxu0 %v2786
        %v2825 = vpop.f32.mrb[0].mxu0
        %v2826 = vadd.f32 0.0, %v2825
        %v2827 = vpop.f32.mrb[0].mxu0
        %v2828 = vpop.f32.mrb[0].mxu0
        %v2829 = vadd.f32 0.0, %v2828
        %v2830 = vpop.f32.mrb[0].mxu0
        %2831 = vdwg.mxu0
        %2833 = vrot.lane.b32.xlu0 %v2552, 120
        %v2834 = vpop.permute.xlu0 %2833
        %2836 = vrot.lane.b32.xlu0 %v2672, 56
        %v2837 = vpop.permute.xlu0 %2836
        %v2839 = vsel %vm990, %v2834, 0
        %v2842 = vsel %vm990, %v2837, 0
        %2844 = vmatprep.subr.bf16.mxu0 0
        %2845 = vmatpush1.bf16.xpose.msra.mxu0 %v2842
        %2846 = vmatprep.subr.bf16.mxu0 0
        %2847 = vmatpush1.bf16.xpose.msra.mxu0 0
        %2848 = vmatprep.subr.bf16.mxu0 0
        %2849 = vmatpush1.bf16.xpose.msra.mxu0 0
        %2850 = vmatprep.subr.bf16.mxu0 0
        %2851 = vmatpush1.bf16.xpose.msra.mxu0 0
        %2852 = vmatprep.subr.bf16.mxu0 0
        %2853 = vmatpush1.bf16.xpose.msra.mxu0 0
        %2854 = vmatprep.subr.bf16.mxu0 0
        %2855 = vmatpush1.bf16.xpose.msra.mxu0 0
        %2856 = vmatprep.subr.bf16.mxu0 0
        %2857 = vmatpush1.bf16.xpose.msra.mxu0 0
        %2858 = vmatprep.subr.bf16.mxu0 0
        %2859 = vmatpush1.bf16.xpose.msra.mxu0 0
        %2860 = vmatprep.subr.bf16.mxu0 0
        %2861 = vmatpush1.bf16.xpose.msra.mxu0 0
        %2862 = vmatprep.subr.bf16.mxu0 0
        %2863 = vmatpush1.bf16.xpose.msra.mxu0 0
        %2864 = vmatprep.subr.bf16.mxu0 0
        %2865 = vmatpush1.bf16.xpose.msra.mxu0 0
        %2866 = vmatprep.subr.bf16.mxu0 0
        %2867 = vmatpush1.bf16.xpose.msra.mxu0 0
        %2868 = vmatprep.subr.bf16.mxu0 0
        %2869 = vmatpush1.bf16.xpose.msra.mxu0 0
        %2870 = vmatprep.subr.bf16.mxu0 0
        %2871 = vmatpush1.bf16.xpose.msra.mxu0 0
        %2872 = vmatprep.subr.bf16.mxu0 0
        %2873 = vmatpush1.bf16.xpose.msra.mxu0 0
        %2874 = vmatprep.subr.bf16.mxu0 0
        %2875 = vmatpush1.bf16.xpose.msra.mxu0 0
        %2876 = vmatprep.mubr.bf16.mxu0 0
        %2877 = vmatmul.mubr.bf16.gmra.mrb[0].mxu0 %v2839
        %v2878 = vpop.f32.mrb[0].mxu0
        %v2879 = vadd.f32 0.0, %v2878
        %v2880 = vpop.f32.mrb[0].mxu0
        %v2881 = vpop.f32.mrb[0].mxu0
        %v2882 = vadd.f32 0.0, %v2881
        %v2883 = vpop.f32.mrb[0].mxu0
        %2884 = vdwg.mxu0
        %2886 = vrot.lane.b32.xlu0 %v2609, 64
        %v2887 = vpop.permute.xlu0 %2886
        %v2889 = vsel %vm990, %v2489, 0
        %v2892 = vsel %vm990, %v2887, 0
        %2894 = vmatprep.subr.bf16.mxu0 0
        %2895 = vmatpush1.bf16.xpose.msra.mxu0 %v2892
        %2896 = vmatprep.subr.bf16.mxu0 0
        %2897 = vmatpush1.bf16.xpose.msra.mxu0 0
        %2898 = vmatprep.subr.bf16.mxu0 0
        %2899 = vmatpush1.bf16.xpose.msra.mxu0 0
        %2900 = vmatprep.subr.bf16.mxu0 0
        %2901 = vmatpush1.bf16.xpose.msra.mxu0 0
        %2902 = vmatprep.subr.bf16.mxu0 0
        %2903 = vmatpush1.bf16.xpose.msra.mxu0 0
        %2904 = vmatprep.subr.bf16.mxu0 0
        %2905 = vmatpush1.bf16.xpose.msra.mxu0 0
        %2906 = vmatprep.subr.bf16.mxu0 0
        %2907 = vmatpush1.bf16.xpose.msra.mxu0 0
        %2908 = vmatprep.subr.bf16.mxu0 0
        %2909 = vmatpush1.bf16.xpose.msra.mxu0 0
        %2910 = vmatprep.subr.bf16.mxu0 0
        %2911 = vmatpush1.bf16.xpose.msra.mxu0 0
        %2912 = vmatprep.subr.bf16.mxu0 0
        %2913 = vmatpush1.bf16.xpose.msra.mxu0 0
        %2914 = vmatprep.subr.bf16.mxu0 0
        %2915 = vmatpush1.bf16.xpose.msra.mxu0 0
        %2916 = vmatprep.subr.bf16.mxu0 0
        %2917 = vmatpush1.bf16.xpose.msra.mxu0 0
        %2918 = vmatprep.subr.bf16.mxu0 0
        %2919 = vmatpush1.bf16.xpose.msra.mxu0 0
        %2920 = vmatprep.subr.bf16.mxu0 0
        %2921 = vmatpush1.bf16.xpose.msra.mxu0 0
        %2922 = vmatprep.subr.bf16.mxu0 0
        %2923 = vmatpush1.bf16.xpose.msra.mxu0 0
        %2924 = vmatprep.subr.bf16.mxu0 0
        %2925 = vmatpush1.bf16.xpose.msra.mxu0 0
        %2926 = vmatprep.mubr.bf16.mxu0 0
        %2927 = vmatmul.mubr.bf16.gmra.mrb[0].mxu0 %v2889
        %v2928 = vpop.f32.mrb[0].mxu0
        %v2929 = vadd.f32 %v2720, %v2928
        %v2930 = vpop.f32.mrb[0].mxu0
        %v2931 = vpop.f32.mrb[0].mxu0
        %v2932 = vadd.f32 %v2723, %v2931
        %v2933 = vpop.f32.mrb[0].mxu0
        %2934 = vdwg.mxu0
        %2936 = vrot.lane.b32.xlu0 %v2610, 64
        %v2937 = vpop.permute.xlu0 %2936
        %v2939 = vsel %vm990, %v2490, 0
        %v2942 = vsel %vm990, %v2937, 0
        %2944 = vmatprep.subr.bf16.mxu0 0
        %2945 = vmatpush1.bf16.xpose.msra.mxu0 %v2942
        %2946 = vmatprep.subr.bf16.mxu0 0
        %2947 = vmatpush1.bf16.xpose.msra.mxu0 0
        %2948 = vmatprep.subr.bf16.mxu0 0
        %2949 = vmatpush1.bf16.xpose.msra.mxu0 0
        %2950 = vmatprep.subr.bf16.mxu0 0
        %2951 = vmatpush1.bf16.xpose.msra.mxu0 0
        %2952 = vmatprep.subr.bf16.mxu0 0
        %2953 = vmatpush1.bf16.xpose.msra.mxu0 0
        %2954 = vmatprep.subr.bf16.mxu0 0
        %2955 = vmatpush1.bf16.xpose.msra.mxu0 0
        %2956 = vmatprep.subr.bf16.mxu0 0
        %2957 = vmatpush1.bf16.xpose.msra.mxu0 0
        %2958 = vmatprep.subr.bf16.mxu0 0
        %2959 = vmatpush1.bf16.xpose.msra.mxu0 0
        %2960 = vmatprep.subr.bf16.mxu0 0
        %2961 = vmatpush1.bf16.xpose.msra.mxu0 0
        %2962 = vmatprep.subr.bf16.mxu0 0
        %2963 = vmatpush1.bf16.xpose.msra.mxu0 0
        %2964 = vmatprep.subr.bf16.mxu0 0
        %2965 = vmatpush1.bf16.xpose.msra.mxu0 0
        %2966 = vmatprep.subr.bf16.mxu0 0
        %2967 = vmatpush1.bf16.xpose.msra.mxu0 0
        %2968 = vmatprep.subr.bf16.mxu0 0
        %2969 = vmatpush1.bf16.xpose.msra.mxu0 0
        %2970 = vmatprep.subr.bf16.mxu0 0
        %2971 = vmatpush1.bf16.xpose.msra.mxu0 0
        %2972 = vmatprep.subr.bf16.mxu0 0
        %2973 = vmatpush1.bf16.xpose.msra.mxu0 0
        %2974 = vmatprep.subr.bf16.mxu0 0
        %2975 = vmatpush1.bf16.xpose.msra.mxu0 0
        %2976 = vmatprep.mubr.bf16.mxu0 0
        %2977 = vmatmul.mubr.bf16.gmra.mrb[0].mxu0 %v2939
        %v2978 = vpop.f32.mrb[0].mxu0
        %v2979 = vadd.f32 %v2773, %v2978
        %v2980 = vpop.f32.mrb[0].mxu0
        %v2981 = vpop.f32.mrb[0].mxu0
        %v2982 = vadd.f32 %v2776, %v2981
        %v2983 = vpop.f32.mrb[0].mxu0
        %2984 = vdwg.mxu0
        %2986 = vrot.lane.b32.xlu0 %v2611, 64
        %v2987 = vpop.permute.xlu0 %2986
        %v2989 = vsel %vm990, %v2491, 0
        %v2992 = vsel %vm990, %v2987, 0
        %2994 = vmatprep.subr.bf16.mxu0 0
        %2995 = vmatpush1.bf16.xpose.msra.mxu0 %v2992
        %2996 = vmatprep.subr.bf16.mxu0 0
        %2997 = vmatpush1.bf16.xpose.msra.mxu0 0
        %2998 = vmatprep.subr.bf16.mxu0 0
        %2999 = vmatpush1.bf16.xpose.msra.mxu0 0
        %3000 = vmatprep.subr.bf16.mxu0 0
        %3001 = vmatpush1.bf16.xpose.msra.mxu0 0
        %3002 = vmatprep.subr.bf16.mxu0 0
        %3003 = vmatpush1.bf16.xpose.msra.mxu0 0
        %3004 = vmatprep.subr.bf16.mxu0 0
        %3005 = vmatpush1.bf16.xpose.msra.mxu0 0
        %3006 = vmatprep.subr.bf16.mxu0 0
        %3007 = vmatpush1.bf16.xpose.msra.mxu0 0
        %3008 = vmatprep.subr.bf16.mxu0 0
        %3009 = vmatpush1.bf16.xpose.msra.mxu0 0
        %3010 = vmatprep.subr.bf16.mxu0 0
        %3011 = vmatpush1.bf16.xpose.msra.mxu0 0
        %3012 = vmatprep.subr.bf16.mxu0 0
        %3013 = vmatpush1.bf16.xpose.msra.mxu0 0
        %3014 = vmatprep.subr.bf16.mxu0 0
        %3015 = vmatpush1.bf16.xpose.msra.mxu0 0
        %3016 = vmatprep.subr.bf16.mxu0 0
        %3017 = vmatpush1.bf16.xpose.msra.mxu0 0
        %3018 = vmatprep.subr.bf16.mxu0 0
        %3019 = vmatpush1.bf16.xpose.msra.mxu0 0
        %3020 = vmatprep.subr.bf16.mxu0 0
        %3021 = vmatpush1.bf16.xpose.msra.mxu0 0
        %3022 = vmatprep.subr.bf16.mxu0 0
        %3023 = vmatpush1.bf16.xpose.msra.mxu0 0
        %3024 = vmatprep.subr.bf16.mxu0 0
        %3025 = vmatpush1.bf16.xpose.msra.mxu0 0
        %3026 = vmatprep.mubr.bf16.mxu0 0
        %3027 = vmatmul.mubr.bf16.gmra.mrb[0].mxu0 %v2989
        %v3028 = vpop.f32.mrb[0].mxu0
        %v3029 = vadd.f32 %v2826, %v3028
        %v3030 = vpop.f32.mrb[0].mxu0
        %v3031 = vpop.f32.mrb[0].mxu0
        %v3032 = vadd.f32 %v2829, %v3031
        %v3033 = vpop.f32.mrb[0].mxu0
        %3034 = vdwg.mxu0
        %3036 = vrot.lane.b32.xlu0 %v2612, 64
        %v3037 = vpop.permute.xlu0 %3036
        %v3039 = vsel %vm990, %v2492, 0
        %v3042 = vsel %vm990, %v3037, 0
        %3044 = vmatprep.subr.bf16.mxu0 0
        %3045 = vmatpush1.bf16.xpose.msra.mxu0 %v3042
        %3046 = vmatprep.subr.bf16.mxu0 0
        %3047 = vmatpush1.bf16.xpose.msra.mxu0 0
        %3048 = vmatprep.subr.bf16.mxu0 0
        %3049 = vmatpush1.bf16.xpose.msra.mxu0 0
        %3050 = vmatprep.subr.bf16.mxu0 0
        %3051 = vmatpush1.bf16.xpose.msra.mxu0 0
        %3052 = vmatprep.subr.bf16.mxu0 0
        %3053 = vmatpush1.bf16.xpose.msra.mxu0 0
        %3054 = vmatprep.subr.bf16.mxu0 0
        %3055 = vmatpush1.bf16.xpose.msra.mxu0 0
        %3056 = vmatprep.subr.bf16.mxu0 0
        %3057 = vmatpush1.bf16.xpose.msra.mxu0 0
        %3058 = vmatprep.subr.bf16.mxu0 0
        %3059 = vmatpush1.bf16.xpose.msra.mxu0 0
        %3060 = vmatprep.subr.bf16.mxu0 0
        %3061 = vmatpush1.bf16.xpose.msra.mxu0 0
        %3062 = vmatprep.subr.bf16.mxu0 0
        %3063 = vmatpush1.bf16.xpose.msra.mxu0 0
        %3064 = vmatprep.subr.bf16.mxu0 0
        %3065 = vmatpush1.bf16.xpose.msra.mxu0 0
        %3066 = vmatprep.subr.bf16.mxu0 0
        %3067 = vmatpush1.bf16.xpose.msra.mxu0 0
        %3068 = vmatprep.subr.bf16.mxu0 0
        %3069 = vmatpush1.bf16.xpose.msra.mxu0 0
        %3070 = vmatprep.subr.bf16.mxu0 0
        %3071 = vmatpush1.bf16.xpose.msra.mxu0 0
        %3072 = vmatprep.subr.bf16.mxu0 0
        %3073 = vmatpush1.bf16.xpose.msra.mxu0 0
        %3074 = vmatprep.subr.bf16.mxu0 0
        %3075 = vmatpush1.bf16.xpose.msra.mxu0 0
        %3076 = vmatprep.mubr.bf16.mxu0 0
        %3077 = vmatmul.mubr.bf16.gmra.mrb[0].mxu0 %v3039
        %v3078 = vpop.f32.mrb[0].mxu0
        %v3079 = vadd.f32 %v2879, %v3078
        %v3080 = vpop.f32.mrb[0].mxu0
        %v3081 = vpop.f32.mrb[0].mxu0
        %v3082 = vadd.f32 %v2882, %v3081
        %v3083 = vpop.f32.mrb[0].mxu0
        %3084 = vdwg.mxu0
        %v3085 = vsel %vm1399, %v2929, -1e+30
        %v3086 = vsel %vm1400, %v2932, -1e+30
        %v3087 = vsel %vm1399, %v2979, -1e+30
        %v3088 = vsel %vm1400, %v2982, -1e+30
        %v3089 = vsel %vm1399, %v3029, -1e+30
        %v3090 = vsel %vm1400, %v3032, -1e+30
        %v3091 = vsel %vm1399, %v3079, -1e+30
        %v3092 = vsel %vm1400, %v3082, -1e+30
        %v3093 = vsel %vm1409, %v3085, -inf
        %3094 = vmax.xlane.f32.xlu0 %v3093
        %v3095 = vpop.xlane.xlu0 %3094
        %v3096 = vsel %vm1409, %v3086, -inf
        %3097 = vmax.xlane.f32.xlu0 %v3096
        %v3098 = vpop.xlane.xlu0 %3097
        %v3099 = vsel %vm1409, %v3087, -inf
        %3100 = vmax.xlane.f32.xlu0 %v3099
        %v3101 = vpop.xlane.xlu0 %3100
        %v3102 = vsel %vm1409, %v3088, -inf
        %3103 = vmax.xlane.f32.xlu0 %v3102
        %v3104 = vpop.xlane.xlu0 %3103
        %v3105 = vsel %vm1409, %v3089, -inf
        %3106 = vmax.xlane.f32.xlu0 %v3105
        %v3107 = vpop.xlane.xlu0 %3106
        %v3108 = vsel %vm1409, %v3090, -inf
        %3109 = vmax.xlane.f32.xlu0 %v3108
        %v3110 = vpop.xlane.xlu0 %3109
        %v3111 = vsel %vm1409, %v3091, -inf
        %3112 = vmax.xlane.f32.xlu0 %v3111
        %v3113 = vpop.xlane.xlu0 %3112
        %v3114 = vsel %vm1409, %v3092, -inf
        %3115 = vmax.xlane.f32.xlu0 %v3114
        %v3116 = vpop.xlane.xlu0 %3115
        %v3117 = vsub.f32 %v3085, %v3095
        %v3118 = vsub.f32 %v3086, %v3098
        %v3119 = vsub.f32 %v3087, %v3101
        %v3120 = vsub.f32 %v3088, %v3104
        %v3121 = vsub.f32 %v3089, %v3107
        %v3122 = vsub.f32 %v3090, %v3110
        %v3123 = vsub.f32 %v3091, %v3113
        %v3124 = vsub.f32 %v3092, %v3116
        %v3125 = vmul.f32 %v3117, 1.442695
        %v3126 = vpow.pop %v3125
        %v3127 = vmul.f32 %v3118, 1.442695
        %v3128 = vpow.pop %v3127
        %v3129 = vmul.f32 %v3119, 1.442695
        %v3130 = vpow.pop %v3129
        %v3131 = vmul.f32 %v3120, 1.442695
        %v3132 = vpow.pop %v3131
        %v3133 = vmul.f32 %v3121, 1.442695
        %v3134 = vpow.pop %v3133
        %v3135 = vmul.f32 %v3122, 1.442695
        %v3136 = vpow.pop %v3135
        %v3137 = vmul.f32 %v3123, 1.442695
        %v3138 = vpow.pop %v3137
        %v3139 = vmul.f32 %v3124, 1.442695
        %v3140 = vpow.pop %v3139
        %v3141 = vsel %vm1409, %v3126, 0.0
        %3142 = vadd.xlane.f32.xlu0 %v3141
        %v3143 = vpop.xlane.xlu0 %3142
        %v3144 = vsel %vm1409, %v3128, 0.0
        %3145 = vadd.xlane.f32.xlu0 %v3144
        %v3146 = vpop.xlane.xlu0 %3145
        %v3147 = vsel %vm1409, %v3130, 0.0
        %3148 = vadd.xlane.f32.xlu0 %v3147
        %v3149 = vpop.xlane.xlu0 %3148
        %v3150 = vsel %vm1409, %v3132, 0.0
        %3151 = vadd.xlane.f32.xlu0 %v3150
        %v3152 = vpop.xlane.xlu0 %3151
        %v3153 = vsel %vm1409, %v3134, 0.0
        %3154 = vadd.xlane.f32.xlu0 %v3153
        %v3155 = vpop.xlane.xlu0 %3154
        %v3156 = vsel %vm1409, %v3136, 0.0
        %3157 = vadd.xlane.f32.xlu0 %v3156
        %v3158 = vpop.xlane.xlu0 %3157
        %v3159 = vsel %vm1409, %v3138, 0.0
        %3160 = vadd.xlane.f32.xlu0 %v3159
        %v3161 = vpop.xlane.xlu0 %3160
        %v3162 = vsel %vm1409, %v3140, 0.0
        %3163 = vadd.xlane.f32.xlu0 %v3162
        %v3164 = vpop.xlane.xlu0 %3163
        %v3165 = vpack.c.bf16 %v3128, %v3126
        %v3166 = vpack.c.bf16 %v3132, %v3130
        %v3167 = vpack.c.bf16 %v3136, %v3134
        %v3168 = vpack.c.bf16 %v3140, %v3138
        %v3169 = vpack.c.bf16 %v2391, %v2387
        %v3170 = vpack.c.bf16 %v2418, %v2416
        %v3171 = vpack.c.bf16 %v2424, %v2422
        %v3172 = vpack.c.bf16 %v2430, %v2428
        %v3174 = vsel %vm1409, %v3165, 0
        %3176 = vmatprep.subr.bf16.mxu0 0
        %3177 = vmatpush1.bf16.msra.mxu0 %v3169
        %3178 = vmatprep.subr.bf16.mxu0 0
        %3179 = vmatpush1.bf16.msra.mxu0 0
        %3180 = vmatprep.subr.bf16.mxu0 0
        %3181 = vmatpush1.bf16.msra.mxu0 0
        %3182 = vmatprep.subr.bf16.mxu0 0
        %3183 = vmatpush1.bf16.msra.mxu0 0
        %3184 = vmatprep.subr.bf16.mxu0 0
        %3185 = vmatpush1.bf16.msra.mxu0 0
        %3186 = vmatprep.subr.bf16.mxu0 0
        %3187 = vmatpush1.bf16.msra.mxu0 0
        %3188 = vmatprep.subr.bf16.mxu0 0
        %3189 = vmatpush1.bf16.msra.mxu0 0
        %3190 = vmatprep.subr.bf16.mxu0 0
        %3191 = vmatpush1.bf16.msra.mxu0 0
        %3192 = vmatprep.subr.bf16.mxu0 0
        %3193 = vmatpush1.bf16.msra.mxu0 0
        %3194 = vmatprep.subr.bf16.mxu0 0
        %3195 = vmatpush1.bf16.msra.mxu0 0
        %3196 = vmatprep.subr.bf16.mxu0 0
        %3197 = vmatpush1.bf16.msra.mxu0 0
        %3198 = vmatprep.subr.bf16.mxu0 0
        %3199 = vmatpush1.bf16.msra.mxu0 0
        %3200 = vmatprep.subr.bf16.mxu0 0
        %3201 = vmatpush1.bf16.msra.mxu0 0
        %3202 = vmatprep.subr.bf16.mxu0 0
        %3203 = vmatpush1.bf16.msra.mxu0 0
        %3204 = vmatprep.subr.bf16.mxu0 0
        %3205 = vmatpush1.bf16.msra.mxu0 0
        %3206 = vmatprep.subr.bf16.mxu0 0
        %3207 = vmatpush1.bf16.msra.mxu0 0
        %3208 = vmatprep.mubr.bf16.mxu0 0
        %3209 = vmatmul.mubr.bf16.gmra.mrb[0].mxu0 %v3174
        %v3210 = vpop.f32.mrb[0].mxu0
        %v3211 = vadd.f32 0.0, %v3210
        %v3212 = vpop.f32.mrb[0].mxu0
        %v3213 = vpop.f32.mrb[0].mxu0
        %v3214 = vadd.f32 0.0, %v3213
        %v3215 = vpop.f32.mrb[0].mxu0
        %3216 = vdwg.mxu0
        %v3218 = vsel %vm1409, %v3166, 0
        %3220 = vmatprep.subr.bf16.mxu0 0
        %3221 = vmatpush1.bf16.msra.mxu0 %v3170
        %3222 = vmatprep.subr.bf16.mxu0 0
        %3223 = vmatpush1.bf16.msra.mxu0 0
        %3224 = vmatprep.subr.bf16.mxu0 0
        %3225 = vmatpush1.bf16.msra.mxu0 0
        %3226 = vmatprep.subr.bf16.mxu0 0
        %3227 = vmatpush1.bf16.msra.mxu0 0
        %3228 = vmatprep.subr.bf16.mxu0 0
        %3229 = vmatpush1.bf16.msra.mxu0 0
        %3230 = vmatprep.subr.bf16.mxu0 0
        %3231 = vmatpush1.bf16.msra.mxu0 0
        %3232 = vmatprep.subr.bf16.mxu0 0
        %3233 = vmatpush1.bf16.msra.mxu0 0
        %3234 = vmatprep.subr.bf16.mxu0 0
        %3235 = vmatpush1.bf16.msra.mxu0 0
        %3236 = vmatprep.subr.bf16.mxu0 0
        %3237 = vmatpush1.bf16.msra.mxu0 0
        %3238 = vmatprep.subr.bf16.mxu0 0
        %3239 = vmatpush1.bf16.msra.mxu0 0
        %3240 = vmatprep.subr.bf16.mxu0 0
        %3241 = vmatpush1.bf16.msra.mxu0 0
        %3242 = vmatprep.subr.bf16.mxu0 0
        %3243 = vmatpush1.bf16.msra.mxu0 0
        %3244 = vmatprep.subr.bf16.mxu0 0
        %3245 = vmatpush1.bf16.msra.mxu0 0
        %3246 = vmatprep.subr.bf16.mxu0 0
        %3247 = vmatpush1.bf16.msra.mxu0 0
        %3248 = vmatprep.subr.bf16.mxu0 0
        %3249 = vmatpush1.bf16.msra.mxu0 0
        %3250 = vmatprep.subr.bf16.mxu0 0
        %3251 = vmatpush1.bf16.msra.mxu0 0
        %3252 = vmatprep.mubr.bf16.mxu0 0
        %3253 = vmatmul.mubr.bf16.gmra.mrb[0].mxu0 %v3218
        %v3254 = vpop.f32.mrb[0].mxu0
        %v3255 = vadd.f32 0.0, %v3254
        %v3256 = vpop.f32.mrb[0].mxu0
        %v3257 = vpop.f32.mrb[0].mxu0
        %v3258 = vadd.f32 0.0, %v3257
        %v3259 = vpop.f32.mrb[0].mxu0
        %3260 = vdwg.mxu0
        %v3262 = vsel %vm1409, %v3167, 0
        %3264 = vmatprep.subr.bf16.mxu0 0
        %3265 = vmatpush1.bf16.msra.mxu0 %v3171
        %3266 = vmatprep.subr.bf16.mxu0 0
        %3267 = vmatpush1.bf16.msra.mxu0 0
        %3268 = vmatprep.subr.bf16.mxu0 0
        %3269 = vmatpush1.bf16.msra.mxu0 0
        %3270 = vmatprep.subr.bf16.mxu0 0
        %3271 = vmatpush1.bf16.msra.mxu0 0
        %3272 = vmatprep.subr.bf16.mxu0 0
        %3273 = vmatpush1.bf16.msra.mxu0 0
        %3274 = vmatprep.subr.bf16.mxu0 0
        %3275 = vmatpush1.bf16.msra.mxu0 0
        %3276 = vmatprep.subr.bf16.mxu0 0
        %3277 = vmatpush1.bf16.msra.mxu0 0
        %3278 = vmatprep.subr.bf16.mxu0 0
        %3279 = vmatpush1.bf16.msra.mxu0 0
        %3280 = vmatprep.subr.bf16.mxu0 0
        %3281 = vmatpush1.bf16.msra.mxu0 0
        %3282 = vmatprep.subr.bf16.mxu0 0
        %3283 = vmatpush1.bf16.msra.mxu0 0
        %3284 = vmatprep.subr.bf16.mxu0 0
        %3285 = vmatpush1.bf16.msra.mxu0 0
        %3286 = vmatprep.subr.bf16.mxu0 0
        %3287 = vmatpush1.bf16.msra.mxu0 0
        %3288 = vmatprep.subr.bf16.mxu0 0
        %3289 = vmatpush1.bf16.msra.mxu0 0
        %3290 = vmatprep.subr.bf16.mxu0 0
        %3291 = vmatpush1.bf16.msra.mxu0 0
        %3292 = vmatprep.subr.bf16.mxu0 0
        %3293 = vmatpush1.bf16.msra.mxu0 0
        %3294 = vmatprep.subr.bf16.mxu0 0
        %3295 = vmatpush1.bf16.msra.mxu0 0
        %3296 = vmatprep.mubr.bf16.mxu0 0
        %3297 = vmatmul.mubr.bf16.gmra.mrb[0].mxu0 %v3262
        %v3298 = vpop.f32.mrb[0].mxu0
        %v3299 = vadd.f32 0.0, %v3298
        %v3300 = vpop.f32.mrb[0].mxu0
        %v3301 = vpop.f32.mrb[0].mxu0
        %v3302 = vadd.f32 0.0, %v3301
        %v3303 = vpop.f32.mrb[0].mxu0
        %3304 = vdwg.mxu0
        %v3306 = vsel %vm1409, %v3168, 0
        %3308 = vmatprep.subr.bf16.mxu0 0
        %3309 = vmatpush1.bf16.msra.mxu0 %v3172
        %3310 = vmatprep.subr.bf16.mxu0 0
        %3311 = vmatpush1.bf16.msra.mxu0 0
        %3312 = vmatprep.subr.bf16.mxu0 0
        %3313 = vmatpush1.bf16.msra.mxu0 0
        %3314 = vmatprep.subr.bf16.mxu0 0
        %3315 = vmatpush1.bf16.msra.mxu0 0
        %3316 = vmatprep.subr.bf16.mxu0 0
        %3317 = vmatpush1.bf16.msra.mxu0 0
        %3318 = vmatprep.subr.bf16.mxu0 0
        %3319 = vmatpush1.bf16.msra.mxu0 0
        %3320 = vmatprep.subr.bf16.mxu0 0
        %3321 = vmatpush1.bf16.msra.mxu0 0
        %3322 = vmatprep.subr.bf16.mxu0 0
        %3323 = vmatpush1.bf16.msra.mxu0 0
        %3324 = vmatprep.subr.bf16.mxu0 0
        %3325 = vmatpush1.bf16.msra.mxu0 0
        %3326 = vmatprep.subr.bf16.mxu0 0
        %3327 = vmatpush1.bf16.msra.mxu0 0
        %3328 = vmatprep.subr.bf16.mxu0 0
        %3329 = vmatpush1.bf16.msra.mxu0 0
        %3330 = vmatprep.subr.bf16.mxu0 0
        %3331 = vmatpush1.bf16.msra.mxu0 0
        %3332 = vmatprep.subr.bf16.mxu0 0
        %3333 = vmatpush1.bf16.msra.mxu0 0
        %3334 = vmatprep.subr.bf16.mxu0 0
        %3335 = vmatpush1.bf16.msra.mxu0 0
        %3336 = vmatprep.subr.bf16.mxu0 0
        %3337 = vmatpush1.bf16.msra.mxu0 0
        %3338 = vmatprep.subr.bf16.mxu0 0
        %3339 = vmatpush1.bf16.msra.mxu0 0
        %3340 = vmatprep.mubr.bf16.mxu0 0
        %3341 = vmatmul.mubr.bf16.gmra.mrb[0].mxu0 %v3306
        %v3342 = vpop.f32.mrb[0].mxu0
        %v3343 = vadd.f32 0.0, %v3342
        %v3344 = vpop.f32.mrb[0].mxu0
        %v3345 = vpop.f32.mrb[0].mxu0
        %v3346 = vadd.f32 0.0, %v3345
        %v3347 = vpop.f32.mrb[0].mxu0
        %3348 = vdwg.mxu0
        %v3349 = vrcp.pop %v3143
        %v3350 = vrcp.pop %v3146
        %v3351 = vrcp.pop %v3149
        %v3352 = vrcp.pop %v3152
        %v3353 = vrcp.pop %v3155
        %v3354 = vrcp.pop %v3158
        %v3355 = vrcp.pop %v3161
        %v3356 = vrcp.pop %v3164
        %v3357 = vmul.f32 %v3211, %v3349
        %v3358 = vmul.f32 %v3214, %v3350
        %v3359 = vmul.f32 %v3255, %v3351
        %v3360 = vmul.f32 %v3258, %v3352
        %v3361 = vmul.f32 %v3299, %v3353
        %v3362 = vmul.f32 %v3302, %v3354
        %v3363 = vmul.f32 %v3343, %v3355
        %v3364 = vmul.f32 %v3346, %v3356
        %v3365 = vpack.c.bf16 %v3358, %v3357
        %s3366 = scalar_lea.vmem %s6, 32
        %v3367 = vld [vmem:[%s3366] sm:$0xf]
        %v3368 = vld [vmem:[%s3366 + $0x4] sm:$0xf]
        %v3369 = vpack.c.bf16 %v3360, %v3359
        %s3370 = scalar_lea.vmem %s6, 40
        %v3371 = vld [vmem:[%s3370] sm:$0xf]
        %v3372 = vld [vmem:[%s3370 + $0x4] sm:$0xf]
        %v3375 = vunpack.c.l.b16 %v3371
        %v3376 = vunpack.c.l.b16 %v3372
        %v3377 = vpack.c.b16 %v3376, %v3375
        %v3380 = vsel %vm1409, %v3369, 0
        %3382 = vmatprep.subr.bf16.mxu0 0
        %3383 = vmatpush1.bf16.msra.mxu0 %v3377
        %3384 = vmatprep.subr.bf16.mxu0 0
        %3385 = vmatpush1.bf16.msra.mxu0 0
        %3386 = vmatprep.subr.bf16.mxu0 0
        %3387 = vmatpush1.bf16.msra.mxu0 0
        %3388 = vmatprep.subr.bf16.mxu0 0
        %3389 = vmatpush1.bf16.msra.mxu0 0
        %3390 = vmatprep.subr.bf16.mxu0 0
        %3391 = vmatpush1.bf16.msra.mxu0 0
        %3392 = vmatprep.subr.bf16.mxu0 0
        %3393 = vmatpush1.bf16.msra.mxu0 0
        %3394 = vmatprep.subr.bf16.mxu0 0
        %3395 = vmatpush1.bf16.msra.mxu0 0
        %3396 = vmatprep.subr.bf16.mxu0 0
        %3397 = vmatpush1.bf16.msra.mxu0 0
        %3398 = vmatprep.subr.bf16.mxu0 0
        %3399 = vmatpush1.bf16.msra.mxu0 0
        %3400 = vmatprep.subr.bf16.mxu0 0
        %3401 = vmatpush1.bf16.msra.mxu0 0
        %3402 = vmatprep.subr.bf16.mxu0 0
        %3403 = vmatpush1.bf16.msra.mxu0 0
        %3404 = vmatprep.subr.bf16.mxu0 0
        %3405 = vmatpush1.bf16.msra.mxu0 0
        %3406 = vmatprep.subr.bf16.mxu0 0
        %3407 = vmatpush1.bf16.msra.mxu0 0
        %3408 = vmatprep.subr.bf16.mxu0 0
        %3409 = vmatpush1.bf16.msra.mxu0 0
        %3410 = vmatprep.subr.bf16.mxu0 0
        %3411 = vmatpush1.bf16.msra.mxu0 0
        %3412 = vmatprep.subr.bf16.mxu0 0
        %3413 = vmatpush1.bf16.msra.mxu0 0
        %3414 = vmatprep.mubr.bf16.mxu0 0
        %3415 = vmatmul.mubr.bf16.gmra.mrb[0].mxu0 %v3380
        %v3416 = vpop.f32.mrb[0].mxu0
        %v3417 = vadd.f32 0.0, %v3416
        %v3418 = vpop.f32.mrb[0].mxu0
        %v3419 = vpop.f32.mrb[0].mxu0
        %v3420 = vadd.f32 0.0, %v3419
        %v3421 = vpop.f32.mrb[0].mxu0
        %3422 = vdwg.mxu0
        %v3425 = vunpack.c.l.b16 %v3367
        %v3426 = vunpack.c.l.b16 %v3368
        %v3427 = vpack.c.b16 %v3426, %v3425
        %v3430 = vsel %vm1409, %v3365, 0
        %3432 = vmatprep.subr.bf16.mxu0 0
        %3433 = vmatpush1.bf16.msra.mxu0 %v3427
        %3434 = vmatprep.subr.bf16.mxu0 0
        %3435 = vmatpush1.bf16.msra.mxu0 0
        %3436 = vmatprep.subr.bf16.mxu0 0
        %3437 = vmatpush1.bf16.msra.mxu0 0
        %3438 = vmatprep.subr.bf16.mxu0 0
        %3439 = vmatpush1.bf16.msra.mxu0 0
        %3440 = vmatprep.subr.bf16.mxu0 0
        %3441 = vmatpush1.bf16.msra.mxu0 0
        %3442 = vmatprep.subr.bf16.mxu0 0
        %3443 = vmatpush1.bf16.msra.mxu0 0
        %3444 = vmatprep.subr.bf16.mxu0 0
        %3445 = vmatpush1.bf16.msra.mxu0 0
        %3446 = vmatprep.subr.bf16.mxu0 0
        %3447 = vmatpush1.bf16.msra.mxu0 0
        %3448 = vmatprep.subr.bf16.mxu0 0
        %3449 = vmatpush1.bf16.msra.mxu0 0
        %3450 = vmatprep.subr.bf16.mxu0 0
        %3451 = vmatpush1.bf16.msra.mxu0 0
        %3452 = vmatprep.subr.bf16.mxu0 0
        %3453 = vmatpush1.bf16.msra.mxu0 0
        %3454 = vmatprep.subr.bf16.mxu0 0
        %3455 = vmatpush1.bf16.msra.mxu0 0
        %3456 = vmatprep.subr.bf16.mxu0 0
        %3457 = vmatpush1.bf16.msra.mxu0 0
        %3458 = vmatprep.subr.bf16.mxu0 0
        %3459 = vmatpush1.bf16.msra.mxu0 0
        %3460 = vmatprep.subr.bf16.mxu0 0
        %3461 = vmatpush1.bf16.msra.mxu0 0
        %3462 = vmatprep.subr.bf16.mxu0 0
        %3463 = vmatpush1.bf16.msra.mxu0 0
        %3464 = vmatprep.mubr.bf16.mxu0 0
        %3465 = vmatmul.mubr.bf16.gmra.mrb[0].mxu0 %v3430
        %v3466 = vpop.f32.mrb[0].mxu0
        %v3467 = vadd.f32 %v3417, %v3466
        %v3468 = vpop.f32.mrb[0].mxu0
        %v3469 = vpop.f32.mrb[0].mxu0
        %v3470 = vadd.f32 %v3420, %v3469
        %v3471 = vpop.f32.mrb[0].mxu0
        %3472 = vdwg.mxu0
        %v3473 = vpack.c.bf16 %v3362, %v3361
        %s3474 = scalar_lea.vmem %s6, 48
        %v3475 = vld [vmem:[%s3474] sm:$0xf]
        %v3476 = vld [vmem:[%s3474 + $0x4] sm:$0xf]
        %v3479 = vunpack.c.l.b16 %v3475
        %v3480 = vunpack.c.l.b16 %v3476
        %v3481 = vpack.c.b16 %v3480, %v3479
        %v3484 = vsel %vm1409, %v3473, 0
        %3486 = vmatprep.subr.bf16.mxu0 0
        %3487 = vmatpush1.bf16.msra.mxu0 %v3481
        %3488 = vmatprep.subr.bf16.mxu0 0
        %3489 = vmatpush1.bf16.msra.mxu0 0
        %3490 = vmatprep.subr.bf16.mxu0 0
        %3491 = vmatpush1.bf16.msra.mxu0 0
        %3492 = vmatprep.subr.bf16.mxu0 0
        %3493 = vmatpush1.bf16.msra.mxu0 0
        %3494 = vmatprep.subr.bf16.mxu0 0
        %3495 = vmatpush1.bf16.msra.mxu0 0
        %3496 = vmatprep.subr.bf16.mxu0 0
        %3497 = vmatpush1.bf16.msra.mxu0 0
        %3498 = vmatprep.subr.bf16.mxu0 0
        %3499 = vmatpush1.bf16.msra.mxu0 0
        %3500 = vmatprep.subr.bf16.mxu0 0
        %3501 = vmatpush1.bf16.msra.mxu0 0
        %3502 = vmatprep.subr.bf16.mxu0 0
        %3503 = vmatpush1.bf16.msra.mxu0 0
        %3504 = vmatprep.subr.bf16.mxu0 0
        %3505 = vmatpush1.bf16.msra.mxu0 0
        %3506 = vmatprep.subr.bf16.mxu0 0
        %3507 = vmatpush1.bf16.msra.mxu0 0
        %3508 = vmatprep.subr.bf16.mxu0 0
        %3509 = vmatpush1.bf16.msra.mxu0 0
        %3510 = vmatprep.subr.bf16.mxu0 0
        %3511 = vmatpush1.bf16.msra.mxu0 0
        %3512 = vmatprep.subr.bf16.mxu0 0
        %3513 = vmatpush1.bf16.msra.mxu0 0
        %3514 = vmatprep.subr.bf16.mxu0 0
        %3515 = vmatpush1.bf16.msra.mxu0 0
        %3516 = vmatprep.subr.bf16.mxu0 0
        %3517 = vmatpush1.bf16.msra.mxu0 0
        %3518 = vmatprep.mubr.bf16.mxu0 0
        %3519 = vmatmul.mubr.bf16.gmra.mrb[0].mxu0 %v3484
        %v3520 = vpop.f32.mrb[0].mxu0
        %v3521 = vadd.f32 0.0, %v3520
        %v3522 = vpop.f32.mrb[0].mxu0
        %v3523 = vpop.f32.mrb[0].mxu0
        %v3524 = vadd.f32 0.0, %v3523
        %v3525 = vpop.f32.mrb[0].mxu0
        %3526 = vdwg.mxu0
        %v3527 = vadd.f32 %v3467, %v3521
        %v3528 = vadd.f32 %v3470, %v3524
        %v3529 = vpack.c.bf16 %v3364, %v3363
        %s3530 = scalar_lea.vmem %s6, 56
        %v3531 = vld [vmem:[%s3530] sm:$0xf]
        %v3532 = vld [vmem:[%s3530 + $0x4] sm:$0xf]
        %v3535 = vunpack.c.l.b16 %v3531
        %v3536 = vunpack.c.l.b16 %v3532
        %v3537 = vpack.c.b16 %v3536, %v3535
        %v3540 = vsel %vm1409, %v3529, 0
        %3542 = vmatprep.subr.bf16.mxu0 0
        %3543 = vmatpush1.bf16.msra.mxu0 %v3537
        %3544 = vmatprep.subr.bf16.mxu0 0
        %3545 = vmatpush1.bf16.msra.mxu0 0
        %3546 = vmatprep.subr.bf16.mxu0 0
        %3547 = vmatpush1.bf16.msra.mxu0 0
        %3548 = vmatprep.subr.bf16.mxu0 0
        %3549 = vmatpush1.bf16.msra.mxu0 0
        %3550 = vmatprep.subr.bf16.mxu0 0
        %3551 = vmatpush1.bf16.msra.mxu0 0
        %3552 = vmatprep.subr.bf16.mxu0 0
        %3553 = vmatpush1.bf16.msra.mxu0 0
        %3554 = vmatprep.subr.bf16.mxu0 0
        %3555 = vmatpush1.bf16.msra.mxu0 0
        %3556 = vmatprep.subr.bf16.mxu0 0
        %3557 = vmatpush1.bf16.msra.mxu0 0
        %3558 = vmatprep.subr.bf16.mxu0 0
        %3559 = vmatpush1.bf16.msra.mxu0 0
        %3560 = vmatprep.subr.bf16.mxu0 0
        %3561 = vmatpush1.bf16.msra.mxu0 0
        %3562 = vmatprep.subr.bf16.mxu0 0
        %3563 = vmatpush1.bf16.msra.mxu0 0
        %3564 = vmatprep.subr.bf16.mxu0 0
        %3565 = vmatpush1.bf16.msra.mxu0 0
        %3566 = vmatprep.subr.bf16.mxu0 0
        %3567 = vmatpush1.bf16.msra.mxu0 0
        %3568 = vmatprep.subr.bf16.mxu0 0
        %3569 = vmatpush1.bf16.msra.mxu0 0
        %3570 = vmatprep.subr.bf16.mxu0 0
        %3571 = vmatpush1.bf16.msra.mxu0 0
        %3572 = vmatprep.subr.bf16.mxu0 0
        %3573 = vmatpush1.bf16.msra.mxu0 0
        %3574 = vmatprep.mubr.bf16.mxu0 0
        %3575 = vmatmul.mubr.bf16.gmra.mrb[0].mxu0 %v3540
        %v3576 = vpop.f32.mrb[0].mxu0
        %v3577 = vadd.f32 0.0, %v3576
        %v3578 = vpop.f32.mrb[0].mxu0
        %v3579 = vpop.f32.mrb[0].mxu0
        %v3580 = vadd.f32 0.0, %v3579
        %v3581 = vpop.f32.mrb[0].mxu0
        %3582 = vdwg.mxu0
        %v3583 = vadd.f32 %v3527, %v3577
        %v3584 = vadd.f32 %v3528, %v3580
        %v3585 = vadd.f32 %v2259, %v3583
        %v3586 = vadd.f32 %v2260, %v3584
        %v3587 = vsel %vm532, %v3585, 0.0
        %3588 = vadd.xlane.f32.xlu0 %v3587
        %v3589 = vpop.xlane.xlu0 %3588
        %v3590 = vsel %vm532, %v3586, 0.0
        %3591 = vadd.xlane.f32.xlu0 %v3590
        %v3592 = vpop.xlane.xlu0 %3591
        %v3593 = vmul.f32 %v3589, %v539
        %v3594 = vmul.f32 %v3592, %v539
        %v3595 = vsub.f32 %v3585, %v3593
        %v3596 = vsub.f32 %v3586, %v3594
        %v3597 = vmul.f32 %v3595, %v3595
        %v3598 = vmul.f32 %v3596, %v3596
        %v3599 = vsel %vm532, %v3597, 0.0
        %3600 = vadd.xlane.f32.xlu0 %v3599
        %v3601 = vpop.xlane.xlu0 %3600
        %v3602 = vsel %vm532, %v3598, 0.0
        %3603 = vadd.xlane.f32.xlu0 %v3602
        %v3604 = vpop.xlane.xlu0 %3603
        %v3605 = vmul.f32 %v3601, %v539
        %v3606 = vmul.f32 %v3604, %v539
        %v3607 = vadd.f32 %v3605, 1e-05
        %v3608 = vadd.f32 %v3606, 1e-05
        %v3609 = vrsqrt.pop %v3607
        %v3610 = vrsqrt.pop %v3608
        %v3611 = vmul.f32 %v3595, %v3609
        %v3612 = vmul.f32 %v3596, %v3610
        %s3613 = scalar_lea.vmem %s7, 1
        %v3614 = vld [vmem:[%s3613] sm:$0x1]
        %v3616 = vlaneseq
        %v3617 = vshrl.u32 %v3616, 7
        %v3618 = vsub.s32 0, %v3617
        %v3619 = vrot.slane %v3614, %v3618
        %v3621 = vmul.f32 %v3611, %v3619
        %v3622 = vmul.f32 %v3612, %v3619
        %v3623 = vpack.c.bf16 %v3622, %v3621
        %s3624 = scalar_lea.vmem %s8, 64
        %v3625 = vld [vmem:[%s3624] sm:$0xff]
        %v3626 = vld [vmem:[%s3624 + $0x8] sm:$0xff]
        %v3627 = vld [vmem:[%s3624 + $0x10] sm:$0xff]
        %v3628 = vld [vmem:[%s3624 + $0x18] sm:$0xff]
        %v3629 = vld [vmem:[%s3624 + $0x20] sm:$0xff]
        %v3630 = vld [vmem:[%s3624 + $0x28] sm:$0xff]
        %v3631 = vld [vmem:[%s3624 + $0x30] sm:$0xff]
        %v3632 = vld [vmem:[%s3624 + $0x38] sm:$0xff]
        %s3633 = scalar_lea.vmem %s9, 2
        %v3634 = vld [vmem:[%s3633] sm:$0x3]
        %v3636 = vlaneseq
        %v3637 = vshrl.u32 %v3636, 7
        %v3638 = vsub.s32 0, %v3637
        %v3639 = vrot.slane %v3634, %v3638
        %v3640 = vlaneseq
        %v3641 = vshrl.u32 %v3640, 7
        %v3642 = vsub.s32 1, %v3641
        %v3643 = vrot.slane %v3634, %v3642
        %v3654 = vunpack.c.l.b16 %v3625
        %v3655 = vunpack.c.h.b16 %v3625
        %v3656 = vunpack.c.l.b16 %v3626
        %v3657 = vunpack.c.h.b16 %v3626
        %v3658 = vunpack.c.l.b16 %v3627
        %v3659 = vunpack.c.h.b16 %v3627
        %v3660 = vunpack.c.l.b16 %v3628
        %v3661 = vunpack.c.h.b16 %v3628
        %v3662 = vunpack.c.l.b16 %v3629
        %v3663 = vunpack.c.h.b16 %v3629
        %v3664 = vunpack.c.l.b16 %v3630
        %v3665 = vunpack.c.h.b16 %v3630
        %v3666 = vunpack.c.l.b16 %v3631
        %v3667 = vunpack.c.h.b16 %v3631
        %v3668 = vunpack.c.l.b16 %v3632
        %v3669 = vunpack.c.h.b16 %v3632
        %v3670 = vpack.c.b16 %v3656, %v3654
        %v3671 = vpack.c.b16 %v3657, %v3655
        %v3672 = vpack.c.b16 %v3660, %v3658
        %v3673 = vpack.c.b16 %v3661, %v3659
        %v3674 = vpack.c.b16 %v3664, %v3662
        %v3675 = vpack.c.b16 %v3665, %v3663
        %v3676 = vpack.c.b16 %v3668, %v3666
        %v3677 = vpack.c.b16 %v3669, %v3667
        %v3687 = vsel %vm532, %v3623, 0
        %3689 = vmatprep.subr.bf16.mxu0 %v3671
        %3690 = vmatpush1.bf16.msra.mxu0 %v3670
        %3691 = vmatprep.subr.bf16.mxu0 %v3673
        %3692 = vmatpush1.bf16.msra.mxu0 %v3672
        %3693 = vmatprep.subr.bf16.mxu0 %v3675
        %3694 = vmatpush1.bf16.msra.mxu0 %v3674
        %3695 = vmatprep.subr.bf16.mxu0 %v3677
        %3696 = vmatpush1.bf16.msra.mxu0 %v3676
        %3697 = vmatprep.subr.bf16.mxu0 0
        %3698 = vmatpush1.bf16.msra.mxu0 0
        %3699 = vmatprep.subr.bf16.mxu0 0
        %3700 = vmatpush1.bf16.msra.mxu0 0
        %3701 = vmatprep.subr.bf16.mxu0 0
        %3702 = vmatpush1.bf16.msra.mxu0 0
        %3703 = vmatprep.subr.bf16.mxu0 0
        %3704 = vmatpush1.bf16.msra.mxu0 0
        %3705 = vmatprep.subr.bf16.mxu0 0
        %3706 = vmatpush1.bf16.msra.mxu0 0
        %3707 = vmatprep.subr.bf16.mxu0 0
        %3708 = vmatpush1.bf16.msra.mxu0 0
        %3709 = vmatprep.subr.bf16.mxu0 0
        %3710 = vmatpush1.bf16.msra.mxu0 0
        %3711 = vmatprep.subr.bf16.mxu0 0
        %3712 = vmatpush1.bf16.msra.mxu0 0
        %3713 = vmatprep.subr.bf16.mxu0 0
        %3714 = vmatpush1.bf16.msra.mxu0 0
        %3715 = vmatprep.subr.bf16.mxu0 0
        %3716 = vmatpush1.bf16.msra.mxu0 0
        %3717 = vmatprep.subr.bf16.mxu0 0
        %3718 = vmatpush1.bf16.msra.mxu0 0
        %3719 = vmatprep.subr.bf16.mxu0 0
        %3720 = vmatpush1.bf16.msra.mxu0 0
        %3721 = vmatprep.mubr.bf16.mxu0 0
        %3722 = vmatmul.mubr.bf16.gmra.mrb[0].mxu0 %v3687
        %v3723 = vpop.f32.mrb[0].mxu0
        %v3724 = vadd.f32 %v3639, %v3723
        %v3725 = vpop.f32.mrb[0].mxu0
        %v3726 = vadd.f32 %v3643, %v3725
        %v3727 = vpop.f32.mrb[0].mxu0
        %v3728 = vadd.f32 %v3639, %v3727
        %v3729 = vpop.f32.mrb[0].mxu0
        %v3730 = vadd.f32 %v3643, %v3729
        %3731 = vdwg.mxu0
        %v3732 = vmul.f32 %v3724, 0.5
        %v3733 = vmul.f32 %v3726, 0.5
        %v3734 = vmul.f32 %v3728, 0.5
        %v3735 = vmul.f32 %v3730, 0.5
        %v3736 = vmul.f32 %v3724, 0.044715
        %v3737 = vmul.f32 %v3726, 0.044715
        %v3738 = vmul.f32 %v3728, 0.044715
        %v3739 = vmul.f32 %v3730, 0.044715
        %v3740 = vmul.f32 %v3736, %v3724
        %v3741 = vmul.f32 %v3737, %v3726
        %v3742 = vmul.f32 %v3738, %v3728
        %v3743 = vmul.f32 %v3739, %v3730
        %v3744 = vmul.f32 %v3740, %v3724
        %v3745 = vmul.f32 %v3741, %v3726
        %v3746 = vmul.f32 %v3742, %v3728
        %v3747 = vmul.f32 %v3743, %v3730
        %v3748 = vadd.f32 %v3724, %v3744
        %v3749 = vadd.f32 %v3726, %v3745
        %v3750 = vadd.f32 %v3728, %v3746
        %v3751 = vadd.f32 %v3730, %v3747
        %v3752 = vmul.f32 %v3748, 0.7978846
        %v3753 = vmul.f32 %v3749, 0.7978846
        %v3754 = vmul.f32 %v3750, 0.7978846
        %v3755 = vmul.f32 %v3751, 0.7978846
        %v3756 = vtanh.pop %v3752
        %v3757 = vtanh.pop %v3753
        %v3758 = vtanh.pop %v3754
        %v3759 = vtanh.pop %v3755
        %v3760 = vadd.f32 %v3756, 1.0
        %v3761 = vadd.f32 %v3757, 1.0
        %v3762 = vadd.f32 %v3758, 1.0
        %v3763 = vadd.f32 %v3759, 1.0
        %v3764 = vmul.f32 %v3732, %v3760
        %v3765 = vmul.f32 %v3733, %v3761
        %v3766 = vmul.f32 %v3734, %v3762
        %v3767 = vmul.f32 %v3735, %v3763
        %v3768 = vpack.c.bf16 %v3766, %v3764
        %v3769 = vpack.c.bf16 %v3767, %v3765
        %s3770 = scalar_lea.vmem %s10, 128
        %v3771 = vld [vmem:[%s3770] sm:$0xf]
        %v3772 = vld [vmem:[%s3770 + $0x4] sm:$0xf]
        %v3773 = vld [vmem:[%s3770 + $0x8] sm:$0xf]
        %v3774 = vld [vmem:[%s3770 + $0xc] sm:$0xf]
        %v3775 = vld [vmem:[%s3770 + $0x10] sm:$0xf]
        %v3776 = vld [vmem:[%s3770 + $0x14] sm:$0xf]
        %v3777 = vld [vmem:[%s3770 + $0x18] sm:$0xf]
        %v3778 = vld [vmem:[%s3770 + $0x1c] sm:$0xf]
        %v3779 = vld [vmem:[%s3770 + $0x20] sm:$0xf]
        %v3780 = vld [vmem:[%s3770 + $0x24] sm:$0xf]
        %v3781 = vld [vmem:[%s3770 + $0x28] sm:$0xf]
        %v3782 = vld [vmem:[%s3770 + $0x2c] sm:$0xf]
        %v3783 = vld [vmem:[%s3770 + $0x30] sm:$0xf]
        %v3784 = vld [vmem:[%s3770 + $0x34] sm:$0xf]
        %v3785 = vld [vmem:[%s3770 + $0x38] sm:$0xf]
        %v3786 = vld [vmem:[%s3770 + $0x3c] sm:$0xf]
        %v3787 = vld [vmem:[%s3770 + $0x40] sm:$0xf]
        %v3788 = vld [vmem:[%s3770 + $0x44] sm:$0xf]
        %v3789 = vld [vmem:[%s3770 + $0x48] sm:$0xf]
        %v3790 = vld [vmem:[%s3770 + $0x4c] sm:$0xf]
        %v3791 = vld [vmem:[%s3770 + $0x50] sm:$0xf]
        %v3792 = vld [vmem:[%s3770 + $0x54] sm:$0xf]
        %v3793 = vld [vmem:[%s3770 + $0x58] sm:$0xf]
        %v3794 = vld [vmem:[%s3770 + $0x5c] sm:$0xf]
        %v3795 = vld [vmem:[%s3770 + $0x60] sm:$0xf]
        %v3796 = vld [vmem:[%s3770 + $0x64] sm:$0xf]
        %v3797 = vld [vmem:[%s3770 + $0x68] sm:$0xf]
        %v3798 = vld [vmem:[%s3770 + $0x6c] sm:$0xf]
        %v3799 = vld [vmem:[%s3770 + $0x70] sm:$0xf]
        %v3800 = vld [vmem:[%s3770 + $0x74] sm:$0xf]
        %v3801 = vld [vmem:[%s3770 + $0x78] sm:$0xf]
        %v3802 = vld [vmem:[%s3770 + $0x7c] sm:$0xf]
        %s3803 = scalar_lea.vmem %s11, 1
        %v3804 = vld [vmem:[%s3803] sm:$0x1]
        %v3806 = vlaneseq
        %v3807 = vshrl.u32 %v3806, 7
        %v3808 = vsub.s32 0, %v3807
        %v3809 = vrot.slane %v3804, %v3808
        %v3843 = vunpack.c.l.b16 %v3771
        %v3844 = vunpack.c.l.b16 %v3772
        %v3845 = vunpack.c.l.b16 %v3773
        %v3846 = vunpack.c.l.b16 %v3774
        %v3847 = vunpack.c.l.b16 %v3775
        %v3848 = vunpack.c.l.b16 %v3776
        %v3849 = vunpack.c.l.b16 %v3777
        %v3850 = vunpack.c.l.b16 %v3778
        %v3851 = vunpack.c.l.b16 %v3779
        %v3852 = vunpack.c.l.b16 %v3780
        %v3853 = vunpack.c.l.b16 %v3781
        %v3854 = vunpack.c.l.b16 %v3782
        %v3855 = vunpack.c.l.b16 %v3783
        %v3856 = vunpack.c.l.b16 %v3784
        %v3857 = vunpack.c.l.b16 %v3785
        %v3858 = vunpack.c.l.b16 %v3786
        %v3859 = vunpack.c.l.b16 %v3787
        %v3860 = vunpack.c.l.b16 %v3788
        %v3861 = vunpack.c.l.b16 %v3789
        %v3862 = vunpack.c.l.b16 %v3790
        %v3863 = vunpack.c.l.b16 %v3791
        %v3864 = vunpack.c.l.b16 %v3792
        %v3865 = vunpack.c.l.b16 %v3793
        %v3866 = vunpack.c.l.b16 %v3794
        %v3867 = vunpack.c.l.b16 %v3795
        %v3868 = vunpack.c.l.b16 %v3796
        %v3869 = vunpack.c.l.b16 %v3797
        %v3870 = vunpack.c.l.b16 %v3798
        %v3871 = vunpack.c.l.b16 %v3799
        %v3872 = vunpack.c.l.b16 %v3800
        %v3873 = vunpack.c.l.b16 %v3801
        %v3874 = vunpack.c.l.b16 %v3802
        %v3875 = vpack.c.b16 %v3844, %v3843
        %v3876 = vpack.c.b16 %v3846, %v3845
        %v3877 = vpack.c.b16 %v3848, %v3847
        %v3878 = vpack.c.b16 %v3850, %v3849
        %v3879 = vpack.c.b16 %v3852, %v3851
        %v3880 = vpack.c.b16 %v3854, %v3853
        %v3881 = vpack.c.b16 %v3856, %v3855
        %v3882 = vpack.c.b16 %v3858, %v3857
        %v3883 = vpack.c.b16 %v3860, %v3859
        %v3884 = vpack.c.b16 %v3862, %v3861
        %v3885 = vpack.c.b16 %v3864, %v3863
        %v3886 = vpack.c.b16 %v3866, %v3865
        %v3887 = vpack.c.b16 %v3868, %v3867
        %v3888 = vpack.c.b16 %v3870, %v3869
        %v3889 = vpack.c.b16 %v3872, %v3871
        %v3890 = vpack.c.b16 %v3874, %v3873
        %3907 = vmatprep.subr.bf16.mxu0 0
        %3908 = vmatpush1.bf16.msra.mxu0 %v3875
        %3909 = vmatprep.subr.bf16.mxu0 0
        %3910 = vmatpush1.bf16.msra.mxu0 %v3876
        %3911 = vmatprep.subr.bf16.mxu0 0
        %3912 = vmatpush1.bf16.msra.mxu0 %v3877
        %3913 = vmatprep.subr.bf16.mxu0 0
        %3914 = vmatpush1.bf16.msra.mxu0 %v3878
        %3915 = vmatprep.subr.bf16.mxu0 0
        %3916 = vmatpush1.bf16.msra.mxu0 %v3879
        %3917 = vmatprep.subr.bf16.mxu0 0
        %3918 = vmatpush1.bf16.msra.mxu0 %v3880
        %3919 = vmatprep.subr.bf16.mxu0 0
        %3920 = vmatpush1.bf16.msra.mxu0 %v3881
        %3921 = vmatprep.subr.bf16.mxu0 0
        %3922 = vmatpush1.bf16.msra.mxu0 %v3882
        %3923 = vmatprep.subr.bf16.mxu0 0
        %3924 = vmatpush1.bf16.msra.mxu0 %v3883
        %3925 = vmatprep.subr.bf16.mxu0 0
        %3926 = vmatpush1.bf16.msra.mxu0 %v3884
        %3927 = vmatprep.subr.bf16.mxu0 0
        %3928 = vmatpush1.bf16.msra.mxu0 %v3885
        %3929 = vmatprep.subr.bf16.mxu0 0
        %3930 = vmatpush1.bf16.msra.mxu0 %v3886
        %3931 = vmatprep.subr.bf16.mxu0 0
        %3932 = vmatpush1.bf16.msra.mxu0 %v3887
        %3933 = vmatprep.subr.bf16.mxu0 0
        %3934 = vmatpush1.bf16.msra.mxu0 %v3888
        %3935 = vmatprep.subr.bf16.mxu0 0
        %3936 = vmatpush1.bf16.msra.mxu0 %v3889
        %3937 = vmatprep.subr.bf16.mxu0 0
        %3938 = vmatpush1.bf16.msra.mxu0 %v3890
        %3939 = vmatprep.mubr.bf16.mxu0 %v3769
        %3940 = vmatmul.mubr.bf16.gmra.mrb[0].mxu0 %v3768
        %v3941 = vpop.f32.mrb[0].mxu0
        %v3942 = vadd.f32 %v3809, %v3941
        %v3943 = vpop.f32.mrb[0].mxu0
        %v3944 = vpop.f32.mrb[0].mxu0
        %v3945 = vadd.f32 %v3809, %v3944
        %v3946 = vpop.f32.mrb[0].mxu0
        %3947 = vdwg.mxu0
        %v3948 = vadd.f32 %v3585, %v3942
        %v3949 = vadd.f32 %v3586, %v3945
        %v3950 = vsel %vm532, %v3948, 0.0
        %3951 = vadd.xlane.f32.xlu0 %v3950
        %v3952 = vpop.xlane.xlu0 %3951
        %v3953 = vsel %vm532, %v3949, 0.0
        %3954 = vadd.xlane.f32.xlu0 %v3953
        %v3955 = vpop.xlane.xlu0 %3954
        %v3956 = vmul.f32 %v3952, %v539
        %v3957 = vmul.f32 %v3955, %v539
        %v3958 = vsub.f32 %v3948, %v3956
        %v3959 = vsub.f32 %v3949, %v3957
        %v3960 = vmul.f32 %v3958, %v3958
        %v3961 = vmul.f32 %v3959, %v3959
        %v3962 = vsel %vm532, %v3960, 0.0
        %3963 = vadd.xlane.f32.xlu0 %v3962
        %v3964 = vpop.xlane.xlu0 %3963
        %v3965 = vsel %vm532, %v3961, 0.0
        %3966 = vadd.xlane.f32.xlu0 %v3965
        %v3967 = vpop.xlane.xlu0 %3966
        %v3968 = vmul.f32 %v3964, %v539
        %v3969 = vmul.f32 %v3967, %v539
        %v3970 = vadd.f32 %v3968, 1e-05
        %v3971 = vadd.f32 %v3969, 1e-05
        %v3972 = vrsqrt.pop %v3970
        %v3973 = vrsqrt.pop %v3971
        %v3974 = vmul.f32 %v3958, %v3972
        %v3975 = vmul.f32 %v3959, %v3973
        %v3976 = vld [vmem:[%s12] sm:$0x1]
        %v3978 = vlaneseq
        %v3979 = vshrl.u32 %v3978, 7
        %v3980 = vsub.s32 0, %v3979
        %v3981 = vrot.slane %v3976, %v3980
        %v3983 = vmul.f32 %v3974, %v3981
        %v3984 = vmul.f32 %v3975, %v3981
        %v3985 = vpack.c.bf16 %v3984, %v3983
        %v3986 = vld [vmem:[%s13] sm:$0xff]
        %v3987 = vld [vmem:[%s13 + $0x8] sm:$0xff]
        %v3988 = vld [vmem:[%s13 + $0x10] sm:$0xff]
        %v3989 = vld [vmem:[%s13 + $0x18] sm:$0xff]
        %v3990 = vld [vmem:[%s13 + $0x20] sm:$0xff]
        %v3991 = vld [vmem:[%s13 + $0x28] sm:$0xff]
        %v3992 = vld [vmem:[%s13 + $0x30] sm:$0xff]
        %v3993 = vld [vmem:[%s13 + $0x38] sm:$0xff]
        %v3994 = vld [vmem:[%s14] sm:$0x3]
        %v3996 = vlaneseq
        %v3997 = vshrl.u32 %v3996, 7
        %v3998 = vsub.s32 0, %v3997
        %v3999 = vrot.slane %v3994, %v3998
        %v4000 = vlaneseq
        %v4001 = vshrl.u32 %v4000, 7
        %v4002 = vsub.s32 1, %v4001
        %v4003 = vrot.slane %v3994, %v4002
        %v4014 = vunpack.c.l.b16 %v3986
        %v4015 = vunpack.c.h.b16 %v3986
        %v4016 = vunpack.c.l.b16 %v3987
        %v4017 = vunpack.c.h.b16 %v3987
        %v4018 = vunpack.c.l.b16 %v3988
        %v4019 = vunpack.c.h.b16 %v3988
        %v4020 = vunpack.c.l.b16 %v3989
        %v4021 = vunpack.c.h.b16 %v3989
        %v4022 = vunpack.c.l.b16 %v3990
        %v4023 = vunpack.c.h.b16 %v3990
        %v4024 = vunpack.c.l.b16 %v3991
        %v4025 = vunpack.c.h.b16 %v3991
        %v4026 = vunpack.c.l.b16 %v3992
        %v4027 = vunpack.c.h.b16 %v3992
        %v4028 = vunpack.c.l.b16 %v3993
        %v4029 = vunpack.c.h.b16 %v3993
        %v4030 = vpack.c.b16 %v4016, %v4014
        %v4031 = vpack.c.b16 %v4017, %v4015
        %v4032 = vpack.c.b16 %v4020, %v4018
        %v4033 = vpack.c.b16 %v4021, %v4019
        %v4034 = vpack.c.b16 %v4024, %v4022
        %v4035 = vpack.c.b16 %v4025, %v4023
        %v4036 = vpack.c.b16 %v4028, %v4026
        %v4037 = vpack.c.b16 %v4029, %v4027
        %v4047 = vsel %vm532, %v3985, 0
        %4049 = vmatprep.subr.bf16.mxu0 %v4031
        %4050 = vmatpush1.bf16.msra.mxu0 %v4030
        %4051 = vmatprep.subr.bf16.mxu0 %v4033
        %4052 = vmatpush1.bf16.msra.mxu0 %v4032
        %4053 = vmatprep.subr.bf16.mxu0 %v4035
        %4054 = vmatpush1.bf16.msra.mxu0 %v4034
        %4055 = vmatprep.subr.bf16.mxu0 %v4037
        %4056 = vmatpush1.bf16.msra.mxu0 %v4036
        %4057 = vmatprep.subr.bf16.mxu0 0
        %4058 = vmatpush1.bf16.msra.mxu0 0
        %4059 = vmatprep.subr.bf16.mxu0 0
        %4060 = vmatpush1.bf16.msra.mxu0 0
        %4061 = vmatprep.subr.bf16.mxu0 0
        %4062 = vmatpush1.bf16.msra.mxu0 0
        %4063 = vmatprep.subr.bf16.mxu0 0
        %4064 = vmatpush1.bf16.msra.mxu0 0
        %4065 = vmatprep.subr.bf16.mxu0 0
        %4066 = vmatpush1.bf16.msra.mxu0 0
        %4067 = vmatprep.subr.bf16.mxu0 0
        %4068 = vmatpush1.bf16.msra.mxu0 0
        %4069 = vmatprep.subr.bf16.mxu0 0
        %4070 = vmatpush1.bf16.msra.mxu0 0
        %4071 = vmatprep.subr.bf16.mxu0 0
        %4072 = vmatpush1.bf16.msra.mxu0 0
        %4073 = vmatprep.subr.bf16.mxu0 0
        %4074 = vmatpush1.bf16.msra.mxu0 0
        %4075 = vmatprep.subr.bf16.mxu0 0
        %4076 = vmatpush1.bf16.msra.mxu0 0
        %4077 = vmatprep.subr.bf16.mxu0 0
        %4078 = vmatpush1.bf16.msra.mxu0 0
        %4079 = vmatprep.subr.bf16.mxu0 0
        %4080 = vmatpush1.bf16.msra.mxu0 0
        %4081 = vmatprep.mubr.bf16.mxu0 0
        %4082 = vmatmul.mubr.bf16.gmra.mrb[0].mxu0 %v4047
        %v4083 = vpop.f32.mrb[0].mxu0
        %v4084 = vadd.f32 %v3999, %v4083
        %v4085 = vpop.f32.mrb[0].mxu0
        %v4086 = vadd.f32 %v4003, %v4085
        %v4087 = vpop.f32.mrb[0].mxu0
        %v4088 = vadd.f32 %v3999, %v4087
        %v4089 = vpop.f32.mrb[0].mxu0
        %v4090 = vadd.f32 %v4003, %v4089
        %4091 = vdwg.mxu0
        %v4092 = vadd.s32 %v529, 128
        %v4093 = vld [vmem:[%s515] sm:$0xff]
        %v4094 = vld [vmem:[%s515 + $0x8] sm:$0xff]
        %4095 = vset.pattern.permute.xlu0 0
        %4096 = vperm.xlu0 %4095, %v4093
        %v4097 = vpop.permute.xlu0 %4096
        %4098 = vset.pattern.permute.xlu0 0
        %4099 = vperm.xlu0 %4098, %v4094
        %v4100 = vpop.permute.xlu0 %4099
        %vm4101 = vcmp.eq.s32.totalorder %v529, %v4097
        %vm4102 = vcmp.eq.s32.totalorder %v4092, %v4097
        %vm4103 = vcmp.eq.s32.totalorder %v529, %v4100
        %vm4104 = vcmp.eq.s32.totalorder %v4092, %v4100
        %v4105 = vsel %vm4101, 0.0, %v4084
        %v4106 = vsel %vm4102, 0.0, %v4086
        %v4107 = vsel %vm4103, 0.0, %v4088
        %v4108 = vsel %vm4104, 0.0, %v4090
        %v4109 = vpack.c.bf16 %v4107, %v4105
        %v4110 = vpack.c.bf16 %v4108, %v4106
        %v4113 = vunpack.c.l.b16 %v4109
        %v4114 = vunpack.c.l.b16 %v4110
        %v4115 = vunpack.c.h.b16 %v4109
        %v4116 = vunpack.c.h.b16 %v4110
        %v4117 = vpack.c.b16 %v4114, %v4113
        %v4118 = vpack.c.b16 %v4116, %v4115
        %4121 = vst [vmem:[%s504] sm:$0xff] %v4117
        %4122 = vst [vmem:[%s504 + $0x8] sm:$0xff] %v4118
        %s4123 = sand.u32 %s362, 1
        %s4124 = scalar_lea.sflag [#allocation3], %s4123
        %s4125 = sand.u32 %s362, 1
        %s4126 = smul.addr %s4125, 16
        %s4127 = scalar_lea.vmem [#allocation2], %s4126
        // Predicated region
        $region81: #{tpu_custom_call.1} parent=79 // pred_check
          %p4128 = pneg %p372
        $region82: #{tpu_custom_call.1} parent=79 // pred_check_branch
          %4130 = sbr.rel (%p4128) target = $region84
        $region83: #{tpu_custom_call.1} parent=79 // pred_region
          %s4131 = smul.u32 2, %s29
          %s4133 = ssub.s32 256, 256
          %4134 = vsyncadd %s4124, %s4133
          %s4135 = smul.addr %s4131, 2
          %s4136 = smul.addr %s4135, 64
          %s4137 = scalar_lea.hbm %s15, %s4136
          %s4138 = sshll.u32 %s4127, 4
          %s4139 = int_to_ptr.vmem [resolvable:$true] %s4138
          %4144 = dma.vmem_to_hbm [thread:$0]  %s4139, 256, %s4137, %s4124, 128, 128, 8
        $region84: #{tpu_custom_call.1} parent=79 // pred_fallthru
          _
      $region80: #{tpu_custom_call.1} parent=5 // pred_fallthru
        _
      %p4145 = scmp.le.s32.totalorder 2, %s24
      // Predicated region
      $region85: #{tpu_custom_call.1} parent=5 // pred_check
        %p4146 = pneg %p4145
      $region86: #{tpu_custom_call.1} parent=5 // pred_check_branch
        %4148 = sbr.rel (%p4146) target = $region88
      $region87: #{tpu_custom_call.1} parent=5 // pred_region
        %s4149 = ssub.s32 %s24, 2
        // Predicated region
        $region89: #{tpu_custom_call.1} parent=87 // pred_check
          %p4150 = pneg %p378
        $region90: #{tpu_custom_call.1} parent=87 // pred_check_branch
          %4152 = sbr.rel (%p4150) target = $region92
        $region91: #{tpu_custom_call.1} parent=87 // pred_region
          %s4153 = sand.u32 %s363, 1
          %s4154 = scalar_lea.sflag [#allocation3], %s4153
          %s4155 = sand.u32 %s363, 1
          %s4156 = smul.addr %s4155, 16
          %s4157 = scalar_lea.vmem [#allocation2], %s4156
          %4158 = dma.done %s4154, 256
        $region92: #{tpu_custom_call.1} parent=87 // pred_fallthru
          _
      $region88: #{tpu_custom_call.1} parent=5 // pred_fallthru
        _
    $region6: #{tpu_custom_call.1} parent=1 // loop_footer
      %s28 = sadd.s32 1, %s24
    $region7: #{tpu_custom_call.1} parent=1 // loop_footer_branch
      %23 = sbr.rel target = $region3
    $region8: #{tpu_custom_call.1} parent=1 // loop_exit
      _
    %4159 = vsyncpa [#allocation3], 1
    %s4160 = scalar_lea.sflag [#allocation3], 1
    %4161 = vsyncpa %s4160, 1

</llo_original>
